<compile_context>
chip_gen: v7x
topology: tpu7x:2x2x1
jax: 0.10.0
libtpu: 0.0.40
codegen_flags: <defaults>
</compile_context>

<pallas_src>
import functools

import numpy as np
import jax
import jax.numpy as jnp
from jax import lax
from jax.experimental import pallas as pl
from jax.experimental.pallas import tpu as pltpu


def _haar_filter_banks():
    """db1 ('Haar') filter banks, built exactly as create_wavelet_filter does."""
    s = 1.0 / np.sqrt(2.0)
    dec_lo = np.array([s, s], np.float32)
    dec_hi = np.array([s, -s], np.float32)
    rec_lo = np.array([s, s], np.float32)
    rec_hi = np.array([s, -s], np.float32)

    def bank(lo, hi):
        # torch: A.unsqueeze(0) * B.unsqueeze(1)  ->  [i, j] = B[i] * A[j]
        return np.stack(
            [lo[:, None] * lo[None, :],
             hi[:, None] * lo[None, :],
             lo[:, None] * hi[None, :],
             hi[:, None] * hi[None, :]],
            axis=0,
        ).astype(np.float32)  # (4, 2, 2)

    return bank(dec_lo, dec_hi), bank(rec_lo, rec_hi)


def _wtconv_kernel(x_ref, w_ref, o_ref, *, n_strips, TS, Lp, Lpad):
    """One grid step = (channel block cb, batch b).

    x_ref : (1, 1, 4, Hh+4, Lpad) VMEM  phase-split input; ct channel segments of width
                                        seg = Wh+4 packed on lanes, zero halos, plus a
                                        2-lane outer pad each side (Lpad = Lp + 4).
    w_ref : (1, 126, Lpad) VMEM         per-lane weight rows (channel value repeated
                                        across its segment): rows 0..24 base 5x5
                                        (base_scale folded), 25..124 wavelet 5x5
                                        (wavelet_scale and both Haar 1/2's folded),
                                        125 bias (base_scale folded).
    o_ref : (1, 1, 4, Hh, Lp) VMEM      phase-split output, same lane packing (segment
                                        halo lanes hold garbage; wrapper drops them).
    """

    def strip_body(r0):
        # Phase slabs for this row strip (+4 halo rows), loaded once per strip.
        P = [x_ref[0, 0, q, pl.ds(r0, TS + 4), :] for q in range(4)]

        # ---- base_conv: depthwise 5x5 'same', phase decomposed.  Only 12 distinct
        # row windows exist across the 100 (q, a, b) taps; the lane shift is factored
        # out so each tap is just (per-lane weight row) * (row window) + add.
        rwin = {(sp, m): P[sp][(m + 2):(m + 2) + TS, :]
                for sp in range(4) for m in (-1, 0, 1)}
        out = []
        for q in range(4):
            di, dj = q // 2, q % 2
            acc = None
            for n in (-1, 0, 1):                       # lane-shift group
                part = None
                for a in range(5):
                    ta = di + a - 2
                    pi, m = ta % 2, ta // 2
                    for b in range(5):
                        tb = dj + b - 2
                        sj, nn = tb % 2, tb // 2
                        if nn != n:
                            continue
                        wrow = w_ref[0, a * 5 + b:a * 5 + b + 1, :]
                        t = rwin[(pi * 2 + sj, m)] * wrow
                        part = t if part is None else part + t
                shifted = part[:, (2 + n):(2 + n) + Lp]
                acc = shifted if acc is None else acc + shifted
            out.append(acc)

        # ---- Haar analysis as pure add/sub butterflies (the 1/2 is folded into the
        # wavelet weights).  Bank order: LL, (hi_i lo_j), (lo_i hi_j), HH.
        a0 = P[0] + P[2]
        a1 = P[0] - P[2]
        a2 = P[1] + P[3]
        a3 = P[1] - P[3]
        S = (a0 + a2, a1 + a3, a0 - a2, a1 - a3)

        # ---- wavelet_convs[0]: depthwise 5x5 'same' per subband, factored as
        #   y_k = sum_b laneshift_{b-2}( sum_a w[k,a,b] * S_k[a:a+TS, :] )
        # then scattered straight into the 4 output phases with the inverse-Haar sign
        # pattern (the synthesis 1/2 is also folded into the wavelet weights).
        for k in range(4):
            rw = [S[k][a:a + TS, :] for a in range(5)]
            y = None
            for b in range(5):
                part = None
                for a in range(5):
                    idx = 25 + k * 25 + a * 5 + b
                    t = rw[a] * w_ref[0, idx:idx + 1, :]
                    part = t if part is None else part + t
                shifted = part[:, b:b + Lp]
                y = shifted if y is None else y + shifted
            for q in range(4):
                di, dj = q // 2, q % 2
                if k == 0:
                    pos = True
                elif k == 1:
                    pos = (di == 0)
                elif k == 2:
                    pos = (dj == 0)
                else:
                    pos = (di == dj)
                out[q] = (out[q] + y) if pos else (out[q] - y)

        bias = w_ref[0, 125:126, 2:2 + Lp]
        for q in range(4):
            o_ref[0, 0, q, pl.ds(r0, TS), :] = out[q] + bias

    if n_strips == 1:
        strip_body(0)
    else:
        def loop_body(si, carry):
            strip_body(pl.multiple_of(si * TS, 8))
            return carry

        lax.fori_loop(0, n_strips, loop_body, 0)


def _pick_ct(C, seg, B, lane_target=256):
    """Channels packed per lane row: largest divisor of C with ct*seg <= lane_target,
    shrunk if needed so there are at least 2 grid steps (megacore / v7x 2 TCs)."""
    divisors = [d for d in range(1, C + 1) if C % d == 0]
    ct = 1
    for d in divisors:
        if d * seg <= lane_target:
            ct = d
    while B * (C // ct) < 2 and ct > 1:
        ct = max(d for d in divisors if d < ct)
    return ct


def wtconv2d_pallas(x_nchw, base_w, base_b, base_scale, wave_w, wave_scale,
                    dec_np, rec_np):
    B, C, H, W = x_nchw.shape
    assert H % 2 == 0 and W % 2 == 0, "even spatial dims assumed (no odd-size pad path)"
    # TODO(synk): wt_levels > 1 would chain this kernel once per level, and stride > 1
    # would append a stride-2 subsample; only the defaults (wt_levels=1, stride=1,
    # wt_type='db1') are implemented.
    Hh, Wh = H // 2, W // 2
    seg = Wh + 4

    # The kernel hard-codes the Haar (+-1/2) butterflies; verify the banks match.
    sgn = 0.5 * np.array([[[1, 1], [1, 1]], [[1, 1], [-1, -1]],
                          [[1, -1], [1, -1]], [[1, -1], [-1, 1]]], np.float32)
    assert np.allclose(np.asarray(dec_np), sgn) and np.allclose(np.asarray(rec_np), sgn), \
        "kernel assumes db1/Haar filter banks"

    ct = _pick_ct(C, seg, B)
    n_cb = C // ct
    Lp = ct * seg
    Lpad = Lp + 4
    TS = 8 if Hh % 8 == 0 else Hh        # 8-row strips keep live vregs bounded
    n_strips = Hh // TS

    # ---- input: NCHW -> phase split + per-channel zero halo + channels packed on
    # lanes + 2 extra zero lanes on each end.
    # TODO(synk): these are HBM glue passes; fold into the kernel with manual strided
    # DMA if HBM bandwidth ever binds (most relevant on v5e).
    xf = x_nchw.astype(jnp.float32)
    xp = xf.reshape(B, C, Hh, 2, Wh, 2)
    xp = jnp.transpose(xp, (0, 1, 3, 5, 2, 4)).reshape(B, C, 4, Hh, Wh)
    xp = jnp.pad(xp, ((0, 0), (0, 0), (0, 0), (2, 2), (2, 2)))          # halo
    xp = xp.reshape(B, n_cb, ct, 4, Hh + 4, seg)
    xp = jnp.transpose(xp, (1, 0, 3, 4, 2, 5)).reshape(n_cb, B, 4, Hh + 4, Lp)
    xp = jnp.pad(xp, ((0, 0), (0, 0), (0, 0), (0, 0), (2, 2)))          # outer lanes

    # ---- weights: fold scales (and the two Haar 1/2 factors) at trace time, then
    # broadcast each per-channel scalar across its lane segment -> (n_cb, 126, Lpad).
    bscale = base_scale.reshape(C).astype(jnp.float32)
    wscale = wave_scale.reshape(C, 4).astype(jnp.float32)
    wb = (base_w[:, 0].astype(jnp.float32) * bscale[:, None, None]).reshape(C, 25)
    bb = (base_b.astype(jnp.float32) * bscale).reshape(C, 1)
    ww = (wave_w[:, 0].astype(jnp.float32).reshape(C, 4, 5, 5)
          * (0.25 * wscale)[:, :, None, None]).reshape(C, 100)
    wall = jnp.concatenate([wb, ww, bb], axis=1).reshape(n_cb, ct, 126)
    lane_chan = np.clip((np.arange(Lpad) - 2) // seg, 0, ct - 1)
    wvec = jnp.transpose(wall[:, lane_chan, :], (0, 2, 1))               # (n_cb, 126, Lpad)

    kernel = functools.partial(_wtconv_kernel, n_strips=n_strips, TS=TS, Lp=Lp, Lpad=Lpad)

    blk_bytes = 4 * (4 * (Hh + 4) * Lpad + 126 * Lpad + 4 * Hh * Lp)
    vmem_limit = int(min(max(2 * blk_bytes + (8 << 20), 32 << 20), 64 << 20))

    out_packed = pl.pallas_call(
        kernel,
        out_shape=jax.ShapeDtypeStruct((n_cb, B, 4, Hh, Lp), jnp.float32),
        grid=(n_cb, B),
        in_specs=[
            pl.BlockSpec((1, 1, 4, Hh + 4, Lpad), lambda cb, b: (cb, b, 0, 0, 0)),
            pl.BlockSpec((1, 126, Lpad), lambda cb, b: (cb, 0, 0)),      # reused along b
        ],
        out_specs=pl.BlockSpec((1, 1, 4, Hh, Lp), lambda cb, b: (cb, b, 0, 0, 0)),
        compiler_params=pltpu.CompilerParams(
            dimension_semantics=("parallel", "parallel"),
            vmem_limit_bytes=vmem_limit,
        ),
    )(xp, wvec)

    # ---- lane-packed phase split -> NCHW (drop the per-segment halo lanes)
    o = out_packed.reshape(n_cb, B, 2, 2, Hh, ct, seg)[..., 2:2 + Wh]
    o = jnp.transpose(o, (1, 0, 5, 4, 2, 6, 3)).reshape(B, C, H, W)
    return o


def wtconv2d_reference(x, base_w, base_b, base_scale, wave_w, wave_scale,
                       dec_base, rec_base):
    """Plain-JAX reference mirroring the PyTorch forward (NCHW, grouped convs)."""
    B, C, H, W = x.shape
    dn = ("NCHW", "OIHW", "NCHW")
    prec = lax.Precision.HIGHEST

    dec_filters = jnp.tile(dec_base[:, None, :, :], (C, 1, 1, 1))        # (4C, 1, 2, 2)
    wt = lax.conv_general_dilated(x, dec_filters, (2, 2), [(0, 0), (0, 0)],
                                  dimension_numbers=dn, feature_group_count=C,
                                  precision=prec)                        # (B, 4C, Hh, Wh)
    y = lax.conv_general_dilated(wt, wave_w, (1, 1), [(2, 2), (2, 2)],
                                 dimension_numbers=dn, feature_group_count=4 * C,
                                 precision=prec)
    y = y * wave_scale
    y5 = y.reshape(B, C, 4, H // 2, W // 2)

    # inverse wavelet transform == conv_transpose2d(stride=2, groups=C, padding=0)
    x_tag = jnp.zeros((B, C, H, W), jnp.float32)
    for di in range(2):
        for dj in range(2):
            contrib = sum(y5[:, :, k] * float(rec_base[k, di, dj]) for k in range(4))
            x_tag = x_tag.at[:, :, di::2, dj::2].set(contrib)

    base = lax.conv_general_dilated(x, base_w, (1, 1), [(2, 2), (2, 2)],
                                    dimension_numbers=dn, feature_group_count=C,
                                    precision=prec)
    base = (base + base_b.reshape(1, C, 1, 1)) * base_scale
    return base + x_tag


def _make_params(key, C):
    kw1, kb1, kw2, ks1, ks2 = jax.random.split(key, 5)
    base_w = 0.2 * jax.random.normal(kw1, (C, 1, 5, 5), jnp.float32)        # base_conv.weight
    base_b = 0.1 * jax.random.normal(kb1, (C,), jnp.float32)                # base_conv.bias
    wave_w = 0.2 * jax.random.normal(kw2, (4 * C, 1, 5, 5), jnp.float32)    # wavelet_convs[0].weight
    base_scale = 1.0 + 0.1 * jax.random.normal(ks1, (1, C, 1, 1), jnp.float32)
    wave_scale = 0.1 + 0.02 * jax.random.normal(ks2, (1, 4 * C, 1, 1), jnp.float32)
    return base_w, base_b, wave_w, base_scale, wave_scale


if __name__ == "__main__":
    dec_np, rec_np = _haar_filter_banks()
    key = jax.random.PRNGKey(0)

    # case 1: single strip / single channel block; case 2: multi-strip row loop,
    # multiple channel blocks and the B==1 megacore-split heuristic.
    for (B, C, H, W) in [(2, 4, 16, 16), (1, 8, 32, 32)]:
        key, kx, kp = jax.random.split(key, 3)
        x = jax.random.normal(kx, (B, C, H, W), jnp.float32)
        base_w, base_b, wave_w, base_scale, wave_scale = _make_params(kp, C)

        out = wtconv2d_pallas(x, base_w, base_b, base_scale, wave_w, wave_scale,
                              dec_np, rec_np)
        out = jax.block_until_ready(out)

        ref = wtconv2d_reference(x, base_w, base_b, base_scale, wave_w, wave_scale,
                                 jnp.asarray(dec_np), rec_np)
        ref = jax.block_until_ready(ref)

        assert out.shape == (B, C, H, W)
        np.testing.assert_allclose(np.asarray(out), np.asarray(ref), rtol=1e-4, atol=1e-4)

    print("KERNEL_OK")
</pallas_src>

<mosaic_0001>
module attributes {stable_mosaic.version = 11 : i64} {
  func.func @_wtconv_kernel(%arg0: i32, %arg1: i32, %arg2: memref<1x1x4x12x52xf32, #tpu.memory_space<vmem>>, %arg3: memref<1x126x52xf32, #tpu.memory_space<vmem>>, %arg4: memref<1x1x4x8x48xf32, #tpu.memory_space<vmem>>) attributes {dimension_semantics = [#tpu.dimension_semantics<parallel>, #tpu.dimension_semantics<parallel>], iteration_bounds = array<i64: 1, 2>, scalar_prefetch = 0 : i64, scratch_operands = 0 : i64, tpu.core_type = #tpu.core_type<tc>, window_params = [{transform_indices = @transform_0, window_bounds = array<i64: 1, 1, 4, 12, 52>}, {transform_indices = @transform_1, window_bounds = array<i64: 1, 126, 52>}, {transform_indices = @transform_2, window_bounds = array<i64: 1, 1, 4, 8, 48>}]} {
    %c0 = arith.constant 0 : index
    %c0_0 = arith.constant 0 : index
    %c0_1 = arith.constant 0 : index
    %c0_2 = arith.constant 0 : index
    %c0_3 = arith.constant 0 : index
    %0 = vector.load %arg2[%c0, %c0_0, %c0_1, %c0_2, %c0_3] : memref<1x1x4x12x52xf32, #tpu.memory_space<vmem>>, vector<1x1x1x12x52xf32>
    %1 = vector.shape_cast %0 : vector<1x1x1x12x52xf32> to vector<12x52xf32>
    %c0_4 = arith.constant 0 : index
    %c0_5 = arith.constant 0 : index
    %c1 = arith.constant 1 : index
    %c0_6 = arith.constant 0 : index
    %c0_7 = arith.constant 0 : index
    %2 = vector.load %arg2[%c0_4, %c0_5, %c1, %c0_6, %c0_7] : memref<1x1x4x12x52xf32, #tpu.memory_space<vmem>>, vector<1x1x1x12x52xf32>
    %3 = vector.shape_cast %2 : vector<1x1x1x12x52xf32> to vector<12x52xf32>
    %c0_8 = arith.constant 0 : index
    %c0_9 = arith.constant 0 : index
    %c2 = arith.constant 2 : index
    %c0_10 = arith.constant 0 : index
    %c0_11 = arith.constant 0 : index
    %4 = vector.load %arg2[%c0_8, %c0_9, %c2, %c0_10, %c0_11] : memref<1x1x4x12x52xf32, #tpu.memory_space<vmem>>, vector<1x1x1x12x52xf32>
    %5 = vector.shape_cast %4 : vector<1x1x1x12x52xf32> to vector<12x52xf32>
    %c0_12 = arith.constant 0 : index
    %c0_13 = arith.constant 0 : index
    %c3 = arith.constant 3 : index
    %c0_14 = arith.constant 0 : index
    %c0_15 = arith.constant 0 : index
    %6 = vector.load %arg2[%c0_12, %c0_13, %c3, %c0_14, %c0_15] : memref<1x1x4x12x52xf32, #tpu.memory_space<vmem>>, vector<1x1x1x12x52xf32>
    %7 = vector.shape_cast %6 : vector<1x1x1x12x52xf32> to vector<12x52xf32>
    %8 = vector.extract_strided_slice %1 {offsets = [1, 0], sizes = [8, 52], strides = [1, 1]} : vector<12x52xf32> to vector<8x52xf32>
    %9 = vector.extract_strided_slice %1 {offsets = [2, 0], sizes = [8, 52], strides = [1, 1]} : vector<12x52xf32> to vector<8x52xf32>
    %10 = vector.extract_strided_slice %1 {offsets = [3, 0], sizes = [8, 52], strides = [1, 1]} : vector<12x52xf32> to vector<8x52xf32>
    %11 = vector.extract_strided_slice %3 {offsets = [1, 0], sizes = [8, 52], strides = [1, 1]} : vector<12x52xf32> to vector<8x52xf32>
    %12 = vector.extract_strided_slice %3 {offsets = [2, 0], sizes = [8, 52], strides = [1, 1]} : vector<12x52xf32> to vector<8x52xf32>
    %13 = vector.extract_strided_slice %3 {offsets = [3, 0], sizes = [8, 52], strides = [1, 1]} : vector<12x52xf32> to vector<8x52xf32>
    %14 = vector.extract_strided_slice %5 {offsets = [1, 0], sizes = [8, 52], strides = [1, 1]} : vector<12x52xf32> to vector<8x52xf32>
    %15 = vector.extract_strided_slice %5 {offsets = [2, 0], sizes = [8, 52], strides = [1, 1]} : vector<12x52xf32> to vector<8x52xf32>
    %16 = vector.extract_strided_slice %5 {offsets = [3, 0], sizes = [8, 52], strides = [1, 1]} : vector<12x52xf32> to vector<8x52xf32>
    %17 = vector.extract_strided_slice %7 {offsets = [1, 0], sizes = [8, 52], strides = [1, 1]} : vector<12x52xf32> to vector<8x52xf32>
    %18 = vector.extract_strided_slice %7 {offsets = [2, 0], sizes = [8, 52], strides = [1, 1]} : vector<12x52xf32> to vector<8x52xf32>
    %19 = vector.extract_strided_slice %7 {offsets = [3, 0], sizes = [8, 52], strides = [1, 1]} : vector<12x52xf32> to vector<8x52xf32>
    %c0_16 = arith.constant 0 : index
    %c0_17 = arith.constant 0 : index
    %c0_18 = arith.constant 0 : index
    %20 = vector.load %arg3[%c0_16, %c0_17, %c0_18] : memref<1x126x52xf32, #tpu.memory_space<vmem>>, vector<1x1x52xf32>
    %21 = vector.shape_cast %20 : vector<1x1x52xf32> to vector<1x52xf32>
    %22 = vector.broadcast %21 : vector<1x52xf32> to vector<8x52xf32>
    %23 = arith.mulf %8, %22 : vector<8x52xf32>
    %c0_19 = arith.constant 0 : index
    %c1_20 = arith.constant 1 : index
    %c0_21 = arith.constant 0 : index
    %24 = vector.load %arg3[%c0_19, %c1_20, %c0_21] : memref<1x126x52xf32, #tpu.memory_space<vmem>>, vector<1x1x52xf32>
    %25 = vector.shape_cast %24 : vector<1x1x52xf32> to vector<1x52xf32>
    %26 = vector.broadcast %25 : vector<1x52xf32> to vector<8x52xf32>
    %27 = arith.mulf %11, %26 : vector<8x52xf32>
    %28 = arith.addf %23, %27 : vector<8x52xf32>
    %c0_22 = arith.constant 0 : index
    %c5 = arith.constant 5 : index
    %c0_23 = arith.constant 0 : index
    %29 = vector.load %arg3[%c0_22, %c5, %c0_23] : memref<1x126x52xf32, #tpu.memory_space<vmem>>, vector<1x1x52xf32>
    %30 = vector.shape_cast %29 : vector<1x1x52xf32> to vector<1x52xf32>
    %31 = vector.broadcast %30 : vector<1x52xf32> to vector<8x52xf32>
    %32 = arith.mulf %14, %31 : vector<8x52xf32>
    %33 = arith.addf %28, %32 : vector<8x52xf32>
    %c0_24 = arith.constant 0 : index
    %c6 = arith.constant 6 : index
    %c0_25 = arith.constant 0 : index
    %34 = vector.load %arg3[%c0_24, %c6, %c0_25] : memref<1x126x52xf32, #tpu.memory_space<vmem>>, vector<1x1x52xf32>
    %35 = vector.shape_cast %34 : vector<1x1x52xf32> to vector<1x52xf32>
    %36 = vector.broadcast %35 : vector<1x52xf32> to vector<8x52xf32>
    %37 = arith.mulf %17, %36 : vector<8x52xf32>
    %38 = arith.addf %33, %37 : vector<8x52xf32>
    %c0_26 = arith.constant 0 : index
    %c10 = arith.constant 10 : index
    %c0_27 = arith.constant 0 : index
    %39 = vector.load %arg3[%c0_26, %c10, %c0_27] : memref<1x126x52xf32, #tpu.memory_space<vmem>>, vector<1x1x52xf32>
    %40 = vector.shape_cast %39 : vector<1x1x52xf32> to vector<1x52xf32>
    %41 = vector.broadcast %40 : vector<1x52xf32> to vector<8x52xf32>
    %42 = arith.mulf %9, %41 : vector<8x52xf32>
    %43 = arith.addf %38, %42 : vector<8x52xf32>
    %c0_28 = arith.constant 0 : index
    %c11 = arith.constant 11 : index
    %c0_29 = arith.constant 0 : index
    %44 = vector.load %arg3[%c0_28, %c11, %c0_29] : memref<1x126x52xf32, #tpu.memory_space<vmem>>, vector<1x1x52xf32>
    %45 = vector.shape_cast %44 : vector<1x1x52xf32> to vector<1x52xf32>
    %46 = vector.broadcast %45 : vector<1x52xf32> to vector<8x52xf32>
    %47 = arith.mulf %12, %46 : vector<8x52xf32>
    %48 = arith.addf %43, %47 : vector<8x52xf32>
    %c0_30 = arith.constant 0 : index
    %c15 = arith.constant 15 : index
    %c0_31 = arith.constant 0 : index
    %49 = vector.load %arg3[%c0_30, %c15, %c0_31] : memref<1x126x52xf32, #tpu.memory_space<vmem>>, vector<1x1x52xf32>
    %50 = vector.shape_cast %49 : vector<1x1x52xf32> to vector<1x52xf32>
    %51 = vector.broadcast %50 : vector<1x52xf32> to vector<8x52xf32>
    %52 = arith.mulf %15, %51 : vector<8x52xf32>
    %53 = arith.addf %48, %52 : vector<8x52xf32>
    %c0_32 = arith.constant 0 : index
    %c16 = arith.constant 16 : index
    %c0_33 = arith.constant 0 : index
    %54 = vector.load %arg3[%c0_32, %c16, %c0_33] : memref<1x126x52xf32, #tpu.memory_space<vmem>>, vector<1x1x52xf32>
    %55 = vector.shape_cast %54 : vector<1x1x52xf32> to vector<1x52xf32>
    %56 = vector.broadcast %55 : vector<1x52xf32> to vector<8x52xf32>
    %57 = arith.mulf %18, %56 : vector<8x52xf32>
    %58 = arith.addf %53, %57 : vector<8x52xf32>
    %c0_34 = arith.constant 0 : index
    %c20 = arith.constant 20 : index
    %c0_35 = arith.constant 0 : index
    %59 = vector.load %arg3[%c0_34, %c20, %c0_35] : memref<1x126x52xf32, #tpu.memory_space<vmem>>, vector<1x1x52xf32>
    %60 = vector.shape_cast %59 : vector<1x1x52xf32> to vector<1x52xf32>
    %61 = vector.broadcast %60 : vector<1x52xf32> to vector<8x52xf32>
    %62 = arith.mulf %10, %61 : vector<8x52xf32>
    %63 = arith.addf %58, %62 : vector<8x52xf32>
    %c0_36 = arith.constant 0 : index
    %c21 = arith.constant 21 : index
    %c0_37 = arith.constant 0 : index
    %64 = vector.load %arg3[%c0_36, %c21, %c0_37] : memref<1x126x52xf32, #tpu.memory_space<vmem>>, vector<1x1x52xf32>
    %65 = vector.shape_cast %64 : vector<1x1x52xf32> to vector<1x52xf32>
    %66 = vector.broadcast %65 : vector<1x52xf32> to vector<8x52xf32>
    %67 = arith.mulf %13, %66 : vector<8x52xf32>
    %68 = arith.addf %63, %67 : vector<8x52xf32>
    %69 = vector.extract_strided_slice %68 {offsets = [0, 1], sizes = [8, 48], strides = [1, 1]} : vector<8x52xf32> to vector<8x48xf32>
    %c0_38 = arith.constant 0 : index
    %c2_39 = arith.constant 2 : index
    %c0_40 = arith.constant 0 : index
    %70 = vector.load %arg3[%c0_38, %c2_39, %c0_40] : memref<1x126x52xf32, #tpu.memory_space<vmem>>, vector<1x1x52xf32>
    %71 = vector.shape_cast %70 : vector<1x1x52xf32> to vector<1x52xf32>
    %72 = vector.broadcast %71 : vector<1x52xf32> to vector<8x52xf32>
    %73 = arith.mulf %8, %72 : vector<8x52xf32>
    %c0_41 = arith.constant 0 : index
    %c3_42 = arith.constant 3 : index
    %c0_43 = arith.constant 0 : index
    %74 = vector.load %arg3[%c0_41, %c3_42, %c0_43] : memref<1x126x52xf32, #tpu.memory_space<vmem>>, vector<1x1x52xf32>
    %75 = vector.shape_cast %74 : vector<1x1x52xf32> to vector<1x52xf32>
    %76 = vector.broadcast %75 : vector<1x52xf32> to vector<8x52xf32>
    %77 = arith.mulf %11, %76 : vector<8x52xf32>
    %78 = arith.addf %73, %77 : vector<8x52xf32>
    %c0_44 = arith.constant 0 : index
    %c7 = arith.constant 7 : index
    %c0_45 = arith.constant 0 : index
    %79 = vector.load %arg3[%c0_44, %c7, %c0_45] : memref<1x126x52xf32, #tpu.memory_space<vmem>>, vector<1x1x52xf32>
    %80 = vector.shape_cast %79 : vector<1x1x52xf32> to vector<1x52xf32>
    %81 = vector.broadcast %80 : vector<1x52xf32> to vector<8x52xf32>
    %82 = arith.mulf %14, %81 : vector<8x52xf32>
    %83 = arith.addf %78, %82 : vector<8x52xf32>
    %c0_46 = arith.constant 0 : index
    %c8 = arith.constant 8 : index
    %c0_47 = arith.constant 0 : index
    %84 = vector.load %arg3[%c0_46, %c8, %c0_47] : memref<1x126x52xf32, #tpu.memory_space<vmem>>, vector<1x1x52xf32>
    %85 = vector.shape_cast %84 : vector<1x1x52xf32> to vector<1x52xf32>
    %86 = vector.broadcast %85 : vector<1x52xf32> to vector<8x52xf32>
    %87 = arith.mulf %17, %86 : vector<8x52xf32>
    %88 = arith.addf %83, %87 : vector<8x52xf32>
    %c0_48 = arith.constant 0 : index
    %c12 = arith.constant 12 : index
    %c0_49 = arith.constant 0 : index
    %89 = vector.load %arg3[%c0_48, %c12, %c0_49] : memref<1x126x52xf32, #tpu.memory_space<vmem>>, vector<1x1x52xf32>
    %90 = vector.shape_cast %89 : vector<1x1x52xf32> to vector<1x52xf32>
    %91 = vector.broadcast %90 : vector<1x52xf32> to vector<8x52xf32>
    %92 = arith.mulf %9, %91 : vector<8x52xf32>
    %93 = arith.addf %88, %92 : vector<8x52xf32>
    %c0_50 = arith.constant 0 : index
    %c13 = arith.constant 13 : index
    %c0_51 = arith.constant 0 : index
    %94 = vector.load %arg3[%c0_50, %c13, %c0_51] : memref<1x126x52xf32, #tpu.memory_space<vmem>>, vector<1x1x52xf32>
    %95 = vector.shape_cast %94 : vector<1x1x52xf32> to vector<1x52xf32>
    %96 = vector.broadcast %95 : vector<1x52xf32> to vector<8x52xf32>
    %97 = arith.mulf %12, %96 : vector<8x52xf32>
    %98 = arith.addf %93, %97 : vector<8x52xf32>
    %c0_52 = arith.constant 0 : index
    %c17 = arith.constant 17 : index
    %c0_53 = arith.constant 0 : index
    %99 = vector.load %arg3[%c0_52, %c17, %c0_53] : memref<1x126x52xf32, #tpu.memory_space<vmem>>, vector<1x1x52xf32>
    %100 = vector.shape_cast %99 : vector<1x1x52xf32> to vector<1x52xf32>
    %101 = vector.broadcast %100 : vector<1x52xf32> to vector<8x52xf32>
    %102 = arith.mulf %15, %101 : vector<8x52xf32>
    %103 = arith.addf %98, %102 : vector<8x52xf32>
    %c0_54 = arith.constant 0 : index
    %c18 = arith.constant 18 : index
    %c0_55 = arith.constant 0 : index
    %104 = vector.load %arg3[%c0_54, %c18, %c0_55] : memref<1x126x52xf32, #tpu.memory_space<vmem>>, vector<1x1x52xf32>
    %105 = vector.shape_cast %104 : vector<1x1x52xf32> to vector<1x52xf32>
    %106 = vector.broadcast %105 : vector<1x52xf32> to vector<8x52xf32>
    %107 = arith.mulf %18, %106 : vector<8x52xf32>
    %108 = arith.addf %103, %107 : vector<8x52xf32>
    %c0_56 = arith.constant 0 : index
    %c22 = arith.constant 22 : index
    %c0_57 = arith.constant 0 : index
    %109 = vector.load %arg3[%c0_56, %c22, %c0_57] : memref<1x126x52xf32, #tpu.memory_space<vmem>>, vector<1x1x52xf32>
    %110 = vector.shape_cast %109 : vector<1x1x52xf32> to vector<1x52xf32>
    %111 = vector.broadcast %110 : vector<1x52xf32> to vector<8x52xf32>
    %112 = arith.mulf %10, %111 : vector<8x52xf32>
    %113 = arith.addf %108, %112 : vector<8x52xf32>
    %c0_58 = arith.constant 0 : index
    %c23 = arith.constant 23 : index
    %c0_59 = arith.constant 0 : index
    %114 = vector.load %arg3[%c0_58, %c23, %c0_59] : memref<1x126x52xf32, #tpu.memory_space<vmem>>, vector<1x1x52xf32>
    %115 = vector.shape_cast %114 : vector<1x1x52xf32> to vector<1x52xf32>
    %116 = vector.broadcast %115 : vector<1x52xf32> to vector<8x52xf32>
    %117 = arith.mulf %13, %116 : vector<8x52xf32>
    %118 = arith.addf %113, %117 : vector<8x52xf32>
    %119 = vector.extract_strided_slice %118 {offsets = [0, 2], sizes = [8, 48], strides = [1, 1]} : vector<8x52xf32> to vector<8x48xf32>
    %120 = arith.addf %69, %119 : vector<8x48xf32>
    %c0_60 = arith.constant 0 : index
    %c4 = arith.constant 4 : index
    %c0_61 = arith.constant 0 : index
    %121 = vector.load %arg3[%c0_60, %c4, %c0_61] : memref<1x126x52xf32, #tpu.memory_space<vmem>>, vector<1x1x52xf32>
    %122 = vector.shape_cast %121 : vector<1x1x52xf32> to vector<1x52xf32>
    %123 = vector.broadcast %122 : vector<1x52xf32> to vector<8x52xf32>
    %124 = arith.mulf %8, %123 : vector<8x52xf32>
    %c0_62 = arith.constant 0 : index
    %c9 = arith.constant 9 : index
    %c0_63 = arith.constant 0 : index
    %125 = vector.load %arg3[%c0_62, %c9, %c0_63] : memref<1x126x52xf32, #tpu.memory_space<vmem>>, vector<1x1x52xf32>
    %126 = vector.shape_cast %125 : vector<1x1x52xf32> to vector<1x52xf32>
    %127 = vector.broadcast %126 : vector<1x52xf32> to vector<8x52xf32>
    %128 = arith.mulf %14, %127 : vector<8x52xf32>
    %129 = arith.addf %124, %128 : vector<8x52xf32>
    %c0_64 = arith.constant 0 : index
    %c14 = arith.constant 14 : index
    %c0_65 = arith.constant 0 : index
    %130 = vector.load %arg3[%c0_64, %c14, %c0_65] : memref<1x126x52xf32, #tpu.memory_space<vmem>>, vector<1x1x52xf32>
    %131 = vector.shape_cast %130 : vector<1x1x52xf32> to vector<1x52xf32>
    %132 = vector.broadcast %131 : vector<1x52xf32> to vector<8x52xf32>
    %133 = arith.mulf %9, %132 : vector<8x52xf32>
    %134 = arith.addf %129, %133 : vector<8x52xf32>
    %c0_66 = arith.constant 0 : index
    %c19 = arith.constant 19 : index
    %c0_67 = arith.constant 0 : index
    %135 = vector.load %arg3[%c0_66, %c19, %c0_67] : memref<1x126x52xf32, #tpu.memory_space<vmem>>, vector<1x1x52xf32>
    %136 = vector.shape_cast %135 : vector<1x1x52xf32> to vector<1x52xf32>
    %137 = vector.broadcast %136 : vector<1x52xf32> to vector<8x52xf32>
    %138 = arith.mulf %15, %137 : vector<8x52xf32>
    %139 = arith.addf %134, %138 : vector<8x52xf32>
    %c0_68 = arith.constant 0 : index
    %c24 = arith.constant 24 : index
    %c0_69 = arith.constant 0 : index
    %140 = vector.load %arg3[%c0_68, %c24, %c0_69] : memref<1x126x52xf32, #tpu.memory_space<vmem>>, vector<1x1x52xf32>
    %141 = vector.shape_cast %140 : vector<1x1x52xf32> to vector<1x52xf32>
    %142 = vector.broadcast %141 : vector<1x52xf32> to vector<8x52xf32>
    %143 = arith.mulf %10, %142 : vector<8x52xf32>
    %144 = arith.addf %139, %143 : vector<8x52xf32>
    %145 = vector.extract_strided_slice %144 {offsets = [0, 3], sizes = [8, 48], strides = [1, 1]} : vector<8x52xf32> to vector<8x48xf32>
    %146 = arith.addf %120, %145 : vector<8x48xf32>
    %c0_70 = arith.constant 0 : index
    %c0_71 = arith.constant 0 : index
    %c0_72 = arith.constant 0 : index
    %147 = vector.load %arg3[%c0_70, %c0_71, %c0_72] : memref<1x126x52xf32, #tpu.memory_space<vmem>>, vector<1x1x52xf32>
    %148 = vector.shape_cast %147 : vector<1x1x52xf32> to vector<1x52xf32>
    %149 = vector.broadcast %148 : vector<1x52xf32> to vector<8x52xf32>
    %150 = arith.mulf %11, %149 : vector<8x52xf32>
    %c0_73 = arith.constant 0 : index
    %c5_74 = arith.constant 5 : index
    %c0_75 = arith.constant 0 : index
    %151 = vector.load %arg3[%c0_73, %c5_74, %c0_75] : memref<1x126x52xf32, #tpu.memory_space<vmem>>, vector<1x1x52xf32>
    %152 = vector.shape_cast %151 : vector<1x1x52xf32> to vector<1x52xf32>
    %153 = vector.broadcast %152 : vector<1x52xf32> to vector<8x52xf32>
    %154 = arith.mulf %17, %153 : vector<8x52xf32>
    %155 = arith.addf %150, %154 : vector<8x52xf32>
    %c0_76 = arith.constant 0 : index
    %c10_77 = arith.constant 10 : index
    %c0_78 = arith.constant 0 : index
    %156 = vector.load %arg3[%c0_76, %c10_77, %c0_78] : memref<1x126x52xf32, #tpu.memory_space<vmem>>, vector<1x1x52xf32>
    %157 = vector.shape_cast %156 : vector<1x1x52xf32> to vector<1x52xf32>
    %158 = vector.broadcast %157 : vector<1x52xf32> to vector<8x52xf32>
    %159 = arith.mulf %12, %158 : vector<8x52xf32>
    %160 = arith.addf %155, %159 : vector<8x52xf32>
    %c0_79 = arith.constant 0 : index
    %c15_80 = arith.constant 15 : index
    %c0_81 = arith.constant 0 : index
    %161 = vector.load %arg3[%c0_79, %c15_80, %c0_81] : memref<1x126x52xf32, #tpu.memory_space<vmem>>, vector<1x1x52xf32>
    %162 = vector.shape_cast %161 : vector<1x1x52xf32> to vector<1x52xf32>
    %163 = vector.broadcast %162 : vector<1x52xf32> to vector<8x52xf32>
    %164 = arith.mulf %18, %163 : vector<8x52xf32>
    %165 = arith.addf %160, %164 : vector<8x52xf32>
    %c0_82 = arith.constant 0 : index
    %c20_83 = arith.constant 20 : index
    %c0_84 = arith.constant 0 : index
    %166 = vector.load %arg3[%c0_82, %c20_83, %c0_84] : memref<1x126x52xf32, #tpu.memory_space<vmem>>, vector<1x1x52xf32>
    %167 = vector.shape_cast %166 : vector<1x1x52xf32> to vector<1x52xf32>
    %168 = vector.broadcast %167 : vector<1x52xf32> to vector<8x52xf32>
    %169 = arith.mulf %13, %168 : vector<8x52xf32>
    %170 = arith.addf %165, %169 : vector<8x52xf32>
    %171 = vector.extract_strided_slice %170 {offsets = [0, 1], sizes = [8, 48], strides = [1, 1]} : vector<8x52xf32> to vector<8x48xf32>
    %c0_85 = arith.constant 0 : index
    %c1_86 = arith.constant 1 : index
    %c0_87 = arith.constant 0 : index
    %172 = vector.load %arg3[%c0_85, %c1_86, %c0_87] : memref<1x126x52xf32, #tpu.memory_space<vmem>>, vector<1x1x52xf32>
    %173 = vector.shape_cast %172 : vector<1x1x52xf32> to vector<1x52xf32>
    %174 = vector.broadcast %173 : vector<1x52xf32> to vector<8x52xf32>
    %175 = arith.mulf %8, %174 : vector<8x52xf32>
    %c0_88 = arith.constant 0 : index
    %c2_89 = arith.constant 2 : index
    %c0_90 = arith.constant 0 : index
    %176 = vector.load %arg3[%c0_88, %c2_89, %c0_90] : memref<1x126x52xf32, #tpu.memory_space<vmem>>, vector<1x1x52xf32>
    %177 = vector.shape_cast %176 : vector<1x1x52xf32> to vector<1x52xf32>
    %178 = vector.broadcast %177 : vector<1x52xf32> to vector<8x52xf32>
    %179 = arith.mulf %11, %178 : vector<8x52xf32>
    %180 = arith.addf %175, %179 : vector<8x52xf32>
    %c0_91 = arith.constant 0 : index
    %c6_92 = arith.constant 6 : index
    %c0_93 = arith.constant 0 : index
    %181 = vector.load %arg3[%c0_91, %c6_92, %c0_93] : memref<1x126x52xf32, #tpu.memory_space<vmem>>, vector<1x1x52xf32>
    %182 = vector.shape_cast %181 : vector<1x1x52xf32> to vector<1x52xf32>
    %183 = vector.broadcast %182 : vector<1x52xf32> to vector<8x52xf32>
    %184 = arith.mulf %14, %183 : vector<8x52xf32>
    %185 = arith.addf %180, %184 : vector<8x52xf32>
    %c0_94 = arith.constant 0 : index
    %c7_95 = arith.constant 7 : index
    %c0_96 = arith.constant 0 : index
    %186 = vector.load %arg3[%c0_94, %c7_95, %c0_96] : memref<1x126x52xf32, #tpu.memory_space<vmem>>, vector<1x1x52xf32>
    %187 = vector.shape_cast %186 : vector<1x1x52xf32> to vector<1x52xf32>
    %188 = vector.broadcast %187 : vector<1x52xf32> to vector<8x52xf32>
    %189 = arith.mulf %17, %188 : vector<8x52xf32>
    %190 = arith.addf %185, %189 : vector<8x52xf32>
    %c0_97 = arith.constant 0 : index
    %c11_98 = arith.constant 11 : index
    %c0_99 = arith.constant 0 : index
    %191 = vector.load %arg3[%c0_97, %c11_98, %c0_99] : memref<1x126x52xf32, #tpu.memory_space<vmem>>, vector<1x1x52xf32>
    %192 = vector.shape_cast %191 : vector<1x1x52xf32> to vector<1x52xf32>
    %193 = vector.broadcast %192 : vector<1x52xf32> to vector<8x52xf32>
    %194 = arith.mulf %9, %193 : vector<8x52xf32>
    %195 = arith.addf %190, %194 : vector<8x52xf32>
    %c0_100 = arith.constant 0 : index
    %c12_101 = arith.constant 12 : index
    %c0_102 = arith.constant 0 : index
    %196 = vector.load %arg3[%c0_100, %c12_101, %c0_102] : memref<1x126x52xf32, #tpu.memory_space<vmem>>, vector<1x1x52xf32>
    %197 = vector.shape_cast %196 : vector<1x1x52xf32> to vector<1x52xf32>
    %198 = vector.broadcast %197 : vector<1x52xf32> to vector<8x52xf32>
    %199 = arith.mulf %12, %198 : vector<8x52xf32>
    %200 = arith.addf %195, %199 : vector<8x52xf32>
    %c0_103 = arith.constant 0 : index
    %c16_104 = arith.constant 16 : index
    %c0_105 = arith.constant 0 : index
    %201 = vector.load %arg3[%c0_103, %c16_104, %c0_105] : memref<1x126x52xf32, #tpu.memory_space<vmem>>, vector<1x1x52xf32>
    %202 = vector.shape_cast %201 : vector<1x1x52xf32> to vector<1x52xf32>
    %203 = vector.broadcast %202 : vector<1x52xf32> to vector<8x52xf32>
    %204 = arith.mulf %15, %203 : vector<8x52xf32>
    %205 = arith.addf %200, %204 : vector<8x52xf32>
    %c0_106 = arith.constant 0 : index
    %c17_107 = arith.constant 17 : index
    %c0_108 = arith.constant 0 : index
    %206 = vector.load %arg3[%c0_106, %c17_107, %c0_108] : memref<1x126x52xf32, #tpu.memory_space<vmem>>, vector<1x1x52xf32>
    %207 = vector.shape_cast %206 : vector<1x1x52xf32> to vector<1x52xf32>
    %208 = vector.broadcast %207 : vector<1x52xf32> to vector<8x52xf32>
    %209 = arith.mulf %18, %208 : vector<8x52xf32>
    %210 = arith.addf %205, %209 : vector<8x52xf32>
    %c0_109 = arith.constant 0 : index
    %c21_110 = arith.constant 21 : index
    %c0_111 = arith.constant 0 : index
    %211 = vector.load %arg3[%c0_109, %c21_110, %c0_111] : memref<1x126x52xf32, #tpu.memory_space<vmem>>, vector<1x1x52xf32>
    %212 = vector.shape_cast %211 : vector<1x1x52xf32> to vector<1x52xf32>
    %213 = vector.broadcast %212 : vector<1x52xf32> to vector<8x52xf32>
    %214 = arith.mulf %10, %213 : vector<8x52xf32>
    %215 = arith.addf %210, %214 : vector<8x52xf32>
    %c0_112 = arith.constant 0 : index
    %c22_113 = arith.constant 22 : index
    %c0_114 = arith.constant 0 : index
    %216 = vector.load %arg3[%c0_112, %c22_113, %c0_114] : memref<1x126x52xf32, #tpu.memory_space<vmem>>, vector<1x1x52xf32>
    %217 = vector.shape_cast %216 : vector<1x1x52xf32> to vector<1x52xf32>
    %218 = vector.broadcast %217 : vector<1x52xf32> to vector<8x52xf32>
    %219 = arith.mulf %13, %218 : vector<8x52xf32>
    %220 = arith.addf %215, %219 : vector<8x52xf32>
    %221 = vector.extract_strided_slice %220 {offsets = [0, 2], sizes = [8, 48], strides = [1, 1]} : vector<8x52xf32> to vector<8x48xf32>
    %222 = arith.addf %171, %221 : vector<8x48xf32>
    %c0_115 = arith.constant 0 : index
    %c3_116 = arith.constant 3 : index
    %c0_117 = arith.constant 0 : index
    %223 = vector.load %arg3[%c0_115, %c3_116, %c0_117] : memref<1x126x52xf32, #tpu.memory_space<vmem>>, vector<1x1x52xf32>
    %224 = vector.shape_cast %223 : vector<1x1x52xf32> to vector<1x52xf32>
    %225 = vector.broadcast %224 : vector<1x52xf32> to vector<8x52xf32>
    %226 = arith.mulf %8, %225 : vector<8x52xf32>
    %c0_118 = arith.constant 0 : index
    %c4_119 = arith.constant 4 : index
    %c0_120 = arith.constant 0 : index
    %227 = vector.load %arg3[%c0_118, %c4_119, %c0_120] : memref<1x126x52xf32, #tpu.memory_space<vmem>>, vector<1x1x52xf32>
    %228 = vector.shape_cast %227 : vector<1x1x52xf32> to vector<1x52xf32>
    %229 = vector.broadcast %228 : vector<1x52xf32> to vector<8x52xf32>
    %230 = arith.mulf %11, %229 : vector<8x52xf32>
    %231 = arith.addf %226, %230 : vector<8x52xf32>
    %c0_121 = arith.constant 0 : index
    %c8_122 = arith.constant 8 : index
    %c0_123 = arith.constant 0 : index
    %232 = vector.load %arg3[%c0_121, %c8_122, %c0_123] : memref<1x126x52xf32, #tpu.memory_space<vmem>>, vector<1x1x52xf32>
    %233 = vector.shape_cast %232 : vector<1x1x52xf32> to vector<1x52xf32>
    %234 = vector.broadcast %233 : vector<1x52xf32> to vector<8x52xf32>
    %235 = arith.mulf %14, %234 : vector<8x52xf32>
    %236 = arith.addf %231, %235 : vector<8x52xf32>
    %c0_124 = arith.constant 0 : index
    %c9_125 = arith.constant 9 : index
    %c0_126 = arith.constant 0 : index
    %237 = vector.load %arg3[%c0_124, %c9_125, %c0_126] : memref<1x126x52xf32, #tpu.memory_space<vmem>>, vector<1x1x52xf32>
    %238 = vector.shape_cast %237 : vector<1x1x52xf32> to vector<1x52xf32>
    %239 = vector.broadcast %238 : vector<1x52xf32> to vector<8x52xf32>
    %240 = arith.mulf %17, %239 : vector<8x52xf32>
    %241 = arith.addf %236, %240 : vector<8x52xf32>
    %c0_127 = arith.constant 0 : index
    %c13_128 = arith.constant 13 : index
    %c0_129 = arith.constant 0 : index
    %242 = vector.load %arg3[%c0_127, %c13_128, %c0_129] : memref<1x126x52xf32, #tpu.memory_space<vmem>>, vector<1x1x52xf32>
    %243 = vector.shape_cast %242 : vector<1x1x52xf32> to vector<1x52xf32>
    %244 = vector.broadcast %243 : vector<1x52xf32> to vector<8x52xf32>
    %245 = arith.mulf %9, %244 : vector<8x52xf32>
    %246 = arith.addf %241, %245 : vector<8x52xf32>
    %c0_130 = arith.constant 0 : index
    %c14_131 = arith.constant 14 : index
    %c0_132 = arith.constant 0 : index
    %247 = vector.load %arg3[%c0_130, %c14_131, %c0_132] : memref<1x126x52xf32, #tpu.memory_space<vmem>>, vector<1x1x52xf32>
    %248 = vector.shape_cast %247 : vector<1x1x52xf32> to vector<1x52xf32>
    %249 = vector.broadcast %248 : vector<1x52xf32> to vector<8x52xf32>
    %250 = arith.mulf %12, %249 : vector<8x52xf32>
    %251 = arith.addf %246, %250 : vector<8x52xf32>
    %c0_133 = arith.constant 0 : index
    %c18_134 = arith.constant 18 : index
    %c0_135 = arith.constant 0 : index
    %252 = vector.load %arg3[%c0_133, %c18_134, %c0_135] : memref<1x126x52xf32, #tpu.memory_space<vmem>>, vector<1x1x52xf32>
    %253 = vector.shape_cast %252 : vector<1x1x52xf32> to vector<1x52xf32>
    %254 = vector.broadcast %253 : vector<1x52xf32> to vector<8x52xf32>
    %255 = arith.mulf %15, %254 : vector<8x52xf32>
    %256 = arith.addf %251, %255 : vector<8x52xf32>
    %c0_136 = arith.constant 0 : index
    %c19_137 = arith.constant 19 : index
    %c0_138 = arith.constant 0 : index
    %257 = vector.load %arg3[%c0_136, %c19_137, %c0_138] : memref<1x126x52xf32, #tpu.memory_space<vmem>>, vector<1x1x52xf32>
    %258 = vector.shape_cast %257 : vector<1x1x52xf32> to vector<1x52xf32>
    %259 = vector.broadcast %258 : vector<1x52xf32> to vector<8x52xf32>
    %260 = arith.mulf %18, %259 : vector<8x52xf32>
    %261 = arith.addf %256, %260 : vector<8x52xf32>
    %c0_139 = arith.constant 0 : index
    %c23_140 = arith.constant 23 : index
    %c0_141 = arith.constant 0 : index
    %262 = vector.load %arg3[%c0_139, %c23_140, %c0_141] : memref<1x126x52xf32, #tpu.memory_space<vmem>>, vector<1x1x52xf32>
    %263 = vector.shape_cast %262 : vector<1x1x52xf32> to vector<1x52xf32>
    %264 = vector.broadcast %263 : vector<1x52xf32> to vector<8x52xf32>
    %265 = arith.mulf %10, %264 : vector<8x52xf32>
    %266 = arith.addf %261, %265 : vector<8x52xf32>
    %c0_142 = arith.constant 0 : index
    %c24_143 = arith.constant 24 : index
    %c0_144 = arith.constant 0 : index
    %267 = vector.load %arg3[%c0_142, %c24_143, %c0_144] : memref<1x126x52xf32, #tpu.memory_space<vmem>>, vector<1x1x52xf32>
    %268 = vector.shape_cast %267 : vector<1x1x52xf32> to vector<1x52xf32>
    %269 = vector.broadcast %268 : vector<1x52xf32> to vector<8x52xf32>
    %270 = arith.mulf %13, %269 : vector<8x52xf32>
    %271 = arith.addf %266, %270 : vector<8x52xf32>
    %272 = vector.extract_strided_slice %271 {offsets = [0, 3], sizes = [8, 48], strides = [1, 1]} : vector<8x52xf32> to vector<8x48xf32>
    %273 = arith.addf %222, %272 : vector<8x48xf32>
    %c0_145 = arith.constant 0 : index
    %c0_146 = arith.constant 0 : index
    %c0_147 = arith.constant 0 : index
    %274 = vector.load %arg3[%c0_145, %c0_146, %c0_147] : memref<1x126x52xf32, #tpu.memory_space<vmem>>, vector<1x1x52xf32>
    %275 = vector.shape_cast %274 : vector<1x1x52xf32> to vector<1x52xf32>
    %276 = vector.broadcast %275 : vector<1x52xf32> to vector<8x52xf32>
    %277 = arith.mulf %14, %276 : vector<8x52xf32>
    %c0_148 = arith.constant 0 : index
    %c1_149 = arith.constant 1 : index
    %c0_150 = arith.constant 0 : index
    %278 = vector.load %arg3[%c0_148, %c1_149, %c0_150] : memref<1x126x52xf32, #tpu.memory_space<vmem>>, vector<1x1x52xf32>
    %279 = vector.shape_cast %278 : vector<1x1x52xf32> to vector<1x52xf32>
    %280 = vector.broadcast %279 : vector<1x52xf32> to vector<8x52xf32>
    %281 = arith.mulf %17, %280 : vector<8x52xf32>
    %282 = arith.addf %277, %281 : vector<8x52xf32>
    %c0_151 = arith.constant 0 : index
    %c5_152 = arith.constant 5 : index
    %c0_153 = arith.constant 0 : index
    %283 = vector.load %arg3[%c0_151, %c5_152, %c0_153] : memref<1x126x52xf32, #tpu.memory_space<vmem>>, vector<1x1x52xf32>
    %284 = vector.shape_cast %283 : vector<1x1x52xf32> to vector<1x52xf32>
    %285 = vector.broadcast %284 : vector<1x52xf32> to vector<8x52xf32>
    %286 = arith.mulf %9, %285 : vector<8x52xf32>
    %287 = arith.addf %282, %286 : vector<8x52xf32>
    %c0_154 = arith.constant 0 : index
    %c6_155 = arith.constant 6 : index
    %c0_156 = arith.constant 0 : index
    %288 = vector.load %arg3[%c0_154, %c6_155, %c0_156] : memref<1x126x52xf32, #tpu.memory_space<vmem>>, vector<1x1x52xf32>
    %289 = vector.shape_cast %288 : vector<1x1x52xf32> to vector<1x52xf32>
    %290 = vector.broadcast %289 : vector<1x52xf32> to vector<8x52xf32>
    %291 = arith.mulf %12, %290 : vector<8x52xf32>
    %292 = arith.addf %287, %291 : vector<8x52xf32>
    %c0_157 = arith.constant 0 : index
    %c10_158 = arith.constant 10 : index
    %c0_159 = arith.constant 0 : index
    %293 = vector.load %arg3[%c0_157, %c10_158, %c0_159] : memref<1x126x52xf32, #tpu.memory_space<vmem>>, vector<1x1x52xf32>
    %294 = vector.shape_cast %293 : vector<1x1x52xf32> to vector<1x52xf32>
    %295 = vector.broadcast %294 : vector<1x52xf32> to vector<8x52xf32>
    %296 = arith.mulf %15, %295 : vector<8x52xf32>
    %297 = arith.addf %292, %296 : vector<8x52xf32>
    %c0_160 = arith.constant 0 : index
    %c11_161 = arith.constant 11 : index
    %c0_162 = arith.constant 0 : index
    %298 = vector.load %arg3[%c0_160, %c11_161, %c0_162] : memref<1x126x52xf32, #tpu.memory_space<vmem>>, vector<1x1x52xf32>
    %299 = vector.shape_cast %298 : vector<1x1x52xf32> to vector<1x52xf32>
    %300 = vector.broadcast %299 : vector<1x52xf32> to vector<8x52xf32>
    %301 = arith.mulf %18, %300 : vector<8x52xf32>
    %302 = arith.addf %297, %301 : vector<8x52xf32>
    %c0_163 = arith.constant 0 : index
    %c15_164 = arith.constant 15 : index
    %c0_165 = arith.constant 0 : index
    %303 = vector.load %arg3[%c0_163, %c15_164, %c0_165] : memref<1x126x52xf32, #tpu.memory_space<vmem>>, vector<1x1x52xf32>
    %304 = vector.shape_cast %303 : vector<1x1x52xf32> to vector<1x52xf32>
    %305 = vector.broadcast %304 : vector<1x52xf32> to vector<8x52xf32>
    %306 = arith.mulf %10, %305 : vector<8x52xf32>
    %307 = arith.addf %302, %306 : vector<8x52xf32>
    %c0_166 = arith.constant 0 : index
    %c16_167 = arith.constant 16 : index
    %c0_168 = arith.constant 0 : index
    %308 = vector.load %arg3[%c0_166, %c16_167, %c0_168] : memref<1x126x52xf32, #tpu.memory_space<vmem>>, vector<1x1x52xf32>
    %309 = vector.shape_cast %308 : vector<1x1x52xf32> to vector<1x52xf32>
    %310 = vector.broadcast %309 : vector<1x52xf32> to vector<8x52xf32>
    %311 = arith.mulf %13, %310 : vector<8x52xf32>
    %312 = arith.addf %307, %311 : vector<8x52xf32>
    %c0_169 = arith.constant 0 : index
    %c20_170 = arith.constant 20 : index
    %c0_171 = arith.constant 0 : index
    %313 = vector.load %arg3[%c0_169, %c20_170, %c0_171] : memref<1x126x52xf32, #tpu.memory_space<vmem>>, vector<1x1x52xf32>
    %314 = vector.shape_cast %313 : vector<1x1x52xf32> to vector<1x52xf32>
    %315 = vector.broadcast %314 : vector<1x52xf32> to vector<8x52xf32>
    %316 = arith.mulf %16, %315 : vector<8x52xf32>
    %317 = arith.addf %312, %316 : vector<8x52xf32>
    %c0_172 = arith.constant 0 : index
    %c21_173 = arith.constant 21 : index
    %c0_174 = arith.constant 0 : index
    %318 = vector.load %arg3[%c0_172, %c21_173, %c0_174] : memref<1x126x52xf32, #tpu.memory_space<vmem>>, vector<1x1x52xf32>
    %319 = vector.shape_cast %318 : vector<1x1x52xf32> to vector<1x52xf32>
    %320 = vector.broadcast %319 : vector<1x52xf32> to vector<8x52xf32>
    %321 = arith.mulf %19, %320 : vector<8x52xf32>
    %322 = arith.addf %317, %321 : vector<8x52xf32>
    %323 = vector.extract_strided_slice %322 {offsets = [0, 1], sizes = [8, 48], strides = [1, 1]} : vector<8x52xf32> to vector<8x48xf32>
    %c0_175 = arith.constant 0 : index
    %c2_176 = arith.constant 2 : index
    %c0_177 = arith.constant 0 : index
    %324 = vector.load %arg3[%c0_175, %c2_176, %c0_177] : memref<1x126x52xf32, #tpu.memory_space<vmem>>, vector<1x1x52xf32>
    %325 = vector.shape_cast %324 : vector<1x1x52xf32> to vector<1x52xf32>
    %326 = vector.broadcast %325 : vector<1x52xf32> to vector<8x52xf32>
    %327 = arith.mulf %14, %326 : vector<8x52xf32>
    %c0_178 = arith.constant 0 : index
    %c3_179 = arith.constant 3 : index
    %c0_180 = arith.constant 0 : index
    %328 = vector.load %arg3[%c0_178, %c3_179, %c0_180] : memref<1x126x52xf32, #tpu.memory_space<vmem>>, vector<1x1x52xf32>
    %329 = vector.shape_cast %328 : vector<1x1x52xf32> to vector<1x52xf32>
    %330 = vector.broadcast %329 : vector<1x52xf32> to vector<8x52xf32>
    %331 = arith.mulf %17, %330 : vector<8x52xf32>
    %332 = arith.addf %327, %331 : vector<8x52xf32>
    %c0_181 = arith.constant 0 : index
    %c7_182 = arith.constant 7 : index
    %c0_183 = arith.constant 0 : index
    %333 = vector.load %arg3[%c0_181, %c7_182, %c0_183] : memref<1x126x52xf32, #tpu.memory_space<vmem>>, vector<1x1x52xf32>
    %334 = vector.shape_cast %333 : vector<1x1x52xf32> to vector<1x52xf32>
    %335 = vector.broadcast %334 : vector<1x52xf32> to vector<8x52xf32>
    %336 = arith.mulf %9, %335 : vector<8x52xf32>
    %337 = arith.addf %332, %336 : vector<8x52xf32>
    %c0_184 = arith.constant 0 : index
    %c8_185 = arith.constant 8 : index
    %c0_186 = arith.constant 0 : index
    %338 = vector.load %arg3[%c0_184, %c8_185, %c0_186] : memref<1x126x52xf32, #tpu.memory_space<vmem>>, vector<1x1x52xf32>
    %339 = vector.shape_cast %338 : vector<1x1x52xf32> to vector<1x52xf32>
    %340 = vector.broadcast %339 : vector<1x52xf32> to vector<8x52xf32>
    %341 = arith.mulf %12, %340 : vector<8x52xf32>
    %342 = arith.addf %337, %341 : vector<8x52xf32>
    %c0_187 = arith.constant 0 : index
    %c12_188 = arith.constant 12 : index
    %c0_189 = arith.constant 0 : index
    %343 = vector.load %arg3[%c0_187, %c12_188, %c0_189] : memref<1x126x52xf32, #tpu.memory_space<vmem>>, vector<1x1x52xf32>
    %344 = vector.shape_cast %343 : vector<1x1x52xf32> to vector<1x52xf32>
    %345 = vector.broadcast %344 : vector<1x52xf32> to vector<8x52xf32>
    %346 = arith.mulf %15, %345 : vector<8x52xf32>
    %347 = arith.addf %342, %346 : vector<8x52xf32>
    %c0_190 = arith.constant 0 : index
    %c13_191 = arith.constant 13 : index
    %c0_192 = arith.constant 0 : index
    %348 = vector.load %arg3[%c0_190, %c13_191, %c0_192] : memref<1x126x52xf32, #tpu.memory_space<vmem>>, vector<1x1x52xf32>
    %349 = vector.shape_cast %348 : vector<1x1x52xf32> to vector<1x52xf32>
    %350 = vector.broadcast %349 : vector<1x52xf32> to vector<8x52xf32>
    %351 = arith.mulf %18, %350 : vector<8x52xf32>
    %352 = arith.addf %347, %351 : vector<8x52xf32>
    %c0_193 = arith.constant 0 : index
    %c17_194 = arith.constant 17 : index
    %c0_195 = arith.constant 0 : index
    %353 = vector.load %arg3[%c0_193, %c17_194, %c0_195] : memref<1x126x52xf32, #tpu.memory_space<vmem>>, vector<1x1x52xf32>
    %354 = vector.shape_cast %353 : vector<1x1x52xf32> to vector<1x52xf32>
    %355 = vector.broadcast %354 : vector<1x52xf32> to vector<8x52xf32>
    %356 = arith.mulf %10, %355 : vector<8x52xf32>
    %357 = arith.addf %352, %356 : vector<8x52xf32>
    %c0_196 = arith.constant 0 : index
    %c18_197 = arith.constant 18 : index
    %c0_198 = arith.constant 0 : index
    %358 = vector.load %arg3[%c0_196, %c18_197, %c0_198] : memref<1x126x52xf32, #tpu.memory_space<vmem>>, vector<1x1x52xf32>
    %359 = vector.shape_cast %358 : vector<1x1x52xf32> to vector<1x52xf32>
    %360 = vector.broadcast %359 : vector<1x52xf32> to vector<8x52xf32>
    %361 = arith.mulf %13, %360 : vector<8x52xf32>
    %362 = arith.addf %357, %361 : vector<8x52xf32>
    %c0_199 = arith.constant 0 : index
    %c22_200 = arith.constant 22 : index
    %c0_201 = arith.constant 0 : index
    %363 = vector.load %arg3[%c0_199, %c22_200, %c0_201] : memref<1x126x52xf32, #tpu.memory_space<vmem>>, vector<1x1x52xf32>
    %364 = vector.shape_cast %363 : vector<1x1x52xf32> to vector<1x52xf32>
    %365 = vector.broadcast %364 : vector<1x52xf32> to vector<8x52xf32>
    %366 = arith.mulf %16, %365 : vector<8x52xf32>
    %367 = arith.addf %362, %366 : vector<8x52xf32>
    %c0_202 = arith.constant 0 : index
    %c23_203 = arith.constant 23 : index
    %c0_204 = arith.constant 0 : index
    %368 = vector.load %arg3[%c0_202, %c23_203, %c0_204] : memref<1x126x52xf32, #tpu.memory_space<vmem>>, vector<1x1x52xf32>
    %369 = vector.shape_cast %368 : vector<1x1x52xf32> to vector<1x52xf32>
    %370 = vector.broadcast %369 : vector<1x52xf32> to vector<8x52xf32>
    %371 = arith.mulf %19, %370 : vector<8x52xf32>
    %372 = arith.addf %367, %371 : vector<8x52xf32>
    %373 = vector.extract_strided_slice %372 {offsets = [0, 2], sizes = [8, 48], strides = [1, 1]} : vector<8x52xf32> to vector<8x48xf32>
    %374 = arith.addf %323, %373 : vector<8x48xf32>
    %c0_205 = arith.constant 0 : index
    %c4_206 = arith.constant 4 : index
    %c0_207 = arith.constant 0 : index
    %375 = vector.load %arg3[%c0_205, %c4_206, %c0_207] : memref<1x126x52xf32, #tpu.memory_space<vmem>>, vector<1x1x52xf32>
    %376 = vector.shape_cast %375 : vector<1x1x52xf32> to vector<1x52xf32>
    %377 = vector.broadcast %376 : vector<1x52xf32> to vector<8x52xf32>
    %378 = arith.mulf %14, %377 : vector<8x52xf32>
    %c0_208 = arith.constant 0 : index
    %c9_209 = arith.constant 9 : index
    %c0_210 = arith.constant 0 : index
    %379 = vector.load %arg3[%c0_208, %c9_209, %c0_210] : memref<1x126x52xf32, #tpu.memory_space<vmem>>, vector<1x1x52xf32>
    %380 = vector.shape_cast %379 : vector<1x1x52xf32> to vector<1x52xf32>
    %381 = vector.broadcast %380 : vector<1x52xf32> to vector<8x52xf32>
    %382 = arith.mulf %9, %381 : vector<8x52xf32>
    %383 = arith.addf %378, %382 : vector<8x52xf32>
    %c0_211 = arith.constant 0 : index
    %c14_212 = arith.constant 14 : index
    %c0_213 = arith.constant 0 : index
    %384 = vector.load %arg3[%c0_211, %c14_212, %c0_213] : memref<1x126x52xf32, #tpu.memory_space<vmem>>, vector<1x1x52xf32>
    %385 = vector.shape_cast %384 : vector<1x1x52xf32> to vector<1x52xf32>
    %386 = vector.broadcast %385 : vector<1x52xf32> to vector<8x52xf32>
    %387 = arith.mulf %15, %386 : vector<8x52xf32>
    %388 = arith.addf %383, %387 : vector<8x52xf32>
    %c0_214 = arith.constant 0 : index
    %c19_215 = arith.constant 19 : index
    %c0_216 = arith.constant 0 : index
    %389 = vector.load %arg3[%c0_214, %c19_215, %c0_216] : memref<1x126x52xf32, #tpu.memory_space<vmem>>, vector<1x1x52xf32>
    %390 = vector.shape_cast %389 : vector<1x1x52xf32> to vector<1x52xf32>
    %391 = vector.broadcast %390 : vector<1x52xf32> to vector<8x52xf32>
    %392 = arith.mulf %10, %391 : vector<8x52xf32>
    %393 = arith.addf %388, %392 : vector<8x52xf32>
    %c0_217 = arith.constant 0 : index
    %c24_218 = arith.constant 24 : index
    %c0_219 = arith.constant 0 : index
    %394 = vector.load %arg3[%c0_217, %c24_218, %c0_219] : memref<1x126x52xf32, #tpu.memory_space<vmem>>, vector<1x1x52xf32>
    %395 = vector.shape_cast %394 : vector<1x1x52xf32> to vector<1x52xf32>
    %396 = vector.broadcast %395 : vector<1x52xf32> to vector<8x52xf32>
    %397 = arith.mulf %16, %396 : vector<8x52xf32>
    %398 = arith.addf %393, %397 : vector<8x52xf32>
    %399 = vector.extract_strided_slice %398 {offsets = [0, 3], sizes = [8, 48], strides = [1, 1]} : vector<8x52xf32> to vector<8x48xf32>
    %400 = arith.addf %374, %399 : vector<8x48xf32>
    %c0_220 = arith.constant 0 : index
    %c0_221 = arith.constant 0 : index
    %c0_222 = arith.constant 0 : index
    %401 = vector.load %arg3[%c0_220, %c0_221, %c0_222] : memref<1x126x52xf32, #tpu.memory_space<vmem>>, vector<1x1x52xf32>
    %402 = vector.shape_cast %401 : vector<1x1x52xf32> to vector<1x52xf32>
    %403 = vector.broadcast %402 : vector<1x52xf32> to vector<8x52xf32>
    %404 = arith.mulf %17, %403 : vector<8x52xf32>
    %c0_223 = arith.constant 0 : index
    %c5_224 = arith.constant 5 : index
    %c0_225 = arith.constant 0 : index
    %405 = vector.load %arg3[%c0_223, %c5_224, %c0_225] : memref<1x126x52xf32, #tpu.memory_space<vmem>>, vector<1x1x52xf32>
    %406 = vector.shape_cast %405 : vector<1x1x52xf32> to vector<1x52xf32>
    %407 = vector.broadcast %406 : vector<1x52xf32> to vector<8x52xf32>
    %408 = arith.mulf %12, %407 : vector<8x52xf32>
    %409 = arith.addf %404, %408 : vector<8x52xf32>
    %c0_226 = arith.constant 0 : index
    %c10_227 = arith.constant 10 : index
    %c0_228 = arith.constant 0 : index
    %410 = vector.load %arg3[%c0_226, %c10_227, %c0_228] : memref<1x126x52xf32, #tpu.memory_space<vmem>>, vector<1x1x52xf32>
    %411 = vector.shape_cast %410 : vector<1x1x52xf32> to vector<1x52xf32>
    %412 = vector.broadcast %411 : vector<1x52xf32> to vector<8x52xf32>
    %413 = arith.mulf %18, %412 : vector<8x52xf32>
    %414 = arith.addf %409, %413 : vector<8x52xf32>
    %c0_229 = arith.constant 0 : index
    %c15_230 = arith.constant 15 : index
    %c0_231 = arith.constant 0 : index
    %415 = vector.load %arg3[%c0_229, %c15_230, %c0_231] : memref<1x126x52xf32, #tpu.memory_space<vmem>>, vector<1x1x52xf32>
    %416 = vector.shape_cast %415 : vector<1x1x52xf32> to vector<1x52xf32>
    %417 = vector.broadcast %416 : vector<1x52xf32> to vector<8x52xf32>
    %418 = arith.mulf %13, %417 : vector<8x52xf32>
    %419 = arith.addf %414, %418 : vector<8x52xf32>
    %c0_232 = arith.constant 0 : index
    %c20_233 = arith.constant 20 : index
    %c0_234 = arith.constant 0 : index
    %420 = vector.load %arg3[%c0_232, %c20_233, %c0_234] : memref<1x126x52xf32, #tpu.memory_space<vmem>>, vector<1x1x52xf32>
    %421 = vector.shape_cast %420 : vector<1x1x52xf32> to vector<1x52xf32>
    %422 = vector.broadcast %421 : vector<1x52xf32> to vector<8x52xf32>
    %423 = arith.mulf %19, %422 : vector<8x52xf32>
    %424 = arith.addf %419, %423 : vector<8x52xf32>
    %425 = vector.extract_strided_slice %424 {offsets = [0, 1], sizes = [8, 48], strides = [1, 1]} : vector<8x52xf32> to vector<8x48xf32>
    %c0_235 = arith.constant 0 : index
    %c1_236 = arith.constant 1 : index
    %c0_237 = arith.constant 0 : index
    %426 = vector.load %arg3[%c0_235, %c1_236, %c0_237] : memref<1x126x52xf32, #tpu.memory_space<vmem>>, vector<1x1x52xf32>
    %427 = vector.shape_cast %426 : vector<1x1x52xf32> to vector<1x52xf32>
    %428 = vector.broadcast %427 : vector<1x52xf32> to vector<8x52xf32>
    %429 = arith.mulf %14, %428 : vector<8x52xf32>
    %c0_238 = arith.constant 0 : index
    %c2_239 = arith.constant 2 : index
    %c0_240 = arith.constant 0 : index
    %430 = vector.load %arg3[%c0_238, %c2_239, %c0_240] : memref<1x126x52xf32, #tpu.memory_space<vmem>>, vector<1x1x52xf32>
    %431 = vector.shape_cast %430 : vector<1x1x52xf32> to vector<1x52xf32>
    %432 = vector.broadcast %431 : vector<1x52xf32> to vector<8x52xf32>
    %433 = arith.mulf %17, %432 : vector<8x52xf32>
    %434 = arith.addf %429, %433 : vector<8x52xf32>
    %c0_241 = arith.constant 0 : index
    %c6_242 = arith.constant 6 : index
    %c0_243 = arith.constant 0 : index
    %435 = vector.load %arg3[%c0_241, %c6_242, %c0_243] : memref<1x126x52xf32, #tpu.memory_space<vmem>>, vector<1x1x52xf32>
    %436 = vector.shape_cast %435 : vector<1x1x52xf32> to vector<1x52xf32>
    %437 = vector.broadcast %436 : vector<1x52xf32> to vector<8x52xf32>
    %438 = arith.mulf %9, %437 : vector<8x52xf32>
    %439 = arith.addf %434, %438 : vector<8x52xf32>
    %c0_244 = arith.constant 0 : index
    %c7_245 = arith.constant 7 : index
    %c0_246 = arith.constant 0 : index
    %440 = vector.load %arg3[%c0_244, %c7_245, %c0_246] : memref<1x126x52xf32, #tpu.memory_space<vmem>>, vector<1x1x52xf32>
    %441 = vector.shape_cast %440 : vector<1x1x52xf32> to vector<1x52xf32>
    %442 = vector.broadcast %441 : vector<1x52xf32> to vector<8x52xf32>
    %443 = arith.mulf %12, %442 : vector<8x52xf32>
    %444 = arith.addf %439, %443 : vector<8x52xf32>
    %c0_247 = arith.constant 0 : index
    %c11_248 = arith.constant 11 : index
    %c0_249 = arith.constant 0 : index
    %445 = vector.load %arg3[%c0_247, %c11_248, %c0_249] : memref<1x126x52xf32, #tpu.memory_space<vmem>>, vector<1x1x52xf32>
    %446 = vector.shape_cast %445 : vector<1x1x52xf32> to vector<1x52xf32>
    %447 = vector.broadcast %446 : vector<1x52xf32> to vector<8x52xf32>
    %448 = arith.mulf %15, %447 : vector<8x52xf32>
    %449 = arith.addf %444, %448 : vector<8x52xf32>
    %c0_250 = arith.constant 0 : index
    %c12_251 = arith.constant 12 : index
    %c0_252 = arith.constant 0 : index
    %450 = vector.load %arg3[%c0_250, %c12_251, %c0_252] : memref<1x126x52xf32, #tpu.memory_space<vmem>>, vector<1x1x52xf32>
    %451 = vector.shape_cast %450 : vector<1x1x52xf32> to vector<1x52xf32>
    %452 = vector.broadcast %451 : vector<1x52xf32> to vector<8x52xf32>
    %453 = arith.mulf %18, %452 : vector<8x52xf32>
    %454 = arith.addf %449, %453 : vector<8x52xf32>
    %c0_253 = arith.constant 0 : index
    %c16_254 = arith.constant 16 : index
    %c0_255 = arith.constant 0 : index
    %455 = vector.load %arg3[%c0_253, %c16_254, %c0_255] : memref<1x126x52xf32, #tpu.memory_space<vmem>>, vector<1x1x52xf32>
    %456 = vector.shape_cast %455 : vector<1x1x52xf32> to vector<1x52xf32>
    %457 = vector.broadcast %456 : vector<1x52xf32> to vector<8x52xf32>
    %458 = arith.mulf %10, %457 : vector<8x52xf32>
    %459 = arith.addf %454, %458 : vector<8x52xf32>
    %c0_256 = arith.constant 0 : index
    %c17_257 = arith.constant 17 : index
    %c0_258 = arith.constant 0 : index
    %460 = vector.load %arg3[%c0_256, %c17_257, %c0_258] : memref<1x126x52xf32, #tpu.memory_space<vmem>>, vector<1x1x52xf32>
    %461 = vector.shape_cast %460 : vector<1x1x52xf32> to vector<1x52xf32>
    %462 = vector.broadcast %461 : vector<1x52xf32> to vector<8x52xf32>
    %463 = arith.mulf %13, %462 : vector<8x52xf32>
    %464 = arith.addf %459, %463 : vector<8x52xf32>
    %c0_259 = arith.constant 0 : index
    %c21_260 = arith.constant 21 : index
    %c0_261 = arith.constant 0 : index
    %465 = vector.load %arg3[%c0_259, %c21_260, %c0_261] : memref<1x126x52xf32, #tpu.memory_space<vmem>>, vector<1x1x52xf32>
    %466 = vector.shape_cast %465 : vector<1x1x52xf32> to vector<1x52xf32>
    %467 = vector.broadcast %466 : vector<1x52xf32> to vector<8x52xf32>
    %468 = arith.mulf %16, %467 : vector<8x52xf32>
    %469 = arith.addf %464, %468 : vector<8x52xf32>
    %c0_262 = arith.constant 0 : index
    %c22_263 = arith.constant 22 : index
    %c0_264 = arith.constant 0 : index
    %470 = vector.load %arg3[%c0_262, %c22_263, %c0_264] : memref<1x126x52xf32, #tpu.memory_space<vmem>>, vector<1x1x52xf32>
    %471 = vector.shape_cast %470 : vector<1x1x52xf32> to vector<1x52xf32>
    %472 = vector.broadcast %471 : vector<1x52xf32> to vector<8x52xf32>
    %473 = arith.mulf %19, %472 : vector<8x52xf32>
    %474 = arith.addf %469, %473 : vector<8x52xf32>
    %475 = vector.extract_strided_slice %474 {offsets = [0, 2], sizes = [8, 48], strides = [1, 1]} : vector<8x52xf32> to vector<8x48xf32>
    %476 = arith.addf %425, %475 : vector<8x48xf32>
    %c0_265 = arith.constant 0 : index
    %c3_266 = arith.constant 3 : index
    %c0_267 = arith.constant 0 : index
    %477 = vector.load %arg3[%c0_265, %c3_266, %c0_267] : memref<1x126x52xf32, #tpu.memory_space<vmem>>, vector<1x1x52xf32>
    %478 = vector.shape_cast %477 : vector<1x1x52xf32> to vector<1x52xf32>
    %479 = vector.broadcast %478 : vector<1x52xf32> to vector<8x52xf32>
    %480 = arith.mulf %14, %479 : vector<8x52xf32>
    %c0_268 = arith.constant 0 : index
    %c4_269 = arith.constant 4 : index
    %c0_270 = arith.constant 0 : index
    %481 = vector.load %arg3[%c0_268, %c4_269, %c0_270] : memref<1x126x52xf32, #tpu.memory_space<vmem>>, vector<1x1x52xf32>
    %482 = vector.shape_cast %481 : vector<1x1x52xf32> to vector<1x52xf32>
    %483 = vector.broadcast %482 : vector<1x52xf32> to vector<8x52xf32>
    %484 = arith.mulf %17, %483 : vector<8x52xf32>
    %485 = arith.addf %480, %484 : vector<8x52xf32>
    %c0_271 = arith.constant 0 : index
    %c8_272 = arith.constant 8 : index
    %c0_273 = arith.constant 0 : index
    %486 = vector.load %arg3[%c0_271, %c8_272, %c0_273] : memref<1x126x52xf32, #tpu.memory_space<vmem>>, vector<1x1x52xf32>
    %487 = vector.shape_cast %486 : vector<1x1x52xf32> to vector<1x52xf32>
    %488 = vector.broadcast %487 : vector<1x52xf32> to vector<8x52xf32>
    %489 = arith.mulf %9, %488 : vector<8x52xf32>
    %490 = arith.addf %485, %489 : vector<8x52xf32>
    %c0_274 = arith.constant 0 : index
    %c9_275 = arith.constant 9 : index
    %c0_276 = arith.constant 0 : index
    %491 = vector.load %arg3[%c0_274, %c9_275, %c0_276] : memref<1x126x52xf32, #tpu.memory_space<vmem>>, vector<1x1x52xf32>
    %492 = vector.shape_cast %491 : vector<1x1x52xf32> to vector<1x52xf32>
    %493 = vector.broadcast %492 : vector<1x52xf32> to vector<8x52xf32>
    %494 = arith.mulf %12, %493 : vector<8x52xf32>
    %495 = arith.addf %490, %494 : vector<8x52xf32>
    %c0_277 = arith.constant 0 : index
    %c13_278 = arith.constant 13 : index
    %c0_279 = arith.constant 0 : index
    %496 = vector.load %arg3[%c0_277, %c13_278, %c0_279] : memref<1x126x52xf32, #tpu.memory_space<vmem>>, vector<1x1x52xf32>
    %497 = vector.shape_cast %496 : vector<1x1x52xf32> to vector<1x52xf32>
    %498 = vector.broadcast %497 : vector<1x52xf32> to vector<8x52xf32>
    %499 = arith.mulf %15, %498 : vector<8x52xf32>
    %500 = arith.addf %495, %499 : vector<8x52xf32>
    %c0_280 = arith.constant 0 : index
    %c14_281 = arith.constant 14 : index
    %c0_282 = arith.constant 0 : index
    %501 = vector.load %arg3[%c0_280, %c14_281, %c0_282] : memref<1x126x52xf32, #tpu.memory_space<vmem>>, vector<1x1x52xf32>
    %502 = vector.shape_cast %501 : vector<1x1x52xf32> to vector<1x52xf32>
    %503 = vector.broadcast %502 : vector<1x52xf32> to vector<8x52xf32>
    %504 = arith.mulf %18, %503 : vector<8x52xf32>
    %505 = arith.addf %500, %504 : vector<8x52xf32>
    %c0_283 = arith.constant 0 : index
    %c18_284 = arith.constant 18 : index
    %c0_285 = arith.constant 0 : index
    %506 = vector.load %arg3[%c0_283, %c18_284, %c0_285] : memref<1x126x52xf32, #tpu.memory_space<vmem>>, vector<1x1x52xf32>
    %507 = vector.shape_cast %506 : vector<1x1x52xf32> to vector<1x52xf32>
    %508 = vector.broadcast %507 : vector<1x52xf32> to vector<8x52xf32>
    %509 = arith.mulf %10, %508 : vector<8x52xf32>
    %510 = arith.addf %505, %509 : vector<8x52xf32>
    %c0_286 = arith.constant 0 : index
    %c19_287 = arith.constant 19 : index
    %c0_288 = arith.constant 0 : index
    %511 = vector.load %arg3[%c0_286, %c19_287, %c0_288] : memref<1x126x52xf32, #tpu.memory_space<vmem>>, vector<1x1x52xf32>
    %512 = vector.shape_cast %511 : vector<1x1x52xf32> to vector<1x52xf32>
    %513 = vector.broadcast %512 : vector<1x52xf32> to vector<8x52xf32>
    %514 = arith.mulf %13, %513 : vector<8x52xf32>
    %515 = arith.addf %510, %514 : vector<8x52xf32>
    %c0_289 = arith.constant 0 : index
    %c23_290 = arith.constant 23 : index
    %c0_291 = arith.constant 0 : index
    %516 = vector.load %arg3[%c0_289, %c23_290, %c0_291] : memref<1x126x52xf32, #tpu.memory_space<vmem>>, vector<1x1x52xf32>
    %517 = vector.shape_cast %516 : vector<1x1x52xf32> to vector<1x52xf32>
    %518 = vector.broadcast %517 : vector<1x52xf32> to vector<8x52xf32>
    %519 = arith.mulf %16, %518 : vector<8x52xf32>
    %520 = arith.addf %515, %519 : vector<8x52xf32>
    %c0_292 = arith.constant 0 : index
    %c24_293 = arith.constant 24 : index
    %c0_294 = arith.constant 0 : index
    %521 = vector.load %arg3[%c0_292, %c24_293, %c0_294] : memref<1x126x52xf32, #tpu.memory_space<vmem>>, vector<1x1x52xf32>
    %522 = vector.shape_cast %521 : vector<1x1x52xf32> to vector<1x52xf32>
    %523 = vector.broadcast %522 : vector<1x52xf32> to vector<8x52xf32>
    %524 = arith.mulf %19, %523 : vector<8x52xf32>
    %525 = arith.addf %520, %524 : vector<8x52xf32>
    %526 = vector.extract_strided_slice %525 {offsets = [0, 3], sizes = [8, 48], strides = [1, 1]} : vector<8x52xf32> to vector<8x48xf32>
    %527 = arith.addf %476, %526 : vector<8x48xf32>
    %528 = arith.addf %1, %5 : vector<12x52xf32>
    %529 = arith.subf %1, %5 : vector<12x52xf32>
    %530 = arith.addf %3, %7 : vector<12x52xf32>
    %531 = arith.subf %3, %7 : vector<12x52xf32>
    %532 = arith.addf %528, %530 : vector<12x52xf32>
    %533 = arith.addf %529, %531 : vector<12x52xf32>
    %534 = arith.subf %528, %530 : vector<12x52xf32>
    %535 = arith.subf %529, %531 : vector<12x52xf32>
    %536 = vector.extract_strided_slice %532 {offsets = [0, 0], sizes = [8, 52], strides = [1, 1]} : vector<12x52xf32> to vector<8x52xf32>
    %537 = vector.extract_strided_slice %532 {offsets = [1, 0], sizes = [8, 52], strides = [1, 1]} : vector<12x52xf32> to vector<8x52xf32>
    %538 = vector.extract_strided_slice %532 {offsets = [2, 0], sizes = [8, 52], strides = [1, 1]} : vector<12x52xf32> to vector<8x52xf32>
    %539 = vector.extract_strided_slice %532 {offsets = [3, 0], sizes = [8, 52], strides = [1, 1]} : vector<12x52xf32> to vector<8x52xf32>
    %540 = vector.extract_strided_slice %532 {offsets = [4, 0], sizes = [8, 52], strides = [1, 1]} : vector<12x52xf32> to vector<8x52xf32>
    %c0_295 = arith.constant 0 : index
    %c25 = arith.constant 25 : index
    %c0_296 = arith.constant 0 : index
    %541 = vector.load %arg3[%c0_295, %c25, %c0_296] : memref<1x126x52xf32, #tpu.memory_space<vmem>>, vector<1x1x52xf32>
    %542 = vector.shape_cast %541 : vector<1x1x52xf32> to vector<1x52xf32>
    %543 = vector.broadcast %542 : vector<1x52xf32> to vector<8x52xf32>
    %544 = arith.mulf %536, %543 : vector<8x52xf32>
    %c0_297 = arith.constant 0 : index
    %c30 = arith.constant 30 : index
    %c0_298 = arith.constant 0 : index
    %545 = vector.load %arg3[%c0_297, %c30, %c0_298] : memref<1x126x52xf32, #tpu.memory_space<vmem>>, vector<1x1x52xf32>
    %546 = vector.shape_cast %545 : vector<1x1x52xf32> to vector<1x52xf32>
    %547 = vector.broadcast %546 : vector<1x52xf32> to vector<8x52xf32>
    %548 = arith.mulf %537, %547 : vector<8x52xf32>
    %549 = arith.addf %544, %548 : vector<8x52xf32>
    %c0_299 = arith.constant 0 : index
    %c35 = arith.constant 35 : index
    %c0_300 = arith.constant 0 : index
    %550 = vector.load %arg3[%c0_299, %c35, %c0_300] : memref<1x126x52xf32, #tpu.memory_space<vmem>>, vector<1x1x52xf32>
    %551 = vector.shape_cast %550 : vector<1x1x52xf32> to vector<1x52xf32>
    %552 = vector.broadcast %551 : vector<1x52xf32> to vector<8x52xf32>
    %553 = arith.mulf %538, %552 : vector<8x52xf32>
    %554 = arith.addf %549, %553 : vector<8x52xf32>
    %c0_301 = arith.constant 0 : index
    %c40 = arith.constant 40 : index
    %c0_302 = arith.constant 0 : index
    %555 = vector.load %arg3[%c0_301, %c40, %c0_302] : memref<1x126x52xf32, #tpu.memory_space<vmem>>, vector<1x1x52xf32>
    %556 = vector.shape_cast %555 : vector<1x1x52xf32> to vector<1x52xf32>
    %557 = vector.broadcast %556 : vector<1x52xf32> to vector<8x52xf32>
    %558 = arith.mulf %539, %557 : vector<8x52xf32>
    %559 = arith.addf %554, %558 : vector<8x52xf32>
    %c0_303 = arith.constant 0 : index
    %c45 = arith.constant 45 : index
    %c0_304 = arith.constant 0 : index
    %560 = vector.load %arg3[%c0_303, %c45, %c0_304] : memref<1x126x52xf32, #tpu.memory_space<vmem>>, vector<1x1x52xf32>
    %561 = vector.shape_cast %560 : vector<1x1x52xf32> to vector<1x52xf32>
    %562 = vector.broadcast %561 : vector<1x52xf32> to vector<8x52xf32>
    %563 = arith.mulf %540, %562 : vector<8x52xf32>
    %564 = arith.addf %559, %563 : vector<8x52xf32>
    %565 = vector.extract_strided_slice %564 {offsets = [0, 0], sizes = [8, 48], strides = [1, 1]} : vector<8x52xf32> to vector<8x48xf32>
    %c0_305 = arith.constant 0 : index
    %c26 = arith.constant 26 : index
    %c0_306 = arith.constant 0 : index
    %566 = vector.load %arg3[%c0_305, %c26, %c0_306] : memref<1x126x52xf32, #tpu.memory_space<vmem>>, vector<1x1x52xf32>
    %567 = vector.shape_cast %566 : vector<1x1x52xf32> to vector<1x52xf32>
    %568 = vector.broadcast %567 : vector<1x52xf32> to vector<8x52xf32>
    %569 = arith.mulf %536, %568 : vector<8x52xf32>
    %c0_307 = arith.constant 0 : index
    %c31 = arith.constant 31 : index
    %c0_308 = arith.constant 0 : index
    %570 = vector.load %arg3[%c0_307, %c31, %c0_308] : memref<1x126x52xf32, #tpu.memory_space<vmem>>, vector<1x1x52xf32>
    %571 = vector.shape_cast %570 : vector<1x1x52xf32> to vector<1x52xf32>
    %572 = vector.broadcast %571 : vector<1x52xf32> to vector<8x52xf32>
    %573 = arith.mulf %537, %572 : vector<8x52xf32>
    %574 = arith.addf %569, %573 : vector<8x52xf32>
    %c0_309 = arith.constant 0 : index
    %c36 = arith.constant 36 : index
    %c0_310 = arith.constant 0 : index
    %575 = vector.load %arg3[%c0_309, %c36, %c0_310] : memref<1x126x52xf32, #tpu.memory_space<vmem>>, vector<1x1x52xf32>
    %576 = vector.shape_cast %575 : vector<1x1x52xf32> to vector<1x52xf32>
    %577 = vector.broadcast %576 : vector<1x52xf32> to vector<8x52xf32>
    %578 = arith.mulf %538, %577 : vector<8x52xf32>
    %579 = arith.addf %574, %578 : vector<8x52xf32>
    %c0_311 = arith.constant 0 : index
    %c41 = arith.constant 41 : index
    %c0_312 = arith.constant 0 : index
    %580 = vector.load %arg3[%c0_311, %c41, %c0_312] : memref<1x126x52xf32, #tpu.memory_space<vmem>>, vector<1x1x52xf32>
    %581 = vector.shape_cast %580 : vector<1x1x52xf32> to vector<1x52xf32>
    %582 = vector.broadcast %581 : vector<1x52xf32> to vector<8x52xf32>
    %583 = arith.mulf %539, %582 : vector<8x52xf32>
    %584 = arith.addf %579, %583 : vector<8x52xf32>
    %c0_313 = arith.constant 0 : index
    %c46 = arith.constant 46 : index
    %c0_314 = arith.constant 0 : index
    %585 = vector.load %arg3[%c0_313, %c46, %c0_314] : memref<1x126x52xf32, #tpu.memory_space<vmem>>, vector<1x1x52xf32>
    %586 = vector.shape_cast %585 : vector<1x1x52xf32> to vector<1x52xf32>
    %587 = vector.broadcast %586 : vector<1x52xf32> to vector<8x52xf32>
    %588 = arith.mulf %540, %587 : vector<8x52xf32>
    %589 = arith.addf %584, %588 : vector<8x52xf32>
    %590 = vector.extract_strided_slice %589 {offsets = [0, 1], sizes = [8, 48], strides = [1, 1]} : vector<8x52xf32> to vector<8x48xf32>
    %591 = arith.addf %565, %590 : vector<8x48xf32>
    %c0_315 = arith.constant 0 : index
    %c27 = arith.constant 27 : index
    %c0_316 = arith.constant 0 : index
    %592 = vector.load %arg3[%c0_315, %c27, %c0_316] : memref<1x126x52xf32, #tpu.memory_space<vmem>>, vector<1x1x52xf32>
    %593 = vector.shape_cast %592 : vector<1x1x52xf32> to vector<1x52xf32>
    %594 = vector.broadcast %593 : vector<1x52xf32> to vector<8x52xf32>
    %595 = arith.mulf %536, %594 : vector<8x52xf32>
    %c0_317 = arith.constant 0 : index
    %c32 = arith.constant 32 : index
    %c0_318 = arith.constant 0 : index
    %596 = vector.load %arg3[%c0_317, %c32, %c0_318] : memref<1x126x52xf32, #tpu.memory_space<vmem>>, vector<1x1x52xf32>
    %597 = vector.shape_cast %596 : vector<1x1x52xf32> to vector<1x52xf32>
    %598 = vector.broadcast %597 : vector<1x52xf32> to vector<8x52xf32>
    %599 = arith.mulf %537, %598 : vector<8x52xf32>
    %600 = arith.addf %595, %599 : vector<8x52xf32>
    %c0_319 = arith.constant 0 : index
    %c37 = arith.constant 37 : index
    %c0_320 = arith.constant 0 : index
    %601 = vector.load %arg3[%c0_319, %c37, %c0_320] : memref<1x126x52xf32, #tpu.memory_space<vmem>>, vector<1x1x52xf32>
    %602 = vector.shape_cast %601 : vector<1x1x52xf32> to vector<1x52xf32>
    %603 = vector.broadcast %602 : vector<1x52xf32> to vector<8x52xf32>
    %604 = arith.mulf %538, %603 : vector<8x52xf32>
    %605 = arith.addf %600, %604 : vector<8x52xf32>
    %c0_321 = arith.constant 0 : index
    %c42 = arith.constant 42 : index
    %c0_322 = arith.constant 0 : index
    %606 = vector.load %arg3[%c0_321, %c42, %c0_322] : memref<1x126x52xf32, #tpu.memory_space<vmem>>, vector<1x1x52xf32>
    %607 = vector.shape_cast %606 : vector<1x1x52xf32> to vector<1x52xf32>
    %608 = vector.broadcast %607 : vector<1x52xf32> to vector<8x52xf32>
    %609 = arith.mulf %539, %608 : vector<8x52xf32>
    %610 = arith.addf %605, %609 : vector<8x52xf32>
    %c0_323 = arith.constant 0 : index
    %c47 = arith.constant 47 : index
    %c0_324 = arith.constant 0 : index
    %611 = vector.load %arg3[%c0_323, %c47, %c0_324] : memref<1x126x52xf32, #tpu.memory_space<vmem>>, vector<1x1x52xf32>
    %612 = vector.shape_cast %611 : vector<1x1x52xf32> to vector<1x52xf32>
    %613 = vector.broadcast %612 : vector<1x52xf32> to vector<8x52xf32>
    %614 = arith.mulf %540, %613 : vector<8x52xf32>
    %615 = arith.addf %610, %614 : vector<8x52xf32>
    %616 = vector.extract_strided_slice %615 {offsets = [0, 2], sizes = [8, 48], strides = [1, 1]} : vector<8x52xf32> to vector<8x48xf32>
    %617 = arith.addf %591, %616 : vector<8x48xf32>
    %c0_325 = arith.constant 0 : index
    %c28 = arith.constant 28 : index
    %c0_326 = arith.constant 0 : index
    %618 = vector.load %arg3[%c0_325, %c28, %c0_326] : memref<1x126x52xf32, #tpu.memory_space<vmem>>, vector<1x1x52xf32>
    %619 = vector.shape_cast %618 : vector<1x1x52xf32> to vector<1x52xf32>
    %620 = vector.broadcast %619 : vector<1x52xf32> to vector<8x52xf32>
    %621 = arith.mulf %536, %620 : vector<8x52xf32>
    %c0_327 = arith.constant 0 : index
    %c33 = arith.constant 33 : index
    %c0_328 = arith.constant 0 : index
    %622 = vector.load %arg3[%c0_327, %c33, %c0_328] : memref<1x126x52xf32, #tpu.memory_space<vmem>>, vector<1x1x52xf32>
    %623 = vector.shape_cast %622 : vector<1x1x52xf32> to vector<1x52xf32>
    %624 = vector.broadcast %623 : vector<1x52xf32> to vector<8x52xf32>
    %625 = arith.mulf %537, %624 : vector<8x52xf32>
    %626 = arith.addf %621, %625 : vector<8x52xf32>
    %c0_329 = arith.constant 0 : index
    %c38 = arith.constant 38 : index
    %c0_330 = arith.constant 0 : index
    %627 = vector.load %arg3[%c0_329, %c38, %c0_330] : memref<1x126x52xf32, #tpu.memory_space<vmem>>, vector<1x1x52xf32>
    %628 = vector.shape_cast %627 : vector<1x1x52xf32> to vector<1x52xf32>
    %629 = vector.broadcast %628 : vector<1x52xf32> to vector<8x52xf32>
    %630 = arith.mulf %538, %629 : vector<8x52xf32>
    %631 = arith.addf %626, %630 : vector<8x52xf32>
    %c0_331 = arith.constant 0 : index
    %c43 = arith.constant 43 : index
    %c0_332 = arith.constant 0 : index
    %632 = vector.load %arg3[%c0_331, %c43, %c0_332] : memref<1x126x52xf32, #tpu.memory_space<vmem>>, vector<1x1x52xf32>
    %633 = vector.shape_cast %632 : vector<1x1x52xf32> to vector<1x52xf32>
    %634 = vector.broadcast %633 : vector<1x52xf32> to vector<8x52xf32>
    %635 = arith.mulf %539, %634 : vector<8x52xf32>
    %636 = arith.addf %631, %635 : vector<8x52xf32>
    %c0_333 = arith.constant 0 : index
    %c48 = arith.constant 48 : index
    %c0_334 = arith.constant 0 : index
    %637 = vector.load %arg3[%c0_333, %c48, %c0_334] : memref<1x126x52xf32, #tpu.memory_space<vmem>>, vector<1x1x52xf32>
    %638 = vector.shape_cast %637 : vector<1x1x52xf32> to vector<1x52xf32>
    %639 = vector.broadcast %638 : vector<1x52xf32> to vector<8x52xf32>
    %640 = arith.mulf %540, %639 : vector<8x52xf32>
    %641 = arith.addf %636, %640 : vector<8x52xf32>
    %642 = vector.extract_strided_slice %641 {offsets = [0, 3], sizes = [8, 48], strides = [1, 1]} : vector<8x52xf32> to vector<8x48xf32>
    %643 = arith.addf %617, %642 : vector<8x48xf32>
    %c0_335 = arith.constant 0 : index
    %c29 = arith.constant 29 : index
    %c0_336 = arith.constant 0 : index
    %644 = vector.load %arg3[%c0_335, %c29, %c0_336] : memref<1x126x52xf32, #tpu.memory_space<vmem>>, vector<1x1x52xf32>
    %645 = vector.shape_cast %644 : vector<1x1x52xf32> to vector<1x52xf32>
    %646 = vector.broadcast %645 : vector<1x52xf32> to vector<8x52xf32>
    %647 = arith.mulf %536, %646 : vector<8x52xf32>
    %c0_337 = arith.constant 0 : index
    %c34 = arith.constant 34 : index
    %c0_338 = arith.constant 0 : index
    %648 = vector.load %arg3[%c0_337, %c34, %c0_338] : memref<1x126x52xf32, #tpu.memory_space<vmem>>, vector<1x1x52xf32>
    %649 = vector.shape_cast %648 : vector<1x1x52xf32> to vector<1x52xf32>
    %650 = vector.broadcast %649 : vector<1x52xf32> to vector<8x52xf32>
    %651 = arith.mulf %537, %650 : vector<8x52xf32>
    %652 = arith.addf %647, %651 : vector<8x52xf32>
    %c0_339 = arith.constant 0 : index
    %c39 = arith.constant 39 : index
    %c0_340 = arith.constant 0 : index
    %653 = vector.load %arg3[%c0_339, %c39, %c0_340] : memref<1x126x52xf32, #tpu.memory_space<vmem>>, vector<1x1x52xf32>
    %654 = vector.shape_cast %653 : vector<1x1x52xf32> to vector<1x52xf32>
    %655 = vector.broadcast %654 : vector<1x52xf32> to vector<8x52xf32>
    %656 = arith.mulf %538, %655 : vector<8x52xf32>
    %657 = arith.addf %652, %656 : vector<8x52xf32>
    %c0_341 = arith.constant 0 : index
    %c44 = arith.constant 44 : index
    %c0_342 = arith.constant 0 : index
    %658 = vector.load %arg3[%c0_341, %c44, %c0_342] : memref<1x126x52xf32, #tpu.memory_space<vmem>>, vector<1x1x52xf32>
    %659 = vector.shape_cast %658 : vector<1x1x52xf32> to vector<1x52xf32>
    %660 = vector.broadcast %659 : vector<1x52xf32> to vector<8x52xf32>
    %661 = arith.mulf %539, %660 : vector<8x52xf32>
    %662 = arith.addf %657, %661 : vector<8x52xf32>
    %c0_343 = arith.constant 0 : index
    %c49 = arith.constant 49 : index
    %c0_344 = arith.constant 0 : index
    %663 = vector.load %arg3[%c0_343, %c49, %c0_344] : memref<1x126x52xf32, #tpu.memory_space<vmem>>, vector<1x1x52xf32>
    %664 = vector.shape_cast %663 : vector<1x1x52xf32> to vector<1x52xf32>
    %665 = vector.broadcast %664 : vector<1x52xf32> to vector<8x52xf32>
    %666 = arith.mulf %540, %665 : vector<8x52xf32>
    %667 = arith.addf %662, %666 : vector<8x52xf32>
    %668 = vector.extract_strided_slice %667 {offsets = [0, 4], sizes = [8, 48], strides = [1, 1]} : vector<8x52xf32> to vector<8x48xf32>
    %669 = arith.addf %643, %668 : vector<8x48xf32>
    %670 = arith.addf %146, %669 : vector<8x48xf32>
    %671 = arith.addf %273, %669 : vector<8x48xf32>
    %672 = arith.addf %400, %669 : vector<8x48xf32>
    %673 = arith.addf %527, %669 : vector<8x48xf32>
    %674 = vector.extract_strided_slice %533 {offsets = [0, 0], sizes = [8, 52], strides = [1, 1]} : vector<12x52xf32> to vector<8x52xf32>
    %675 = vector.extract_strided_slice %533 {offsets = [1, 0], sizes = [8, 52], strides = [1, 1]} : vector<12x52xf32> to vector<8x52xf32>
    %676 = vector.extract_strided_slice %533 {offsets = [2, 0], sizes = [8, 52], strides = [1, 1]} : vector<12x52xf32> to vector<8x52xf32>
    %677 = vector.extract_strided_slice %533 {offsets = [3, 0], sizes = [8, 52], strides = [1, 1]} : vector<12x52xf32> to vector<8x52xf32>
    %678 = vector.extract_strided_slice %533 {offsets = [4, 0], sizes = [8, 52], strides = [1, 1]} : vector<12x52xf32> to vector<8x52xf32>
    %c0_345 = arith.constant 0 : index
    %c50 = arith.constant 50 : index
    %c0_346 = arith.constant 0 : index
    %679 = vector.load %arg3[%c0_345, %c50, %c0_346] : memref<1x126x52xf32, #tpu.memory_space<vmem>>, vector<1x1x52xf32>
    %680 = vector.shape_cast %679 : vector<1x1x52xf32> to vector<1x52xf32>
    %681 = vector.broadcast %680 : vector<1x52xf32> to vector<8x52xf32>
    %682 = arith.mulf %674, %681 : vector<8x52xf32>
    %c0_347 = arith.constant 0 : index
    %c55 = arith.constant 55 : index
    %c0_348 = arith.constant 0 : index
    %683 = vector.load %arg3[%c0_347, %c55, %c0_348] : memref<1x126x52xf32, #tpu.memory_space<vmem>>, vector<1x1x52xf32>
    %684 = vector.shape_cast %683 : vector<1x1x52xf32> to vector<1x52xf32>
    %685 = vector.broadcast %684 : vector<1x52xf32> to vector<8x52xf32>
    %686 = arith.mulf %675, %685 : vector<8x52xf32>
    %687 = arith.addf %682, %686 : vector<8x52xf32>
    %c0_349 = arith.constant 0 : index
    %c60 = arith.constant 60 : index
    %c0_350 = arith.constant 0 : index
    %688 = vector.load %arg3[%c0_349, %c60, %c0_350] : memref<1x126x52xf32, #tpu.memory_space<vmem>>, vector<1x1x52xf32>
    %689 = vector.shape_cast %688 : vector<1x1x52xf32> to vector<1x52xf32>
    %690 = vector.broadcast %689 : vector<1x52xf32> to vector<8x52xf32>
    %691 = arith.mulf %676, %690 : vector<8x52xf32>
    %692 = arith.addf %687, %691 : vector<8x52xf32>
    %c0_351 = arith.constant 0 : index
    %c65 = arith.constant 65 : index
    %c0_352 = arith.constant 0 : index
    %693 = vector.load %arg3[%c0_351, %c65, %c0_352] : memref<1x126x52xf32, #tpu.memory_space<vmem>>, vector<1x1x52xf32>
    %694 = vector.shape_cast %693 : vector<1x1x52xf32> to vector<1x52xf32>
    %695 = vector.broadcast %694 : vector<1x52xf32> to vector<8x52xf32>
    %696 = arith.mulf %677, %695 : vector<8x52xf32>
    %697 = arith.addf %692, %696 : vector<8x52xf32>
    %c0_353 = arith.constant 0 : index
    %c70 = arith.constant 70 : index
    %c0_354 = arith.constant 0 : index
    %698 = vector.load %arg3[%c0_353, %c70, %c0_354] : memref<1x126x52xf32, #tpu.memory_space<vmem>>, vector<1x1x52xf32>
    %699 = vector.shape_cast %698 : vector<1x1x52xf32> to vector<1x52xf32>
    %700 = vector.broadcast %699 : vector<1x52xf32> to vector<8x52xf32>
    %701 = arith.mulf %678, %700 : vector<8x52xf32>
    %702 = arith.addf %697, %701 : vector<8x52xf32>
    %703 = vector.extract_strided_slice %702 {offsets = [0, 0], sizes = [8, 48], strides = [1, 1]} : vector<8x52xf32> to vector<8x48xf32>
    %c0_355 = arith.constant 0 : index
    %c51 = arith.constant 51 : index
    %c0_356 = arith.constant 0 : index
    %704 = vector.load %arg3[%c0_355, %c51, %c0_356] : memref<1x126x52xf32, #tpu.memory_space<vmem>>, vector<1x1x52xf32>
    %705 = vector.shape_cast %704 : vector<1x1x52xf32> to vector<1x52xf32>
    %706 = vector.broadcast %705 : vector<1x52xf32> to vector<8x52xf32>
    %707 = arith.mulf %674, %706 : vector<8x52xf32>
    %c0_357 = arith.constant 0 : index
    %c56 = arith.constant 56 : index
    %c0_358 = arith.constant 0 : index
    %708 = vector.load %arg3[%c0_357, %c56, %c0_358] : memref<1x126x52xf32, #tpu.memory_space<vmem>>, vector<1x1x52xf32>
    %709 = vector.shape_cast %708 : vector<1x1x52xf32> to vector<1x52xf32>
    %710 = vector.broadcast %709 : vector<1x52xf32> to vector<8x52xf32>
    %711 = arith.mulf %675, %710 : vector<8x52xf32>
    %712 = arith.addf %707, %711 : vector<8x52xf32>
    %c0_359 = arith.constant 0 : index
    %c61 = arith.constant 61 : index
    %c0_360 = arith.constant 0 : index
    %713 = vector.load %arg3[%c0_359, %c61, %c0_360] : memref<1x126x52xf32, #tpu.memory_space<vmem>>, vector<1x1x52xf32>
    %714 = vector.shape_cast %713 : vector<1x1x52xf32> to vector<1x52xf32>
    %715 = vector.broadcast %714 : vector<1x52xf32> to vector<8x52xf32>
    %716 = arith.mulf %676, %715 : vector<8x52xf32>
    %717 = arith.addf %712, %716 : vector<8x52xf32>
    %c0_361 = arith.constant 0 : index
    %c66 = arith.constant 66 : index
    %c0_362 = arith.constant 0 : index
    %718 = vector.load %arg3[%c0_361, %c66, %c0_362] : memref<1x126x52xf32, #tpu.memory_space<vmem>>, vector<1x1x52xf32>
    %719 = vector.shape_cast %718 : vector<1x1x52xf32> to vector<1x52xf32>
    %720 = vector.broadcast %719 : vector<1x52xf32> to vector<8x52xf32>
    %721 = arith.mulf %677, %720 : vector<8x52xf32>
    %722 = arith.addf %717, %721 : vector<8x52xf32>
    %c0_363 = arith.constant 0 : index
    %c71 = arith.constant 71 : index
    %c0_364 = arith.constant 0 : index
    %723 = vector.load %arg3[%c0_363, %c71, %c0_364] : memref<1x126x52xf32, #tpu.memory_space<vmem>>, vector<1x1x52xf32>
    %724 = vector.shape_cast %723 : vector<1x1x52xf32> to vector<1x52xf32>
    %725 = vector.broadcast %724 : vector<1x52xf32> to vector<8x52xf32>
    %726 = arith.mulf %678, %725 : vector<8x52xf32>
    %727 = arith.addf %722, %726 : vector<8x52xf32>
    %728 = vector.extract_strided_slice %727 {offsets = [0, 1], sizes = [8, 48], strides = [1, 1]} : vector<8x52xf32> to vector<8x48xf32>
    %729 = arith.addf %703, %728 : vector<8x48xf32>
    %c0_365 = arith.constant 0 : index
    %c52 = arith.constant 52 : index
    %c0_366 = arith.constant 0 : index
    %730 = vector.load %arg3[%c0_365, %c52, %c0_366] : memref<1x126x52xf32, #tpu.memory_space<vmem>>, vector<1x1x52xf32>
    %731 = vector.shape_cast %730 : vector<1x1x52xf32> to vector<1x52xf32>
    %732 = vector.broadcast %731 : vector<1x52xf32> to vector<8x52xf32>
    %733 = arith.mulf %674, %732 : vector<8x52xf32>
    %c0_367 = arith.constant 0 : index
    %c57 = arith.constant 57 : index
    %c0_368 = arith.constant 0 : index
    %734 = vector.load %arg3[%c0_367, %c57, %c0_368] : memref<1x126x52xf32, #tpu.memory_space<vmem>>, vector<1x1x52xf32>
    %735 = vector.shape_cast %734 : vector<1x1x52xf32> to vector<1x52xf32>
    %736 = vector.broadcast %735 : vector<1x52xf32> to vector<8x52xf32>
    %737 = arith.mulf %675, %736 : vector<8x52xf32>
    %738 = arith.addf %733, %737 : vector<8x52xf32>
    %c0_369 = arith.constant 0 : index
    %c62 = arith.constant 62 : index
    %c0_370 = arith.constant 0 : index
    %739 = vector.load %arg3[%c0_369, %c62, %c0_370] : memref<1x126x52xf32, #tpu.memory_space<vmem>>, vector<1x1x52xf32>
    %740 = vector.shape_cast %739 : vector<1x1x52xf32> to vector<1x52xf32>
    %741 = vector.broadcast %740 : vector<1x52xf32> to vector<8x52xf32>
    %742 = arith.mulf %676, %741 : vector<8x52xf32>
    %743 = arith.addf %738, %742 : vector<8x52xf32>
    %c0_371 = arith.constant 0 : index
    %c67 = arith.constant 67 : index
    %c0_372 = arith.constant 0 : index
    %744 = vector.load %arg3[%c0_371, %c67, %c0_372] : memref<1x126x52xf32, #tpu.memory_space<vmem>>, vector<1x1x52xf32>
    %745 = vector.shape_cast %744 : vector<1x1x52xf32> to vector<1x52xf32>
    %746 = vector.broadcast %745 : vector<1x52xf32> to vector<8x52xf32>
    %747 = arith.mulf %677, %746 : vector<8x52xf32>
    %748 = arith.addf %743, %747 : vector<8x52xf32>
    %c0_373 = arith.constant 0 : index
    %c72 = arith.constant 72 : index
    %c0_374 = arith.constant 0 : index
    %749 = vector.load %arg3[%c0_373, %c72, %c0_374] : memref<1x126x52xf32, #tpu.memory_space<vmem>>, vector<1x1x52xf32>
    %750 = vector.shape_cast %749 : vector<1x1x52xf32> to vector<1x52xf32>
    %751 = vector.broadcast %750 : vector<1x52xf32> to vector<8x52xf32>
    %752 = arith.mulf %678, %751 : vector<8x52xf32>
    %753 = arith.addf %748, %752 : vector<8x52xf32>
    %754 = vector.extract_strided_slice %753 {offsets = [0, 2], sizes = [8, 48], strides = [1, 1]} : vector<8x52xf32> to vector<8x48xf32>
    %755 = arith.addf %729, %754 : vector<8x48xf32>
    %c0_375 = arith.constant 0 : index
    %c53 = arith.constant 53 : index
    %c0_376 = arith.constant 0 : index
    %756 = vector.load %arg3[%c0_375, %c53, %c0_376] : memref<1x126x52xf32, #tpu.memory_space<vmem>>, vector<1x1x52xf32>
    %757 = vector.shape_cast %756 : vector<1x1x52xf32> to vector<1x52xf32>
    %758 = vector.broadcast %757 : vector<1x52xf32> to vector<8x52xf32>
    %759 = arith.mulf %674, %758 : vector<8x52xf32>
    %c0_377 = arith.constant 0 : index
    %c58 = arith.constant 58 : index
    %c0_378 = arith.constant 0 : index
    %760 = vector.load %arg3[%c0_377, %c58, %c0_378] : memref<1x126x52xf32, #tpu.memory_space<vmem>>, vector<1x1x52xf32>
    %761 = vector.shape_cast %760 : vector<1x1x52xf32> to vector<1x52xf32>
    %762 = vector.broadcast %761 : vector<1x52xf32> to vector<8x52xf32>
    %763 = arith.mulf %675, %762 : vector<8x52xf32>
    %764 = arith.addf %759, %763 : vector<8x52xf32>
    %c0_379 = arith.constant 0 : index
    %c63 = arith.constant 63 : index
    %c0_380 = arith.constant 0 : index
    %765 = vector.load %arg3[%c0_379, %c63, %c0_380] : memref<1x126x52xf32, #tpu.memory_space<vmem>>, vector<1x1x52xf32>
    %766 = vector.shape_cast %765 : vector<1x1x52xf32> to vector<1x52xf32>
    %767 = vector.broadcast %766 : vector<1x52xf32> to vector<8x52xf32>
    %768 = arith.mulf %676, %767 : vector<8x52xf32>
    %769 = arith.addf %764, %768 : vector<8x52xf32>
    %c0_381 = arith.constant 0 : index
    %c68 = arith.constant 68 : index
    %c0_382 = arith.constant 0 : index
    %770 = vector.load %arg3[%c0_381, %c68, %c0_382] : memref<1x126x52xf32, #tpu.memory_space<vmem>>, vector<1x1x52xf32>
    %771 = vector.shape_cast %770 : vector<1x1x52xf32> to vector<1x52xf32>
    %772 = vector.broadcast %771 : vector<1x52xf32> to vector<8x52xf32>
    %773 = arith.mulf %677, %772 : vector<8x52xf32>
    %774 = arith.addf %769, %773 : vector<8x52xf32>
    %c0_383 = arith.constant 0 : index
    %c73 = arith.constant 73 : index
    %c0_384 = arith.constant 0 : index
    %775 = vector.load %arg3[%c0_383, %c73, %c0_384] : memref<1x126x52xf32, #tpu.memory_space<vmem>>, vector<1x1x52xf32>
    %776 = vector.shape_cast %775 : vector<1x1x52xf32> to vector<1x52xf32>
    %777 = vector.broadcast %776 : vector<1x52xf32> to vector<8x52xf32>
    %778 = arith.mulf %678, %777 : vector<8x52xf32>
    %779 = arith.addf %774, %778 : vector<8x52xf32>
    %780 = vector.extract_strided_slice %779 {offsets = [0, 3], sizes = [8, 48], strides = [1, 1]} : vector<8x52xf32> to vector<8x48xf32>
    %781 = arith.addf %755, %780 : vector<8x48xf32>
    %c0_385 = arith.constant 0 : index
    %c54 = arith.constant 54 : index
    %c0_386 = arith.constant 0 : index
    %782 = vector.load %arg3[%c0_385, %c54, %c0_386] : memref<1x126x52xf32, #tpu.memory_space<vmem>>, vector<1x1x52xf32>
    %783 = vector.shape_cast %782 : vector<1x1x52xf32> to vector<1x52xf32>
    %784 = vector.broadcast %783 : vector<1x52xf32> to vector<8x52xf32>
    %785 = arith.mulf %674, %784 : vector<8x52xf32>
    %c0_387 = arith.constant 0 : index
    %c59 = arith.constant 59 : index
    %c0_388 = arith.constant 0 : index
    %786 = vector.load %arg3[%c0_387, %c59, %c0_388] : memref<1x126x52xf32, #tpu.memory_space<vmem>>, vector<1x1x52xf32>
    %787 = vector.shape_cast %786 : vector<1x1x52xf32> to vector<1x52xf32>
    %788 = vector.broadcast %787 : vector<1x52xf32> to vector<8x52xf32>
    %789 = arith.mulf %675, %788 : vector<8x52xf32>
    %790 = arith.addf %785, %789 : vector<8x52xf32>
    %c0_389 = arith.constant 0 : index
    %c64 = arith.constant 64 : index
    %c0_390 = arith.constant 0 : index
    %791 = vector.load %arg3[%c0_389, %c64, %c0_390] : memref<1x126x52xf32, #tpu.memory_space<vmem>>, vector<1x1x52xf32>
    %792 = vector.shape_cast %791 : vector<1x1x52xf32> to vector<1x52xf32>
    %793 = vector.broadcast %792 : vector<1x52xf32> to vector<8x52xf32>
    %794 = arith.mulf %676, %793 : vector<8x52xf32>
    %795 = arith.addf %790, %794 : vector<8x52xf32>
    %c0_391 = arith.constant 0 : index
    %c69 = arith.constant 69 : index
    %c0_392 = arith.constant 0 : index
    %796 = vector.load %arg3[%c0_391, %c69, %c0_392] : memref<1x126x52xf32, #tpu.memory_space<vmem>>, vector<1x1x52xf32>
    %797 = vector.shape_cast %796 : vector<1x1x52xf32> to vector<1x52xf32>
    %798 = vector.broadcast %797 : vector<1x52xf32> to vector<8x52xf32>
    %799 = arith.mulf %677, %798 : vector<8x52xf32>
    %800 = arith.addf %795, %799 : vector<8x52xf32>
    %c0_393 = arith.constant 0 : index
    %c74 = arith.constant 74 : index
    %c0_394 = arith.constant 0 : index
    %801 = vector.load %arg3[%c0_393, %c74, %c0_394] : memref<1x126x52xf32, #tpu.memory_space<vmem>>, vector<1x1x52xf32>
    %802 = vector.shape_cast %801 : vector<1x1x52xf32> to vector<1x52xf32>
    %803 = vector.broadcast %802 : vector<1x52xf32> to vector<8x52xf32>
    %804 = arith.mulf %678, %803 : vector<8x52xf32>
    %805 = arith.addf %800, %804 : vector<8x52xf32>
    %806 = vector.extract_strided_slice %805 {offsets = [0, 4], sizes = [8, 48], strides = [1, 1]} : vector<8x52xf32> to vector<8x48xf32>
    %807 = arith.addf %781, %806 : vector<8x48xf32>
    %808 = arith.addf %670, %807 : vector<8x48xf32>
    %809 = arith.addf %671, %807 : vector<8x48xf32>
    %810 = arith.subf %672, %807 : vector<8x48xf32>
    %811 = arith.subf %673, %807 : vector<8x48xf32>
    %812 = vector.extract_strided_slice %534 {offsets = [0, 0], sizes = [8, 52], strides = [1, 1]} : vector<12x52xf32> to vector<8x52xf32>
    %813 = vector.extract_strided_slice %534 {offsets = [1, 0], sizes = [8, 52], strides = [1, 1]} : vector<12x52xf32> to vector<8x52xf32>
    %814 = vector.extract_strided_slice %534 {offsets = [2, 0], sizes = [8, 52], strides = [1, 1]} : vector<12x52xf32> to vector<8x52xf32>
    %815 = vector.extract_strided_slice %534 {offsets = [3, 0], sizes = [8, 52], strides = [1, 1]} : vector<12x52xf32> to vector<8x52xf32>
    %816 = vector.extract_strided_slice %534 {offsets = [4, 0], sizes = [8, 52], strides = [1, 1]} : vector<12x52xf32> to vector<8x52xf32>
    %c0_395 = arith.constant 0 : index
    %c75 = arith.constant 75 : index
    %c0_396 = arith.constant 0 : index
    %817 = vector.load %arg3[%c0_395, %c75, %c0_396] : memref<1x126x52xf32, #tpu.memory_space<vmem>>, vector<1x1x52xf32>
    %818 = vector.shape_cast %817 : vector<1x1x52xf32> to vector<1x52xf32>
    %819 = vector.broadcast %818 : vector<1x52xf32> to vector<8x52xf32>
    %820 = arith.mulf %812, %819 : vector<8x52xf32>
    %c0_397 = arith.constant 0 : index
    %c80 = arith.constant 80 : index
    %c0_398 = arith.constant 0 : index
    %821 = vector.load %arg3[%c0_397, %c80, %c0_398] : memref<1x126x52xf32, #tpu.memory_space<vmem>>, vector<1x1x52xf32>
    %822 = vector.shape_cast %821 : vector<1x1x52xf32> to vector<1x52xf32>
    %823 = vector.broadcast %822 : vector<1x52xf32> to vector<8x52xf32>
    %824 = arith.mulf %813, %823 : vector<8x52xf32>
    %825 = arith.addf %820, %824 : vector<8x52xf32>
    %c0_399 = arith.constant 0 : index
    %c85 = arith.constant 85 : index
    %c0_400 = arith.constant 0 : index
    %826 = vector.load %arg3[%c0_399, %c85, %c0_400] : memref<1x126x52xf32, #tpu.memory_space<vmem>>, vector<1x1x52xf32>
    %827 = vector.shape_cast %826 : vector<1x1x52xf32> to vector<1x52xf32>
    %828 = vector.broadcast %827 : vector<1x52xf32> to vector<8x52xf32>
    %829 = arith.mulf %814, %828 : vector<8x52xf32>
    %830 = arith.addf %825, %829 : vector<8x52xf32>
    %c0_401 = arith.constant 0 : index
    %c90 = arith.constant 90 : index
    %c0_402 = arith.constant 0 : index
    %831 = vector.load %arg3[%c0_401, %c90, %c0_402] : memref<1x126x52xf32, #tpu.memory_space<vmem>>, vector<1x1x52xf32>
    %832 = vector.shape_cast %831 : vector<1x1x52xf32> to vector<1x52xf32>
    %833 = vector.broadcast %832 : vector<1x52xf32> to vector<8x52xf32>
    %834 = arith.mulf %815, %833 : vector<8x52xf32>
    %835 = arith.addf %830, %834 : vector<8x52xf32>
    %c0_403 = arith.constant 0 : index
    %c95 = arith.constant 95 : index
    %c0_404 = arith.constant 0 : index
    %836 = vector.load %arg3[%c0_403, %c95, %c0_404] : memref<1x126x52xf32, #tpu.memory_space<vmem>>, vector<1x1x52xf32>
    %837 = vector.shape_cast %836 : vector<1x1x52xf32> to vector<1x52xf32>
    %838 = vector.broadcast %837 : vector<1x52xf32> to vector<8x52xf32>
    %839 = arith.mulf %816, %838 : vector<8x52xf32>
    %840 = arith.addf %835, %839 : vector<8x52xf32>
    %841 = vector.extract_strided_slice %840 {offsets = [0, 0], sizes = [8, 48], strides = [1, 1]} : vector<8x52xf32> to vector<8x48xf32>
    %c0_405 = arith.constant 0 : index
    %c76 = arith.constant 76 : index
    %c0_406 = arith.constant 0 : index
    %842 = vector.load %arg3[%c0_405, %c76, %c0_406] : memref<1x126x52xf32, #tpu.memory_space<vmem>>, vector<1x1x52xf32>
    %843 = vector.shape_cast %842 : vector<1x1x52xf32> to vector<1x52xf32>
    %844 = vector.broadcast %843 : vector<1x52xf32> to vector<8x52xf32>
    %845 = arith.mulf %812, %844 : vector<8x52xf32>
    %c0_407 = arith.constant 0 : index
    %c81 = arith.constant 81 : index
    %c0_408 = arith.constant 0 : index
    %846 = vector.load %arg3[%c0_407, %c81, %c0_408] : memref<1x126x52xf32, #tpu.memory_space<vmem>>, vector<1x1x52xf32>
    %847 = vector.shape_cast %846 : vector<1x1x52xf32> to vector<1x52xf32>
    %848 = vector.broadcast %847 : vector<1x52xf32> to vector<8x52xf32>
    %849 = arith.mulf %813, %848 : vector<8x52xf32>
    %850 = arith.addf %845, %849 : vector<8x52xf32>
    %c0_409 = arith.constant 0 : index
    %c86 = arith.constant 86 : index
    %c0_410 = arith.constant 0 : index
    %851 = vector.load %arg3[%c0_409, %c86, %c0_410] : memref<1x126x52xf32, #tpu.memory_space<vmem>>, vector<1x1x52xf32>
    %852 = vector.shape_cast %851 : vector<1x1x52xf32> to vector<1x52xf32>
    %853 = vector.broadcast %852 : vector<1x52xf32> to vector<8x52xf32>
    %854 = arith.mulf %814, %853 : vector<8x52xf32>
    %855 = arith.addf %850, %854 : vector<8x52xf32>
    %c0_411 = arith.constant 0 : index
    %c91 = arith.constant 91 : index
    %c0_412 = arith.constant 0 : index
    %856 = vector.load %arg3[%c0_411, %c91, %c0_412] : memref<1x126x52xf32, #tpu.memory_space<vmem>>, vector<1x1x52xf32>
    %857 = vector.shape_cast %856 : vector<1x1x52xf32> to vector<1x52xf32>
    %858 = vector.broadcast %857 : vector<1x52xf32> to vector<8x52xf32>
    %859 = arith.mulf %815, %858 : vector<8x52xf32>
    %860 = arith.addf %855, %859 : vector<8x52xf32>
    %c0_413 = arith.constant 0 : index
    %c96 = arith.constant 96 : index
    %c0_414 = arith.constant 0 : index
    %861 = vector.load %arg3[%c0_413, %c96, %c0_414] : memref<1x126x52xf32, #tpu.memory_space<vmem>>, vector<1x1x52xf32>
    %862 = vector.shape_cast %861 : vector<1x1x52xf32> to vector<1x52xf32>
    %863 = vector.broadcast %862 : vector<1x52xf32> to vector<8x52xf32>
    %864 = arith.mulf %816, %863 : vector<8x52xf32>
    %865 = arith.addf %860, %864 : vector<8x52xf32>
    %866 = vector.extract_strided_slice %865 {offsets = [0, 1], sizes = [8, 48], strides = [1, 1]} : vector<8x52xf32> to vector<8x48xf32>
    %867 = arith.addf %841, %866 : vector<8x48xf32>
    %c0_415 = arith.constant 0 : index
    %c77 = arith.constant 77 : index
    %c0_416 = arith.constant 0 : index
    %868 = vector.load %arg3[%c0_415, %c77, %c0_416] : memref<1x126x52xf32, #tpu.memory_space<vmem>>, vector<1x1x52xf32>
    %869 = vector.shape_cast %868 : vector<1x1x52xf32> to vector<1x52xf32>
    %870 = vector.broadcast %869 : vector<1x52xf32> to vector<8x52xf32>
    %871 = arith.mulf %812, %870 : vector<8x52xf32>
    %c0_417 = arith.constant 0 : index
    %c82 = arith.constant 82 : index
    %c0_418 = arith.constant 0 : index
    %872 = vector.load %arg3[%c0_417, %c82, %c0_418] : memref<1x126x52xf32, #tpu.memory_space<vmem>>, vector<1x1x52xf32>
    %873 = vector.shape_cast %872 : vector<1x1x52xf32> to vector<1x52xf32>
    %874 = vector.broadcast %873 : vector<1x52xf32> to vector<8x52xf32>
    %875 = arith.mulf %813, %874 : vector<8x52xf32>
    %876 = arith.addf %871, %875 : vector<8x52xf32>
    %c0_419 = arith.constant 0 : index
    %c87 = arith.constant 87 : index
    %c0_420 = arith.constant 0 : index
    %877 = vector.load %arg3[%c0_419, %c87, %c0_420] : memref<1x126x52xf32, #tpu.memory_space<vmem>>, vector<1x1x52xf32>
    %878 = vector.shape_cast %877 : vector<1x1x52xf32> to vector<1x52xf32>
    %879 = vector.broadcast %878 : vector<1x52xf32> to vector<8x52xf32>
    %880 = arith.mulf %814, %879 : vector<8x52xf32>
    %881 = arith.addf %876, %880 : vector<8x52xf32>
    %c0_421 = arith.constant 0 : index
    %c92 = arith.constant 92 : index
    %c0_422 = arith.constant 0 : index
    %882 = vector.load %arg3[%c0_421, %c92, %c0_422] : memref<1x126x52xf32, #tpu.memory_space<vmem>>, vector<1x1x52xf32>
    %883 = vector.shape_cast %882 : vector<1x1x52xf32> to vector<1x52xf32>
    %884 = vector.broadcast %883 : vector<1x52xf32> to vector<8x52xf32>
    %885 = arith.mulf %815, %884 : vector<8x52xf32>
    %886 = arith.addf %881, %885 : vector<8x52xf32>
    %c0_423 = arith.constant 0 : index
    %c97 = arith.constant 97 : index
    %c0_424 = arith.constant 0 : index
    %887 = vector.load %arg3[%c0_423, %c97, %c0_424] : memref<1x126x52xf32, #tpu.memory_space<vmem>>, vector<1x1x52xf32>
    %888 = vector.shape_cast %887 : vector<1x1x52xf32> to vector<1x52xf32>
    %889 = vector.broadcast %888 : vector<1x52xf32> to vector<8x52xf32>
    %890 = arith.mulf %816, %889 : vector<8x52xf32>
    %891 = arith.addf %886, %890 : vector<8x52xf32>
    %892 = vector.extract_strided_slice %891 {offsets = [0, 2], sizes = [8, 48], strides = [1, 1]} : vector<8x52xf32> to vector<8x48xf32>
    %893 = arith.addf %867, %892 : vector<8x48xf32>
    %c0_425 = arith.constant 0 : index
    %c78 = arith.constant 78 : index
    %c0_426 = arith.constant 0 : index
    %894 = vector.load %arg3[%c0_425, %c78, %c0_426] : memref<1x126x52xf32, #tpu.memory_space<vmem>>, vector<1x1x52xf32>
    %895 = vector.shape_cast %894 : vector<1x1x52xf32> to vector<1x52xf32>
    %896 = vector.broadcast %895 : vector<1x52xf32> to vector<8x52xf32>
    %897 = arith.mulf %812, %896 : vector<8x52xf32>
    %c0_427 = arith.constant 0 : index
    %c83 = arith.constant 83 : index
    %c0_428 = arith.constant 0 : index
    %898 = vector.load %arg3[%c0_427, %c83, %c0_428] : memref<1x126x52xf32, #tpu.memory_space<vmem>>, vector<1x1x52xf32>
    %899 = vector.shape_cast %898 : vector<1x1x52xf32> to vector<1x52xf32>
    %900 = vector.broadcast %899 : vector<1x52xf32> to vector<8x52xf32>
    %901 = arith.mulf %813, %900 : vector<8x52xf32>
    %902 = arith.addf %897, %901 : vector<8x52xf32>
    %c0_429 = arith.constant 0 : index
    %c88 = arith.constant 88 : index
    %c0_430 = arith.constant 0 : index
    %903 = vector.load %arg3[%c0_429, %c88, %c0_430] : memref<1x126x52xf32, #tpu.memory_space<vmem>>, vector<1x1x52xf32>
    %904 = vector.shape_cast %903 : vector<1x1x52xf32> to vector<1x52xf32>
    %905 = vector.broadcast %904 : vector<1x52xf32> to vector<8x52xf32>
    %906 = arith.mulf %814, %905 : vector<8x52xf32>
    %907 = arith.addf %902, %906 : vector<8x52xf32>
    %c0_431 = arith.constant 0 : index
    %c93 = arith.constant 93 : index
    %c0_432 = arith.constant 0 : index
    %908 = vector.load %arg3[%c0_431, %c93, %c0_432] : memref<1x126x52xf32, #tpu.memory_space<vmem>>, vector<1x1x52xf32>
    %909 = vector.shape_cast %908 : vector<1x1x52xf32> to vector<1x52xf32>
    %910 = vector.broadcast %909 : vector<1x52xf32> to vector<8x52xf32>
    %911 = arith.mulf %815, %910 : vector<8x52xf32>
    %912 = arith.addf %907, %911 : vector<8x52xf32>
    %c0_433 = arith.constant 0 : index
    %c98 = arith.constant 98 : index
    %c0_434 = arith.constant 0 : index
    %913 = vector.load %arg3[%c0_433, %c98, %c0_434] : memref<1x126x52xf32, #tpu.memory_space<vmem>>, vector<1x1x52xf32>
    %914 = vector.shape_cast %913 : vector<1x1x52xf32> to vector<1x52xf32>
    %915 = vector.broadcast %914 : vector<1x52xf32> to vector<8x52xf32>
    %916 = arith.mulf %816, %915 : vector<8x52xf32>
    %917 = arith.addf %912, %916 : vector<8x52xf32>
    %918 = vector.extract_strided_slice %917 {offsets = [0, 3], sizes = [8, 48], strides = [1, 1]} : vector<8x52xf32> to vector<8x48xf32>
    %919 = arith.addf %893, %918 : vector<8x48xf32>
    %c0_435 = arith.constant 0 : index
    %c79 = arith.constant 79 : index
    %c0_436 = arith.constant 0 : index
    %920 = vector.load %arg3[%c0_435, %c79, %c0_436] : memref<1x126x52xf32, #tpu.memory_space<vmem>>, vector<1x1x52xf32>
    %921 = vector.shape_cast %920 : vector<1x1x52xf32> to vector<1x52xf32>
    %922 = vector.broadcast %921 : vector<1x52xf32> to vector<8x52xf32>
    %923 = arith.mulf %812, %922 : vector<8x52xf32>
    %c0_437 = arith.constant 0 : index
    %c84 = arith.constant 84 : index
    %c0_438 = arith.constant 0 : index
    %924 = vector.load %arg3[%c0_437, %c84, %c0_438] : memref<1x126x52xf32, #tpu.memory_space<vmem>>, vector<1x1x52xf32>
    %925 = vector.shape_cast %924 : vector<1x1x52xf32> to vector<1x52xf32>
    %926 = vector.broadcast %925 : vector<1x52xf32> to vector<8x52xf32>
    %927 = arith.mulf %813, %926 : vector<8x52xf32>
    %928 = arith.addf %923, %927 : vector<8x52xf32>
    %c0_439 = arith.constant 0 : index
    %c89 = arith.constant 89 : index
    %c0_440 = arith.constant 0 : index
    %929 = vector.load %arg3[%c0_439, %c89, %c0_440] : memref<1x126x52xf32, #tpu.memory_space<vmem>>, vector<1x1x52xf32>
    %930 = vector.shape_cast %929 : vector<1x1x52xf32> to vector<1x52xf32>
    %931 = vector.broadcast %930 : vector<1x52xf32> to vector<8x52xf32>
    %932 = arith.mulf %814, %931 : vector<8x52xf32>
    %933 = arith.addf %928, %932 : vector<8x52xf32>
    %c0_441 = arith.constant 0 : index
    %c94 = arith.constant 94 : index
    %c0_442 = arith.constant 0 : index
    %934 = vector.load %arg3[%c0_441, %c94, %c0_442] : memref<1x126x52xf32, #tpu.memory_space<vmem>>, vector<1x1x52xf32>
    %935 = vector.shape_cast %934 : vector<1x1x52xf32> to vector<1x52xf32>
    %936 = vector.broadcast %935 : vector<1x52xf32> to vector<8x52xf32>
    %937 = arith.mulf %815, %936 : vector<8x52xf32>
    %938 = arith.addf %933, %937 : vector<8x52xf32>
    %c0_443 = arith.constant 0 : index
    %c99 = arith.constant 99 : index
    %c0_444 = arith.constant 0 : index
    %939 = vector.load %arg3[%c0_443, %c99, %c0_444] : memref<1x126x52xf32, #tpu.memory_space<vmem>>, vector<1x1x52xf32>
    %940 = vector.shape_cast %939 : vector<1x1x52xf32> to vector<1x52xf32>
    %941 = vector.broadcast %940 : vector<1x52xf32> to vector<8x52xf32>
    %942 = arith.mulf %816, %941 : vector<8x52xf32>
    %943 = arith.addf %938, %942 : vector<8x52xf32>
    %944 = vector.extract_strided_slice %943 {offsets = [0, 4], sizes = [8, 48], strides = [1, 1]} : vector<8x52xf32> to vector<8x48xf32>
    %945 = arith.addf %919, %944 : vector<8x48xf32>
    %946 = arith.addf %808, %945 : vector<8x48xf32>
    %947 = arith.subf %809, %945 : vector<8x48xf32>
    %948 = arith.addf %810, %945 : vector<8x48xf32>
    %949 = arith.subf %811, %945 : vector<8x48xf32>
    %950 = vector.extract_strided_slice %535 {offsets = [0, 0], sizes = [8, 52], strides = [1, 1]} : vector<12x52xf32> to vector<8x52xf32>
    %951 = vector.extract_strided_slice %535 {offsets = [1, 0], sizes = [8, 52], strides = [1, 1]} : vector<12x52xf32> to vector<8x52xf32>
    %952 = vector.extract_strided_slice %535 {offsets = [2, 0], sizes = [8, 52], strides = [1, 1]} : vector<12x52xf32> to vector<8x52xf32>
    %953 = vector.extract_strided_slice %535 {offsets = [3, 0], sizes = [8, 52], strides = [1, 1]} : vector<12x52xf32> to vector<8x52xf32>
    %954 = vector.extract_strided_slice %535 {offsets = [4, 0], sizes = [8, 52], strides = [1, 1]} : vector<12x52xf32> to vector<8x52xf32>
    %c0_445 = arith.constant 0 : index
    %c100 = arith.constant 100 : index
    %c0_446 = arith.constant 0 : index
    %955 = vector.load %arg3[%c0_445, %c100, %c0_446] : memref<1x126x52xf32, #tpu.memory_space<vmem>>, vector<1x1x52xf32>
    %956 = vector.shape_cast %955 : vector<1x1x52xf32> to vector<1x52xf32>
    %957 = vector.broadcast %956 : vector<1x52xf32> to vector<8x52xf32>
    %958 = arith.mulf %950, %957 : vector<8x52xf32>
    %c0_447 = arith.constant 0 : index
    %c105 = arith.constant 105 : index
    %c0_448 = arith.constant 0 : index
    %959 = vector.load %arg3[%c0_447, %c105, %c0_448] : memref<1x126x52xf32, #tpu.memory_space<vmem>>, vector<1x1x52xf32>
    %960 = vector.shape_cast %959 : vector<1x1x52xf32> to vector<1x52xf32>
    %961 = vector.broadcast %960 : vector<1x52xf32> to vector<8x52xf32>
    %962 = arith.mulf %951, %961 : vector<8x52xf32>
    %963 = arith.addf %958, %962 : vector<8x52xf32>
    %c0_449 = arith.constant 0 : index
    %c110 = arith.constant 110 : index
    %c0_450 = arith.constant 0 : index
    %964 = vector.load %arg3[%c0_449, %c110, %c0_450] : memref<1x126x52xf32, #tpu.memory_space<vmem>>, vector<1x1x52xf32>
    %965 = vector.shape_cast %964 : vector<1x1x52xf32> to vector<1x52xf32>
    %966 = vector.broadcast %965 : vector<1x52xf32> to vector<8x52xf32>
    %967 = arith.mulf %952, %966 : vector<8x52xf32>
    %968 = arith.addf %963, %967 : vector<8x52xf32>
    %c0_451 = arith.constant 0 : index
    %c115 = arith.constant 115 : index
    %c0_452 = arith.constant 0 : index
    %969 = vector.load %arg3[%c0_451, %c115, %c0_452] : memref<1x126x52xf32, #tpu.memory_space<vmem>>, vector<1x1x52xf32>
    %970 = vector.shape_cast %969 : vector<1x1x52xf32> to vector<1x52xf32>
    %971 = vector.broadcast %970 : vector<1x52xf32> to vector<8x52xf32>
    %972 = arith.mulf %953, %971 : vector<8x52xf32>
    %973 = arith.addf %968, %972 : vector<8x52xf32>
    %c0_453 = arith.constant 0 : index
    %c120 = arith.constant 120 : index
    %c0_454 = arith.constant 0 : index
    %974 = vector.load %arg3[%c0_453, %c120, %c0_454] : memref<1x126x52xf32, #tpu.memory_space<vmem>>, vector<1x1x52xf32>
    %975 = vector.shape_cast %974 : vector<1x1x52xf32> to vector<1x52xf32>
    %976 = vector.broadcast %975 : vector<1x52xf32> to vector<8x52xf32>
    %977 = arith.mulf %954, %976 : vector<8x52xf32>
    %978 = arith.addf %973, %977 : vector<8x52xf32>
    %979 = vector.extract_strided_slice %978 {offsets = [0, 0], sizes = [8, 48], strides = [1, 1]} : vector<8x52xf32> to vector<8x48xf32>
    %c0_455 = arith.constant 0 : index
    %c101 = arith.constant 101 : index
    %c0_456 = arith.constant 0 : index
    %980 = vector.load %arg3[%c0_455, %c101, %c0_456] : memref<1x126x52xf32, #tpu.memory_space<vmem>>, vector<1x1x52xf32>
    %981 = vector.shape_cast %980 : vector<1x1x52xf32> to vector<1x52xf32>
    %982 = vector.broadcast %981 : vector<1x52xf32> to vector<8x52xf32>
    %983 = arith.mulf %950, %982 : vector<8x52xf32>
    %c0_457 = arith.constant 0 : index
    %c106 = arith.constant 106 : index
    %c0_458 = arith.constant 0 : index
    %984 = vector.load %arg3[%c0_457, %c106, %c0_458] : memref<1x126x52xf32, #tpu.memory_space<vmem>>, vector<1x1x52xf32>
    %985 = vector.shape_cast %984 : vector<1x1x52xf32> to vector<1x52xf32>
    %986 = vector.broadcast %985 : vector<1x52xf32> to vector<8x52xf32>
    %987 = arith.mulf %951, %986 : vector<8x52xf32>
    %988 = arith.addf %983, %987 : vector<8x52xf32>
    %c0_459 = arith.constant 0 : index
    %c111 = arith.constant 111 : index
    %c0_460 = arith.constant 0 : index
    %989 = vector.load %arg3[%c0_459, %c111, %c0_460] : memref<1x126x52xf32, #tpu.memory_space<vmem>>, vector<1x1x52xf32>
    %990 = vector.shape_cast %989 : vector<1x1x52xf32> to vector<1x52xf32>
    %991 = vector.broadcast %990 : vector<1x52xf32> to vector<8x52xf32>
    %992 = arith.mulf %952, %991 : vector<8x52xf32>
    %993 = arith.addf %988, %992 : vector<8x52xf32>
    %c0_461 = arith.constant 0 : index
    %c116 = arith.constant 116 : index
    %c0_462 = arith.constant 0 : index
    %994 = vector.load %arg3[%c0_461, %c116, %c0_462] : memref<1x126x52xf32, #tpu.memory_space<vmem>>, vector<1x1x52xf32>
    %995 = vector.shape_cast %994 : vector<1x1x52xf32> to vector<1x52xf32>
    %996 = vector.broadcast %995 : vector<1x52xf32> to vector<8x52xf32>
    %997 = arith.mulf %953, %996 : vector<8x52xf32>
    %998 = arith.addf %993, %997 : vector<8x52xf32>
    %c0_463 = arith.constant 0 : index
    %c121 = arith.constant 121 : index
    %c0_464 = arith.constant 0 : index
    %999 = vector.load %arg3[%c0_463, %c121, %c0_464] : memref<1x126x52xf32, #tpu.memory_space<vmem>>, vector<1x1x52xf32>
    %1000 = vector.shape_cast %999 : vector<1x1x52xf32> to vector<1x52xf32>
    %1001 = vector.broadcast %1000 : vector<1x52xf32> to vector<8x52xf32>
    %1002 = arith.mulf %954, %1001 : vector<8x52xf32>
    %1003 = arith.addf %998, %1002 : vector<8x52xf32>
    %1004 = vector.extract_strided_slice %1003 {offsets = [0, 1], sizes = [8, 48], strides = [1, 1]} : vector<8x52xf32> to vector<8x48xf32>
    %1005 = arith.addf %979, %1004 : vector<8x48xf32>
    %c0_465 = arith.constant 0 : index
    %c102 = arith.constant 102 : index
    %c0_466 = arith.constant 0 : index
    %1006 = vector.load %arg3[%c0_465, %c102, %c0_466] : memref<1x126x52xf32, #tpu.memory_space<vmem>>, vector<1x1x52xf32>
    %1007 = vector.shape_cast %1006 : vector<1x1x52xf32> to vector<1x52xf32>
    %1008 = vector.broadcast %1007 : vector<1x52xf32> to vector<8x52xf32>
    %1009 = arith.mulf %950, %1008 : vector<8x52xf32>
    %c0_467 = arith.constant 0 : index
    %c107 = arith.constant 107 : index
    %c0_468 = arith.constant 0 : index
    %1010 = vector.load %arg3[%c0_467, %c107, %c0_468] : memref<1x126x52xf32, #tpu.memory_space<vmem>>, vector<1x1x52xf32>
    %1011 = vector.shape_cast %1010 : vector<1x1x52xf32> to vector<1x52xf32>
    %1012 = vector.broadcast %1011 : vector<1x52xf32> to vector<8x52xf32>
    %1013 = arith.mulf %951, %1012 : vector<8x52xf32>
    %1014 = arith.addf %1009, %1013 : vector<8x52xf32>
    %c0_469 = arith.constant 0 : index
    %c112 = arith.constant 112 : index
    %c0_470 = arith.constant 0 : index
    %1015 = vector.load %arg3[%c0_469, %c112, %c0_470] : memref<1x126x52xf32, #tpu.memory_space<vmem>>, vector<1x1x52xf32>
    %1016 = vector.shape_cast %1015 : vector<1x1x52xf32> to vector<1x52xf32>
    %1017 = vector.broadcast %1016 : vector<1x52xf32> to vector<8x52xf32>
    %1018 = arith.mulf %952, %1017 : vector<8x52xf32>
    %1019 = arith.addf %1014, %1018 : vector<8x52xf32>
    %c0_471 = arith.constant 0 : index
    %c117 = arith.constant 117 : index
    %c0_472 = arith.constant 0 : index
    %1020 = vector.load %arg3[%c0_471, %c117, %c0_472] : memref<1x126x52xf32, #tpu.memory_space<vmem>>, vector<1x1x52xf32>
    %1021 = vector.shape_cast %1020 : vector<1x1x52xf32> to vector<1x52xf32>
    %1022 = vector.broadcast %1021 : vector<1x52xf32> to vector<8x52xf32>
    %1023 = arith.mulf %953, %1022 : vector<8x52xf32>
    %1024 = arith.addf %1019, %1023 : vector<8x52xf32>
    %c0_473 = arith.constant 0 : index
    %c122 = arith.constant 122 : index
    %c0_474 = arith.constant 0 : index
    %1025 = vector.load %arg3[%c0_473, %c122, %c0_474] : memref<1x126x52xf32, #tpu.memory_space<vmem>>, vector<1x1x52xf32>
    %1026 = vector.shape_cast %1025 : vector<1x1x52xf32> to vector<1x52xf32>
    %1027 = vector.broadcast %1026 : vector<1x52xf32> to vector<8x52xf32>
    %1028 = arith.mulf %954, %1027 : vector<8x52xf32>
    %1029 = arith.addf %1024, %1028 : vector<8x52xf32>
    %1030 = vector.extract_strided_slice %1029 {offsets = [0, 2], sizes = [8, 48], strides = [1, 1]} : vector<8x52xf32> to vector<8x48xf32>
    %1031 = arith.addf %1005, %1030 : vector<8x48xf32>
    %c0_475 = arith.constant 0 : index
    %c103 = arith.constant 103 : index
    %c0_476 = arith.constant 0 : index
    %1032 = vector.load %arg3[%c0_475, %c103, %c0_476] : memref<1x126x52xf32, #tpu.memory_space<vmem>>, vector<1x1x52xf32>
    %1033 = vector.shape_cast %1032 : vector<1x1x52xf32> to vector<1x52xf32>
    %1034 = vector.broadcast %1033 : vector<1x52xf32> to vector<8x52xf32>
    %1035 = arith.mulf %950, %1034 : vector<8x52xf32>
    %c0_477 = arith.constant 0 : index
    %c108 = arith.constant 108 : index
    %c0_478 = arith.constant 0 : index
    %1036 = vector.load %arg3[%c0_477, %c108, %c0_478] : memref<1x126x52xf32, #tpu.memory_space<vmem>>, vector<1x1x52xf32>
    %1037 = vector.shape_cast %1036 : vector<1x1x52xf32> to vector<1x52xf32>
    %1038 = vector.broadcast %1037 : vector<1x52xf32> to vector<8x52xf32>
    %1039 = arith.mulf %951, %1038 : vector<8x52xf32>
    %1040 = arith.addf %1035, %1039 : vector<8x52xf32>
    %c0_479 = arith.constant 0 : index
    %c113 = arith.constant 113 : index
    %c0_480 = arith.constant 0 : index
    %1041 = vector.load %arg3[%c0_479, %c113, %c0_480] : memref<1x126x52xf32, #tpu.memory_space<vmem>>, vector<1x1x52xf32>
    %1042 = vector.shape_cast %1041 : vector<1x1x52xf32> to vector<1x52xf32>
    %1043 = vector.broadcast %1042 : vector<1x52xf32> to vector<8x52xf32>
    %1044 = arith.mulf %952, %1043 : vector<8x52xf32>
    %1045 = arith.addf %1040, %1044 : vector<8x52xf32>
    %c0_481 = arith.constant 0 : index
    %c118 = arith.constant 118 : index
    %c0_482 = arith.constant 0 : index
    %1046 = vector.load %arg3[%c0_481, %c118, %c0_482] : memref<1x126x52xf32, #tpu.memory_space<vmem>>, vector<1x1x52xf32>
    %1047 = vector.shape_cast %1046 : vector<1x1x52xf32> to vector<1x52xf32>
    %1048 = vector.broadcast %1047 : vector<1x52xf32> to vector<8x52xf32>
    %1049 = arith.mulf %953, %1048 : vector<8x52xf32>
    %1050 = arith.addf %1045, %1049 : vector<8x52xf32>
    %c0_483 = arith.constant 0 : index
    %c123 = arith.constant 123 : index
    %c0_484 = arith.constant 0 : index
    %1051 = vector.load %arg3[%c0_483, %c123, %c0_484] : memref<1x126x52xf32, #tpu.memory_space<vmem>>, vector<1x1x52xf32>
    %1052 = vector.shape_cast %1051 : vector<1x1x52xf32> to vector<1x52xf32>
    %1053 = vector.broadcast %1052 : vector<1x52xf32> to vector<8x52xf32>
    %1054 = arith.mulf %954, %1053 : vector<8x52xf32>
    %1055 = arith.addf %1050, %1054 : vector<8x52xf32>
    %1056 = vector.extract_strided_slice %1055 {offsets = [0, 3], sizes = [8, 48], strides = [1, 1]} : vector<8x52xf32> to vector<8x48xf32>
    %1057 = arith.addf %1031, %1056 : vector<8x48xf32>
    %c0_485 = arith.constant 0 : index
    %c104 = arith.constant 104 : index
    %c0_486 = arith.constant 0 : index
    %1058 = vector.load %arg3[%c0_485, %c104, %c0_486] : memref<1x126x52xf32, #tpu.memory_space<vmem>>, vector<1x1x52xf32>
    %1059 = vector.shape_cast %1058 : vector<1x1x52xf32> to vector<1x52xf32>
    %1060 = vector.broadcast %1059 : vector<1x52xf32> to vector<8x52xf32>
    %1061 = arith.mulf %950, %1060 : vector<8x52xf32>
    %c0_487 = arith.constant 0 : index
    %c109 = arith.constant 109 : index
    %c0_488 = arith.constant 0 : index
    %1062 = vector.load %arg3[%c0_487, %c109, %c0_488] : memref<1x126x52xf32, #tpu.memory_space<vmem>>, vector<1x1x52xf32>
    %1063 = vector.shape_cast %1062 : vector<1x1x52xf32> to vector<1x52xf32>
    %1064 = vector.broadcast %1063 : vector<1x52xf32> to vector<8x52xf32>
    %1065 = arith.mulf %951, %1064 : vector<8x52xf32>
    %1066 = arith.addf %1061, %1065 : vector<8x52xf32>
    %c0_489 = arith.constant 0 : index
    %c114 = arith.constant 114 : index
    %c0_490 = arith.constant 0 : index
    %1067 = vector.load %arg3[%c0_489, %c114, %c0_490] : memref<1x126x52xf32, #tpu.memory_space<vmem>>, vector<1x1x52xf32>
    %1068 = vector.shape_cast %1067 : vector<1x1x52xf32> to vector<1x52xf32>
    %1069 = vector.broadcast %1068 : vector<1x52xf32> to vector<8x52xf32>
    %1070 = arith.mulf %952, %1069 : vector<8x52xf32>
    %1071 = arith.addf %1066, %1070 : vector<8x52xf32>
    %c0_491 = arith.constant 0 : index
    %c119 = arith.constant 119 : index
    %c0_492 = arith.constant 0 : index
    %1072 = vector.load %arg3[%c0_491, %c119, %c0_492] : memref<1x126x52xf32, #tpu.memory_space<vmem>>, vector<1x1x52xf32>
    %1073 = vector.shape_cast %1072 : vector<1x1x52xf32> to vector<1x52xf32>
    %1074 = vector.broadcast %1073 : vector<1x52xf32> to vector<8x52xf32>
    %1075 = arith.mulf %953, %1074 : vector<8x52xf32>
    %1076 = arith.addf %1071, %1075 : vector<8x52xf32>
    %c0_493 = arith.constant 0 : index
    %c124 = arith.constant 124 : index
    %c0_494 = arith.constant 0 : index
    %1077 = vector.load %arg3[%c0_493, %c124, %c0_494] : memref<1x126x52xf32, #tpu.memory_space<vmem>>, vector<1x1x52xf32>
    %1078 = vector.shape_cast %1077 : vector<1x1x52xf32> to vector<1x52xf32>
    %1079 = vector.broadcast %1078 : vector<1x52xf32> to vector<8x52xf32>
    %1080 = arith.mulf %954, %1079 : vector<8x52xf32>
    %1081 = arith.addf %1076, %1080 : vector<8x52xf32>
    %1082 = vector.extract_strided_slice %1081 {offsets = [0, 4], sizes = [8, 48], strides = [1, 1]} : vector<8x52xf32> to vector<8x48xf32>
    %1083 = arith.addf %1057, %1082 : vector<8x48xf32>
    %1084 = arith.addf %946, %1083 : vector<8x48xf32>
    %1085 = arith.subf %947, %1083 : vector<8x48xf32>
    %1086 = arith.subf %948, %1083 : vector<8x48xf32>
    %1087 = arith.addf %949, %1083 : vector<8x48xf32>
    %c0_495 = arith.constant 0 : index
    %c125 = arith.constant 125 : index
    %c2_496 = arith.constant 2 : index
    %1088 = vector.load %arg3[%c0_495, %c125, %c2_496] : memref<1x126x52xf32, #tpu.memory_space<vmem>>, vector<1x1x48xf32>
    %1089 = vector.shape_cast %1088 : vector<1x1x48xf32> to vector<1x48xf32>
    %1090 = vector.broadcast %1089 : vector<1x48xf32> to vector<8x48xf32>
    %1091 = arith.addf %1084, %1090 : vector<8x48xf32>
    %c0_497 = arith.constant 0 : index
    %c0_498 = arith.constant 0 : index
    %c0_499 = arith.constant 0 : index
    %c0_500 = arith.constant 0 : index
    %c0_501 = arith.constant 0 : index
    %1092 = vector.load %arg4[%c0_497, %c0_498, %c0_499, %c0_500, %c0_501] : memref<1x1x4x8x48xf32, #tpu.memory_space<vmem>>, vector<1x1x1x8x48xf32>
    %1093 = vector.shape_cast %1092 : vector<1x1x1x8x48xf32> to vector<8x48xf32>
    %1094 = vector.shape_cast %1091 : vector<8x48xf32> to vector<1x1x1x8x48xf32>
    tpu.vector_store %arg4[%c0_497, %c0_498, %c0_499, %c0_500, %c0_501], %1094 {strides = array<i32>} : memref<1x1x4x8x48xf32, #tpu.memory_space<vmem>>, vector<1x1x1x8x48xf32>,
    %1095 = vector.broadcast %1089 : vector<1x48xf32> to vector<8x48xf32>
    %1096 = arith.addf %1085, %1095 : vector<8x48xf32>
    %c0_502 = arith.constant 0 : index
    %c0_503 = arith.constant 0 : index
    %c1_504 = arith.constant 1 : index
    %c0_505 = arith.constant 0 : index
    %c0_506 = arith.constant 0 : index
    %1097 = vector.load %arg4[%c0_502, %c0_503, %c1_504, %c0_505, %c0_506] : memref<1x1x4x8x48xf32, #tpu.memory_space<vmem>>, vector<1x1x1x8x48xf32>
    %1098 = vector.shape_cast %1097 : vector<1x1x1x8x48xf32> to vector<8x48xf32>
    %1099 = vector.shape_cast %1096 : vector<8x48xf32> to vector<1x1x1x8x48xf32>
    tpu.vector_store %arg4[%c0_502, %c0_503, %c1_504, %c0_505, %c0_506], %1099 {strides = array<i32>} : memref<1x1x4x8x48xf32, #tpu.memory_space<vmem>>, vector<1x1x1x8x48xf32>,
    %1100 = vector.broadcast %1089 : vector<1x48xf32> to vector<8x48xf32>
    %1101 = arith.addf %1086, %1100 : vector<8x48xf32>
    %c0_507 = arith.constant 0 : index
    %c0_508 = arith.constant 0 : index
    %c2_509 = arith.constant 2 : index
    %c0_510 = arith.constant 0 : index
    %c0_511 = arith.constant 0 : index
    %1102 = vector.load %arg4[%c0_507, %c0_508, %c2_509, %c0_510, %c0_511] : memref<1x1x4x8x48xf32, #tpu.memory_space<vmem>>, vector<1x1x1x8x48xf32>
    %1103 = vector.shape_cast %1102 : vector<1x1x1x8x48xf32> to vector<8x48xf32>
    %1104 = vector.shape_cast %1101 : vector<8x48xf32> to vector<1x1x1x8x48xf32>
    tpu.vector_store %arg4[%c0_507, %c0_508, %c2_509, %c0_510, %c0_511], %1104 {strides = array<i32>} : memref<1x1x4x8x48xf32, #tpu.memory_space<vmem>>, vector<1x1x1x8x48xf32>,
    %1105 = vector.broadcast %1089 : vector<1x48xf32> to vector<8x48xf32>
    %1106 = arith.addf %1087, %1105 : vector<8x48xf32>
    %c0_512 = arith.constant 0 : index
    %c0_513 = arith.constant 0 : index
    %c3_514 = arith.constant 3 : index
    %c0_515 = arith.constant 0 : index
    %c0_516 = arith.constant 0 : index
    %1107 = vector.load %arg4[%c0_512, %c0_513, %c3_514, %c0_515, %c0_516] : memref<1x1x4x8x48xf32, #tpu.memory_space<vmem>>, vector<1x1x1x8x48xf32>
    %1108 = vector.shape_cast %1107 : vector<1x1x1x8x48xf32> to vector<8x48xf32>
    %1109 = vector.shape_cast %1106 : vector<8x48xf32> to vector<1x1x1x8x48xf32>
    tpu.vector_store %arg4[%c0_512, %c0_513, %c3_514, %c0_515, %c0_516], %1109 {strides = array<i32>} : memref<1x1x4x8x48xf32, #tpu.memory_space<vmem>>, vector<1x1x1x8x48xf32>,
    return
  }
  func.func @transform_0(%arg0: i32, %arg1: i32) -> (i32, i32, i32, i32, i32) {
    %c0_i32 = arith.constant 0 : i32
    %c0_i32_0 = arith.constant 0 : i32
    %c0_i32_1 = arith.constant 0 : i32
    %c0_i32_2 = arith.constant 0 : i32
    return %arg0, %arg1, %c0_i32, %c0_i32_0, %c0_i32_1 : i32, i32, i32, i32, i32
  }
  func.func @transform_1(%arg0: i32, %arg1: i32) -> (i32, i32, i32) {
    %c0_i32 = arith.constant 0 : i32
    %c0_i32_0 = arith.constant 0 : i32
    %c0_i32_1 = arith.constant 0 : i32
    return %arg0, %c0_i32, %c0_i32_0 : i32, i32, i32
  }
  func.func @transform_2(%arg0: i32, %arg1: i32) -> (i32, i32, i32, i32, i32) {
    %c0_i32 = arith.constant 0 : i32
    %c0_i32_0 = arith.constant 0 : i32
    %c0_i32_1 = arith.constant 0 : i32
    %c0_i32_2 = arith.constant 0 : i32
    return %arg0, %arg1, %c0_i32, %c0_i32_0, %c0_i32_1 : i32, i32, i32, i32, i32
  }
}

</mosaic_0001>

<llo_original>
// kernel: tpu_custom_call.1
$region0: #{tpu_custom_call.1}
  #allocation0 [shape = 'u32[]', space=smem, size = 0x4, offset = 0x4, fixed_abs, tag = 'smem constant byte address 0x4 - core index']
  #allocation1 [shape = 'u32[144,128]{1,0:T(1,128)}', space=vmem, size = 0x12000, scoped, tag = 'internal scratch']
  %s0 = inlined_call_operand.vmem [shape: f32[1,2,4,12,52], index: 0, kind: input, shape index: {}]
  %s1 = inlined_call_operand.vmem [shape: f32[1,126,52], index: 1, kind: input, shape index: {}]
  %s2 = inlined_call_operand.hbm [shape: f32[1,2,4,8,48], index: 2, kind: output, shape index: {}]
  %s3 = sld [smem:[#allocation0]]
  $region41: #{tpu_custom_call.1} parent=0
    _
  %s5 = ssub.s32 1, %s3
  %s6 = scalar_select 0, %s5, %s3
  $region1: #{tpu_custom_call.1} parent=0
    #allocation2 [shape = 'u8[32768]{0}', space=vmem, size = 0x8000, scoped, tag = 'output window, operand 0']
    #allocation3 [shape = 's32[2]{0}', space=sflag, size = 0x8, scoped, tag = 'scoped memory for tpu_custom_call.1']
    %7 = vsyncpa [#allocation3], 0
    %s8 = scalar_lea.sflag [#allocation3], 1
    %9 = vsyncpa %s8, 0
    loop: start=0, step=1, limit=4
    $region2: #{tpu_custom_call.1} parent=1 // loop_pre_header
      _
    $region3: #{tpu_custom_call.1} parent=1 // loop_header
      %s11 = sphi 0, %s15
      %p12 = scmp.ge.s32.totalorder %s11, 4
      %s18 = sphi 0, %s30
      %s19 = sphi 0, %s26
      %s20 = sphi 0, %s18
      %s21 = sphi 0, %s19
      %s22 = sphi 0, %s20
      %s23 = sphi 0, %s21
      %s35 = sphi 0, %s37
      %s38 = sphi 0, %s35
      %s39 = sphi 0, %s38
      %s55 = sphi 0, %s39
      %s61 = sphi 0, %s63
      %s64 = sphi 0, %s61
      %s65 = sphi 0, %s64
      %s81 = sphi 0, %s65
      %s89 = sphi 0, %s91
      %s92 = sphi 0, %s89
      %s93 = sphi 0, %s92
      %s109 = sphi 0, %s93
    $region4: #{tpu_custom_call.1} parent=1 // loop_header_branch
      %14 = sbr.rel (%p12) target = $region8
    $region5: #{tpu_custom_call.1} parent=1 // loop_body
      %s16 = ssub.s32 %s11, 1
      %s17 = ssub.s32 %s11, 2
      %s24 = sadd.s32 1, %s19
      %p25 = scmp.ge.s32.totalorder %s24, 2
      %s26 = scalar_select %p25, 0, %s24
      %s27 = sadd.s32 1, %s18
      %s28 = scalar_select %p25, %s27, %s18
      %p29 = scmp.ge.s32.totalorder %s28, 1
      %s30 = scalar_select %p29, 0, %s28
      %s31 = ssub.s32 %s18, %s30
      %s32 = ssub.s32 %s19, %s26
      %s33 = sor.u32 %s31, %s32
      %p34 = scmp.eq.s32.totalorder %s33, 0
      %s36 = sadd.s32 %s35, 1
      %s37 = scalar_select %p34, %s35, %s36
      %p40 = pneg %p34
      %p41 = scmp.eq.s32.totalorder %s11, 1
      %p42 = por %p40, %p41
      %p43 = scmp.ne.s32.totalorder %s35, %s38
      %p44 = scmp.eq.s32.totalorder %s11, 0
      %p45 = por %p43, %p44
      %p46 = scmp.ne.s32.totalorder %s35, %s38
      %p47 = scmp.eq.s32.totalorder %s16, 1
      %p48 = por %p46, %p47
      %p49 = scmp.ne.s32.totalorder %s38, %s39
      %p50 = scmp.eq.s32.totalorder %s16, 0
      %p51 = por %p49, %p50
      %p52 = scmp.ne.s32.totalorder %s38, %s39
      %p53 = scmp.eq.s32.totalorder %s17, 1
      %p54 = por %p52, %p53
      %p56 = scmp.ne.s32.totalorder %s39, %s55
      %p57 = scmp.eq.s32.totalorder %s17, 0
      %p58 = por %p56, %p57
      %s59 = ssub.s32 %s18, %s30
      %p60 = scmp.eq.s32.totalorder %s59, 0
      %s62 = sadd.s32 %s61, 1
      %s63 = scalar_select %p60, %s61, %s62
      %p66 = pneg %p60
      %p67 = scmp.eq.s32.totalorder %s11, 1
      %p68 = por %p66, %p67
      %p69 = scmp.ne.s32.totalorder %s61, %s64
      %p70 = scmp.eq.s32.totalorder %s11, 0
      %p71 = por %p69, %p70
      %p72 = scmp.ne.s32.totalorder %s61, %s64
      %p73 = scmp.eq.s32.totalorder %s16, 1
      %p74 = por %p72, %p73
      %p75 = scmp.ne.s32.totalorder %s64, %s65
      %p76 = scmp.eq.s32.totalorder %s16, 0
      %p77 = por %p75, %p76
      %p78 = scmp.ne.s32.totalorder %s64, %s65
      %p79 = scmp.eq.s32.totalorder %s17, 1
      %p80 = por %p78, %p79
      %p82 = scmp.ne.s32.totalorder %s65, %s81
      %p83 = scmp.eq.s32.totalorder %s17, 0
      %p84 = por %p82, %p83
      %s85 = ssub.s32 %s18, %s30
      %s86 = ssub.s32 %s19, %s26
      %s87 = sor.u32 %s85, %s86
      %p88 = scmp.eq.s32.totalorder %s87, 0
      %s90 = sadd.s32 %s89, 1
      %s91 = scalar_select %p88, %s89, %s90
      %p94 = pneg %p88
      %p95 = scmp.eq.s32.totalorder %s11, 1
      %p96 = por %p94, %p95
      %p97 = scmp.ne.s32.totalorder %s89, %s92
      %p98 = scmp.eq.s32.totalorder %s11, 0
      %p99 = por %p97, %p98
      %p100 = scmp.ne.s32.totalorder %s89, %s92
      %p101 = scmp.eq.s32.totalorder %s16, 1
      %p102 = por %p100, %p101
      %p103 = scmp.ne.s32.totalorder %s92, %s93
      %p104 = scmp.eq.s32.totalorder %s16, 0
      %p105 = por %p103, %p104
      %p106 = scmp.ne.s32.totalorder %s92, %s93
      %p107 = scmp.eq.s32.totalorder %s17, 1
      %p108 = por %p106, %p107
      %p110 = scmp.ne.s32.totalorder %s93, %s109
      %p111 = scmp.eq.s32.totalorder %s17, 0
      %p112 = por %p110, %p111
      %p113 = scmp.le.s32.totalorder 1, %s11
      %p114 = scmp.lt.s32.totalorder %s11, 3
      %p115 = pnand %p113, %p114
      %p116 = pneg %p115
      // Predicated region
      $region9: #{tpu_custom_call.1} parent=5 // pred_check
        _
      $region10: #{tpu_custom_call.1} parent=5 // pred_check_branch
        %118 = sbr.rel (%p115) target = $region12
      $region11: #{tpu_custom_call.1} parent=5 // pred_region
        %s119 = ssub.s32 %s11, 1
        // Predicated region
        $region13: #{tpu_custom_call.1} parent=11 // pred_check
          %p120 = pneg %p77
        $region14: #{tpu_custom_call.1} parent=11 // pred_check_branch
          %122 = sbr.rel (%p120) target = $region16
        $region15: #{tpu_custom_call.1} parent=11 // pred_region
          %p123 = scmp.lt.s32.totalorder %s20, 0
          %s124 = scalar_select %p123, %s20, 0
          %s125 = smul.addr %s124, 16
          %s126 = smul.addr %s125, 8
          %s127 = scalar_lea.vmem %s1, %s126
        $region16: #{tpu_custom_call.1} parent=11 // pred_fallthru
          _
      $region12: #{tpu_custom_call.1} parent=5 // pred_fallthru
        _
      %p128 = scmp.lt.s32.totalorder %s11, 2
      // Predicated region
      $region17: #{tpu_custom_call.1} parent=5 // pred_check
        %p129 = pneg %p128
      $region18: #{tpu_custom_call.1} parent=5 // pred_check_branch
        %131 = sbr.rel (%p129) target = $region20
      $region19: #{tpu_custom_call.1} parent=5 // pred_region
        // Predicated region
        $region21: #{tpu_custom_call.1} parent=19 // pred_check
          %p132 = pneg %p45
        $region22: #{tpu_custom_call.1} parent=19 // pred_check_branch
          %134 = sbr.rel (%p132) target = $region24
        $region23: #{tpu_custom_call.1} parent=19 // pred_region
          %p135 = scmp.lt.s32.totalorder %s18, 0
          %s136 = scalar_select %p135, %s18, 0
          %p137 = scmp.lt.s32.totalorder %s19, 1
          %s138 = scalar_select %p137, %s19, 1
          %s139 = smul.addr %s138, 8
          %s140 = smul.addr %s136, 16
          %s141 = sadd.s32 %s139, %s140
          %s142 = smul.addr %s141, 8
          %s143 = scalar_lea.vmem %s0, %s142
        $region24: #{tpu_custom_call.1} parent=19 // pred_fallthru
          _
      $region20: #{tpu_custom_call.1} parent=5 // pred_fallthru
        _
      %p144 = scmp.le.s32.totalorder 1, %s11
      %p145 = scmp.lt.s32.totalorder %s11, 3
      %p146 = pnand %p144, %p145
      %p147 = pneg %p146
      // Predicated region
      $region25: #{tpu_custom_call.1} parent=5 // pred_check
        _
      $region26: #{tpu_custom_call.1} parent=5 // pred_check_branch
        %149 = sbr.rel (%p146) target = $region28
      $region27: #{tpu_custom_call.1} parent=5 // pred_region
        %s150 = ssub.s32 %s11, 1
        %p151 = scmp.lt.s32.totalorder %s20, 0
        %s152 = scalar_select %p151, %s20, 0
        %p153 = scmp.lt.s32.totalorder %s21, 1
        %s154 = scalar_select %p153, %s21, 1
        %s155 = smul.addr %s154, 8
        %s156 = smul.addr %s152, 16
        %s157 = sadd.s32 %s155, %s156
        %s158 = smul.addr %s157, 8
        %s159 = scalar_lea.vmem %s0, %s158
        %p160 = pneg %p51
        %p161 = pneg %p48
        %p162 = scmp.lt.s32.totalorder %s20, 0
        %s163 = scalar_select %p162, %s20, 0
        %s164 = smul.addr %s163, 16
        %s165 = smul.addr %s164, 8
        %s166 = scalar_lea.vmem %s1, %s165
        %p167 = pneg %p77
        %p168 = pneg %p74
        %p169 = pneg %p105
        %p170 = pneg %p102
        %s171 = sand.u32 %s92, 1
        %s172 = scalar_lea.sflag [#allocation3], %s171
        %s173 = sand.u32 %s92, 1
        %s174 = smul.addr %s173, 32
        %s175 = scalar_lea.vmem [#allocation2], %s174
        %p176 = scmp.lt.s32.totalorder %s20, 0
        %s177 = scalar_select %p176, %s20, 0
        %p178 = scmp.lt.s32.totalorder %s21, 1
        %s179 = scalar_select %p178, %s21, 1
        %s180 = smul.addr %s179, 8
        %s181 = smul.addr %s177, 16
        %s182 = sadd.s32 %s180, %s181
        %s183 = smul.addr %s182, 8
        %s184 = scalar_lea.vmem %s0, %s183
        %p185 = scmp.lt.s32.totalorder %s20, 0
        %s186 = scalar_select %p185, %s20, 0
        %s187 = smul.addr %s186, 16
        %s188 = smul.addr %s187, 8
        %s189 = scalar_lea.vmem %s1, %s188
        %v190 = vld [vmem:[%s184] sm:$0xff]
        %v191 = vld [vmem:[%s184 + $0x8] sm:$0xf]
        %s192 = scalar_lea.vmem %s184, 16
        %v193 = vld [vmem:[%s192] sm:$0xff]
        %v194 = vld [vmem:[%s192 + $0x8] sm:$0xf]
        %s195 = scalar_lea.vmem %s184, 32
        %v196 = vld [vmem:[%s195] sm:$0xff]
        %v197 = vld [vmem:[%s195 + $0x8] sm:$0xf]
        %s198 = scalar_lea.vmem %s184, 48
        %v199 = vld [vmem:[%s198] sm:$0xff]
        %v200 = vld [vmem:[%s198 + $0x8] sm:$0xf]
        %v201 = vld [vmem:[%s189] sm:$0x1]
        %v202 = vlaneseq
        %v203 = vshrl.u32 %v202, 7
        %v204 = vsub.s32 0, %v203
        %v205 = vrot.slane %v201, %v204
        %v206 = vmul.f32 %v190, %v205
        %v207 = vmul.f32 %v191, %v205
        %v208 = vld [vmem:[%s189 + $0x1] sm:$0x1]
        %v209 = vlaneseq
        %v210 = vshrl.u32 %v209, 7
        %v211 = vsub.s32 0, %v210
        %v212 = vrot.slane %v208, %v211
        %v213 = vmul.f32 %v193, %v212
        %v214 = vmul.f32 %v194, %v212
        %v215 = vadd.f32 %v206, %v213
        %v216 = vadd.f32 %v207, %v214
        %v217 = vld [vmem:[%s189 + $0x5] sm:$0x1]
        %v218 = vlaneseq
        %v219 = vshrl.u32 %v218, 7
        %v220 = vsub.s32 0, %v219
        %v221 = vrot.slane %v217, %v220
        %v222 = vmul.f32 %v196, %v221
        %v223 = vmul.f32 %v197, %v221
        %v224 = vadd.f32 %v215, %v222
        %v225 = vadd.f32 %v216, %v223
        %v226 = vld [vmem:[%s189 + $0x6] sm:$0x1]
        %v227 = vlaneseq
        %v228 = vshrl.u32 %v227, 7
        %v229 = vsub.s32 0, %v228
        %v230 = vrot.slane %v226, %v229
        %v231 = vmul.f32 %v199, %v230
        %v232 = vmul.f32 %v200, %v230
        %v233 = vadd.f32 %v224, %v231
        %v234 = vadd.f32 %v225, %v232
        %v235 = vld [vmem:[%s189 + $0xa] sm:$0x1]
        %v236 = vlaneseq
        %v237 = vshrl.u32 %v236, 7
        %v238 = vsub.s32 0, %v237
        %v239 = vrot.slane %v235, %v238
        %v240 = vmul.f32 %v190, %v239
        %v241 = vmul.f32 %v191, %v239
        %vm244 = vcmask 1046528
        %v245 = vrot.slane %v240, 1
        %v246 = vrot.slane %v241, 1
        %v247 = vsel %vm244, %v245, %v246
        %v250 = vadd.f32 %v233, %v247
        %v251 = vadd.f32 %v234, %v246
        %v252 = vld [vmem:[%s189 + $0xb] sm:$0x1]
        %v253 = vlaneseq
        %v254 = vshrl.u32 %v253, 7
        %v255 = vsub.s32 0, %v254
        %v256 = vrot.slane %v252, %v255
        %v257 = vmul.f32 %v193, %v256
        %v258 = vmul.f32 %v194, %v256
        %v261 = vrot.slane %v257, 1
        %v262 = vrot.slane %v258, 1
        %v263 = vsel %vm244, %v261, %v262
        %v266 = vadd.f32 %v250, %v263
        %v267 = vadd.f32 %v251, %v262
        %v268 = vld [vmem:[%s189 + $0xf] sm:$0x1]
        %v269 = vlaneseq
        %v270 = vshrl.u32 %v269, 7
        %v271 = vsub.s32 0, %v270
        %v272 = vrot.slane %v268, %v271
        %v273 = vmul.f32 %v196, %v272
        %v274 = vmul.f32 %v197, %v272
        %v277 = vrot.slane %v273, 1
        %v278 = vrot.slane %v274, 1
        %v279 = vsel %vm244, %v277, %v278
        %v282 = vadd.f32 %v266, %v279
        %v283 = vadd.f32 %v267, %v278
        %v284 = vld [vmem:[%s189 + $0x10] sm:$0x1]
        %v285 = vlaneseq
        %v286 = vshrl.u32 %v285, 7
        %v287 = vsub.s32 0, %v286
        %v288 = vrot.slane %v284, %v287
        %v289 = vmul.f32 %v199, %v288
        %v290 = vmul.f32 %v200, %v288
        %v293 = vrot.slane %v289, 1
        %v294 = vrot.slane %v290, 1
        %v295 = vsel %vm244, %v293, %v294
        %v298 = vadd.f32 %v282, %v295
        %v299 = vadd.f32 %v283, %v294
        %v300 = vld [vmem:[%s189 + $0x14] sm:$0x1]
        %v301 = vlaneseq
        %v302 = vshrl.u32 %v301, 7
        %v303 = vsub.s32 0, %v302
        %v304 = vrot.slane %v300, %v303
        %v305 = vmul.f32 %v190, %v304
        %v306 = vmul.f32 %v191, %v304
        %vm309 = vcmask 1045504
        %v310 = vrot.slane %v305, 2
        %v311 = vrot.slane %v306, 2
        %v312 = vsel %vm309, %v310, %v311
        %v315 = vadd.f32 %v298, %v312
        %v316 = vadd.f32 %v299, %v311
        %v317 = vld [vmem:[%s189 + $0x15] sm:$0x1]
        %v318 = vlaneseq
        %v319 = vshrl.u32 %v318, 7
        %v320 = vsub.s32 0, %v319
        %v321 = vrot.slane %v317, %v320
        %v322 = vmul.f32 %v193, %v321
        %v323 = vmul.f32 %v194, %v321
        %v326 = vrot.slane %v322, 2
        %v327 = vrot.slane %v323, 2
        %v328 = vsel %vm309, %v326, %v327
        %v331 = vadd.f32 %v315, %v328
        %v332 = vadd.f32 %v316, %v327
        %v333 = vld [vmem:[%s189 + $0x2] sm:$0x1]
        %v334 = vlaneseq
        %v335 = vshrl.u32 %v334, 7
        %v336 = vsub.s32 0, %v335
        %v337 = vrot.slane %v333, %v336
        %v338 = vmul.f32 %v190, %v337
        %v339 = vmul.f32 %v191, %v337
        %v340 = vld [vmem:[%s189 + $0x3] sm:$0x1]
        %v341 = vlaneseq
        %v342 = vshrl.u32 %v341, 7
        %v343 = vsub.s32 0, %v342
        %v344 = vrot.slane %v340, %v343
        %v345 = vmul.f32 %v193, %v344
        %v346 = vmul.f32 %v194, %v344
        %v347 = vadd.f32 %v338, %v345
        %v348 = vadd.f32 %v339, %v346
        %v349 = vld [vmem:[%s189 + $0x7] sm:$0x1]
        %v350 = vlaneseq
        %v351 = vshrl.u32 %v350, 7
        %v352 = vsub.s32 0, %v351
        %v353 = vrot.slane %v349, %v352
        %v354 = vmul.f32 %v196, %v353
        %v355 = vmul.f32 %v197, %v353
        %v356 = vadd.f32 %v347, %v354
        %v357 = vadd.f32 %v348, %v355
        %v358 = vld [vmem:[%s189 + $0x8] sm:$0x1]
        %v359 = vlaneseq
        %v360 = vshrl.u32 %v359, 7
        %v361 = vsub.s32 0, %v360
        %v362 = vrot.slane %v358, %v361
        %v363 = vmul.f32 %v199, %v362
        %v364 = vmul.f32 %v200, %v362
        %v365 = vadd.f32 %v356, %v363
        %v366 = vadd.f32 %v357, %v364
        %v367 = vld [vmem:[%s189 + $0xc] sm:$0x1]
        %v368 = vlaneseq
        %v369 = vshrl.u32 %v368, 7
        %v370 = vsub.s32 0, %v369
        %v371 = vrot.slane %v367, %v370
        %v372 = vmul.f32 %v190, %v371
        %v373 = vmul.f32 %v191, %v371
        %v376 = vrot.slane %v372, 1
        %v377 = vrot.slane %v373, 1
        %v378 = vsel %vm244, %v376, %v377
        %v381 = vadd.f32 %v365, %v378
        %v382 = vadd.f32 %v366, %v377
        %v383 = vld [vmem:[%s189 + $0xd] sm:$0x1]
        %v384 = vlaneseq
        %v385 = vshrl.u32 %v384, 7
        %v386 = vsub.s32 0, %v385
        %v387 = vrot.slane %v383, %v386
        %v388 = vmul.f32 %v193, %v387
        %v389 = vmul.f32 %v194, %v387
        %v392 = vrot.slane %v388, 1
        %v393 = vrot.slane %v389, 1
        %v394 = vsel %vm244, %v392, %v393
        %v397 = vadd.f32 %v381, %v394
        %v398 = vadd.f32 %v382, %v393
        %v399 = vld [vmem:[%s189 + $0x11] sm:$0x1]
        %v400 = vlaneseq
        %v401 = vshrl.u32 %v400, 7
        %v402 = vsub.s32 0, %v401
        %v403 = vrot.slane %v399, %v402
        %v404 = vmul.f32 %v196, %v403
        %v405 = vmul.f32 %v197, %v403
        %v408 = vrot.slane %v404, 1
        %v409 = vrot.slane %v405, 1
        %v410 = vsel %vm244, %v408, %v409
        %v413 = vadd.f32 %v397, %v410
        %v414 = vadd.f32 %v398, %v409
        %v415 = vld [vmem:[%s189 + $0x12] sm:$0x1]
        %v416 = vlaneseq
        %v417 = vshrl.u32 %v416, 7
        %v418 = vsub.s32 0, %v417
        %v419 = vrot.slane %v415, %v418
        %v420 = vmul.f32 %v199, %v419
        %v421 = vmul.f32 %v200, %v419
        %v424 = vrot.slane %v420, 1
        %v425 = vrot.slane %v421, 1
        %v426 = vsel %vm244, %v424, %v425
        %v429 = vadd.f32 %v413, %v426
        %v430 = vadd.f32 %v414, %v425
        %v431 = vld [vmem:[%s189 + $0x16] sm:$0x1]
        %v432 = vlaneseq
        %v433 = vshrl.u32 %v432, 7
        %v434 = vsub.s32 0, %v433
        %v435 = vrot.slane %v431, %v434
        %v436 = vmul.f32 %v190, %v435
        %v437 = vmul.f32 %v191, %v435
        %v440 = vrot.slane %v436, 2
        %v441 = vrot.slane %v437, 2
        %v442 = vsel %vm309, %v440, %v441
        %v445 = vadd.f32 %v429, %v442
        %v446 = vadd.f32 %v430, %v441
        %v447 = vld [vmem:[%s189 + $0x17] sm:$0x1]
        %v448 = vlaneseq
        %v449 = vshrl.u32 %v448, 7
        %v450 = vsub.s32 0, %v449
        %v451 = vrot.slane %v447, %v450
        %v452 = vmul.f32 %v193, %v451
        %v453 = vmul.f32 %v194, %v451
        %v456 = vrot.slane %v452, 2
        %v457 = vrot.slane %v453, 2
        %v458 = vsel %vm309, %v456, %v457
        %v461 = vadd.f32 %v445, %v458
        %v462 = vadd.f32 %v446, %v457
        %465 = vrot.lane.b32.xlu0 %v461, 127
        %v466 = vpop.permute.xlu0 %465
        %467 = vrot.lane.b32.xlu0 %v462, 127
        %v468 = vpop.permute.xlu0 %467
        %v471 = vadd.f32 %v331, %v466
        %v472 = vadd.f32 %v332, %v468
        %v473 = vld [vmem:[%s189 + $0x4] sm:$0x1]
        %v474 = vlaneseq
        %v475 = vshrl.u32 %v474, 7
        %v476 = vsub.s32 0, %v475
        %v477 = vrot.slane %v473, %v476
        %v478 = vmul.f32 %v190, %v477
        %v479 = vmul.f32 %v191, %v477
        %v480 = vld [vmem:[%s189 + $0x9] sm:$0x1]
        %v481 = vlaneseq
        %v482 = vshrl.u32 %v481, 7
        %v483 = vsub.s32 0, %v482
        %v484 = vrot.slane %v480, %v483
        %v485 = vmul.f32 %v196, %v484
        %v486 = vmul.f32 %v197, %v484
        %v487 = vadd.f32 %v478, %v485
        %v488 = vadd.f32 %v479, %v486
        %v489 = vld [vmem:[%s189 + $0xe] sm:$0x1]
        %v490 = vlaneseq
        %v491 = vshrl.u32 %v490, 7
        %v492 = vsub.s32 0, %v491
        %v493 = vrot.slane %v489, %v492
        %v494 = vmul.f32 %v190, %v493
        %v495 = vmul.f32 %v191, %v493
        %v498 = vrot.slane %v494, 1
        %v499 = vrot.slane %v495, 1
        %v500 = vsel %vm244, %v498, %v499
        %v503 = vadd.f32 %v487, %v500
        %v504 = vadd.f32 %v488, %v499
        %v505 = vld [vmem:[%s189 + $0x13] sm:$0x1]
        %v506 = vlaneseq
        %v507 = vshrl.u32 %v506, 7
        %v508 = vsub.s32 0, %v507
        %v509 = vrot.slane %v505, %v508
        %v510 = vmul.f32 %v196, %v509
        %v511 = vmul.f32 %v197, %v509
        %v514 = vrot.slane %v510, 1
        %v515 = vrot.slane %v511, 1
        %v516 = vsel %vm244, %v514, %v515
        %v519 = vadd.f32 %v503, %v516
        %v520 = vadd.f32 %v504, %v515
        %v521 = vld [vmem:[%s189 + $0x18] sm:$0x1]
        %v522 = vlaneseq
        %v523 = vshrl.u32 %v522, 7
        %v524 = vsub.s32 0, %v523
        %v525 = vrot.slane %v521, %v524
        %v526 = vmul.f32 %v190, %v525
        %v527 = vmul.f32 %v191, %v525
        %v530 = vrot.slane %v526, 2
        %v531 = vrot.slane %v527, 2
        %v532 = vsel %vm309, %v530, %v531
        %v535 = vadd.f32 %v519, %v532
        %v536 = vadd.f32 %v520, %v531
        %539 = vrot.lane.b32.xlu0 %v535, 126
        %v540 = vpop.permute.xlu0 %539
        %541 = vrot.lane.b32.xlu0 %v536, 126
        %v542 = vpop.permute.xlu0 %541
        %v545 = vadd.f32 %v471, %v540
        %v546 = vadd.f32 %v472, %v542
        %v547 = vmul.f32 %v193, %v205
        %v548 = vmul.f32 %v194, %v205
        %v549 = vmul.f32 %v199, %v221
        %v550 = vmul.f32 %v200, %v221
        %v551 = vadd.f32 %v547, %v549
        %v552 = vadd.f32 %v548, %v550
        %v553 = vmul.f32 %v193, %v239
        %v554 = vmul.f32 %v194, %v239
        %v557 = vrot.slane %v553, 1
        %v558 = vrot.slane %v554, 1
        %v559 = vsel %vm244, %v557, %v558
        %v562 = vadd.f32 %v551, %v559
        %v563 = vadd.f32 %v552, %v558
        %v564 = vmul.f32 %v199, %v272
        %v565 = vmul.f32 %v200, %v272
        %v568 = vrot.slane %v564, 1
        %v569 = vrot.slane %v565, 1
        %v570 = vsel %vm244, %v568, %v569
        %v573 = vadd.f32 %v562, %v570
        %v574 = vadd.f32 %v563, %v569
        %v575 = vmul.f32 %v193, %v304
        %v576 = vmul.f32 %v194, %v304
        %v579 = vrot.slane %v575, 2
        %v580 = vrot.slane %v576, 2
        %v581 = vsel %vm309, %v579, %v580
        %v584 = vadd.f32 %v573, %v581
        %v585 = vadd.f32 %v574, %v580
        %v586 = vmul.f32 %v190, %v212
        %v587 = vmul.f32 %v191, %v212
        %v588 = vmul.f32 %v193, %v337
        %v589 = vmul.f32 %v194, %v337
        %v590 = vadd.f32 %v586, %v588
        %v591 = vadd.f32 %v587, %v589
        %v592 = vmul.f32 %v196, %v230
        %v593 = vmul.f32 %v197, %v230
        %v594 = vadd.f32 %v590, %v592
        %v595 = vadd.f32 %v591, %v593
        %v596 = vmul.f32 %v199, %v353
        %v597 = vmul.f32 %v200, %v353
        %v598 = vadd.f32 %v594, %v596
        %v599 = vadd.f32 %v595, %v597
        %v600 = vmul.f32 %v190, %v256
        %v601 = vmul.f32 %v191, %v256
        %v604 = vrot.slane %v600, 1
        %v605 = vrot.slane %v601, 1
        %v606 = vsel %vm244, %v604, %v605
        %v609 = vadd.f32 %v598, %v606
        %v610 = vadd.f32 %v599, %v605
        %v611 = vmul.f32 %v193, %v371
        %v612 = vmul.f32 %v194, %v371
        %v615 = vrot.slane %v611, 1
        %v616 = vrot.slane %v612, 1
        %v617 = vsel %vm244, %v615, %v616
        %v620 = vadd.f32 %v609, %v617
        %v621 = vadd.f32 %v610, %v616
        %v622 = vmul.f32 %v196, %v288
        %v623 = vmul.f32 %v197, %v288
        %v626 = vrot.slane %v622, 1
        %v627 = vrot.slane %v623, 1
        %v628 = vsel %vm244, %v626, %v627
        %v631 = vadd.f32 %v620, %v628
        %v632 = vadd.f32 %v621, %v627
        %v633 = vmul.f32 %v199, %v403
        %v634 = vmul.f32 %v200, %v403
        %v637 = vrot.slane %v633, 1
        %v638 = vrot.slane %v634, 1
        %v639 = vsel %vm244, %v637, %v638
        %v642 = vadd.f32 %v631, %v639
        %v643 = vadd.f32 %v632, %v638
        %v644 = vmul.f32 %v190, %v321
        %v645 = vmul.f32 %v191, %v321
        %v648 = vrot.slane %v644, 2
        %v649 = vrot.slane %v645, 2
        %v650 = vsel %vm309, %v648, %v649
        %v653 = vadd.f32 %v642, %v650
        %v654 = vadd.f32 %v643, %v649
        %v655 = vmul.f32 %v193, %v435
        %v656 = vmul.f32 %v194, %v435
        %v659 = vrot.slane %v655, 2
        %v660 = vrot.slane %v656, 2
        %v661 = vsel %vm309, %v659, %v660
        %v664 = vadd.f32 %v653, %v661
        %v665 = vadd.f32 %v654, %v660
        %668 = vrot.lane.b32.xlu0 %v664, 127
        %v669 = vpop.permute.xlu0 %668
        %670 = vrot.lane.b32.xlu0 %v665, 127
        %v671 = vpop.permute.xlu0 %670
        %v674 = vadd.f32 %v584, %v669
        %v675 = vadd.f32 %v585, %v671
        %v676 = vmul.f32 %v190, %v344
        %v677 = vmul.f32 %v191, %v344
        %v678 = vmul.f32 %v193, %v477
        %v679 = vmul.f32 %v194, %v477
        %v680 = vadd.f32 %v676, %v678
        %v681 = vadd.f32 %v677, %v679
        %v682 = vmul.f32 %v196, %v362
        %v683 = vmul.f32 %v197, %v362
        %v684 = vadd.f32 %v680, %v682
        %v685 = vadd.f32 %v681, %v683
        %v686 = vmul.f32 %v199, %v484
        %v687 = vmul.f32 %v200, %v484
        %v688 = vadd.f32 %v684, %v686
        %v689 = vadd.f32 %v685, %v687
        %v690 = vmul.f32 %v190, %v387
        %v691 = vmul.f32 %v191, %v387
        %v694 = vrot.slane %v690, 1
        %v695 = vrot.slane %v691, 1
        %v696 = vsel %vm244, %v694, %v695
        %v699 = vadd.f32 %v688, %v696
        %v700 = vadd.f32 %v689, %v695
        %v701 = vmul.f32 %v193, %v493
        %v702 = vmul.f32 %v194, %v493
        %v705 = vrot.slane %v701, 1
        %v706 = vrot.slane %v702, 1
        %v707 = vsel %vm244, %v705, %v706
        %v710 = vadd.f32 %v699, %v707
        %v711 = vadd.f32 %v700, %v706
        %v712 = vmul.f32 %v196, %v419
        %v713 = vmul.f32 %v197, %v419
        %v716 = vrot.slane %v712, 1
        %v717 = vrot.slane %v713, 1
        %v718 = vsel %vm244, %v716, %v717
        %v721 = vadd.f32 %v710, %v718
        %v722 = vadd.f32 %v711, %v717
        %v723 = vmul.f32 %v199, %v509
        %v724 = vmul.f32 %v200, %v509
        %v727 = vrot.slane %v723, 1
        %v728 = vrot.slane %v724, 1
        %v729 = vsel %vm244, %v727, %v728
        %v732 = vadd.f32 %v721, %v729
        %v733 = vadd.f32 %v722, %v728
        %v734 = vmul.f32 %v190, %v451
        %v735 = vmul.f32 %v191, %v451
        %v738 = vrot.slane %v734, 2
        %v739 = vrot.slane %v735, 2
        %v740 = vsel %vm309, %v738, %v739
        %v743 = vadd.f32 %v732, %v740
        %v744 = vadd.f32 %v733, %v739
        %v745 = vmul.f32 %v193, %v525
        %v746 = vmul.f32 %v194, %v525
        %v749 = vrot.slane %v745, 2
        %v750 = vrot.slane %v746, 2
        %v751 = vsel %vm309, %v749, %v750
        %v754 = vadd.f32 %v743, %v751
        %v755 = vadd.f32 %v744, %v750
        %758 = vrot.lane.b32.xlu0 %v754, 126
        %v759 = vpop.permute.xlu0 %758
        %760 = vrot.lane.b32.xlu0 %v755, 126
        %v761 = vpop.permute.xlu0 %760
        %v764 = vadd.f32 %v674, %v759
        %v765 = vadd.f32 %v675, %v761
        %v766 = vmul.f32 %v196, %v205
        %v767 = vmul.f32 %v197, %v205
        %v768 = vmul.f32 %v199, %v212
        %v769 = vmul.f32 %v200, %v212
        %v770 = vadd.f32 %v766, %v768
        %v771 = vadd.f32 %v767, %v769
        %v772 = vmul.f32 %v190, %v221
        %v773 = vmul.f32 %v191, %v221
        %v776 = vrot.slane %v772, 1
        %v777 = vrot.slane %v773, 1
        %v778 = vsel %vm244, %v776, %v777
        %v781 = vadd.f32 %v770, %v778
        %v782 = vadd.f32 %v771, %v777
        %v783 = vmul.f32 %v193, %v230
        %v784 = vmul.f32 %v194, %v230
        %v787 = vrot.slane %v783, 1
        %v788 = vrot.slane %v784, 1
        %v789 = vsel %vm244, %v787, %v788
        %v792 = vadd.f32 %v781, %v789
        %v793 = vadd.f32 %v782, %v788
        %v794 = vmul.f32 %v196, %v239
        %v795 = vmul.f32 %v197, %v239
        %v798 = vrot.slane %v794, 1
        %v799 = vrot.slane %v795, 1
        %v800 = vsel %vm244, %v798, %v799
        %v803 = vadd.f32 %v792, %v800
        %v804 = vadd.f32 %v793, %v799
        %v805 = vmul.f32 %v199, %v256
        %v806 = vmul.f32 %v200, %v256
        %v809 = vrot.slane %v805, 1
        %v810 = vrot.slane %v806, 1
        %v811 = vsel %vm244, %v809, %v810
        %v814 = vadd.f32 %v803, %v811
        %v815 = vadd.f32 %v804, %v810
        %v816 = vmul.f32 %v190, %v272
        %v817 = vmul.f32 %v191, %v272
        %v820 = vrot.slane %v816, 2
        %v821 = vrot.slane %v817, 2
        %v822 = vsel %vm309, %v820, %v821
        %v825 = vadd.f32 %v814, %v822
        %v826 = vadd.f32 %v815, %v821
        %v827 = vmul.f32 %v193, %v288
        %v828 = vmul.f32 %v194, %v288
        %v831 = vrot.slane %v827, 2
        %v832 = vrot.slane %v828, 2
        %v833 = vsel %vm309, %v831, %v832
        %v836 = vadd.f32 %v825, %v833
        %v837 = vadd.f32 %v826, %v832
        %v838 = vmul.f32 %v196, %v304
        %v839 = vmul.f32 %v197, %v304
        %v842 = vrot.slane %v838, 2
        %v843 = vrot.slane %v839, 2
        %v844 = vsel %vm309, %v842, %v843
        %v847 = vadd.f32 %v836, %v844
        %v848 = vadd.f32 %v837, %v843
        %v849 = vmul.f32 %v199, %v321
        %v850 = vmul.f32 %v200, %v321
        %v853 = vrot.slane %v849, 2
        %v854 = vrot.slane %v850, 2
        %v855 = vsel %vm309, %v853, %v854
        %v858 = vadd.f32 %v847, %v855
        %v859 = vadd.f32 %v848, %v854
        %v860 = vmul.f32 %v196, %v337
        %v861 = vmul.f32 %v197, %v337
        %v862 = vmul.f32 %v199, %v344
        %v863 = vmul.f32 %v200, %v344
        %v864 = vadd.f32 %v860, %v862
        %v865 = vadd.f32 %v861, %v863
        %v866 = vmul.f32 %v190, %v353
        %v867 = vmul.f32 %v191, %v353
        %v870 = vrot.slane %v866, 1
        %v871 = vrot.slane %v867, 1
        %v872 = vsel %vm244, %v870, %v871
        %v875 = vadd.f32 %v864, %v872
        %v876 = vadd.f32 %v865, %v871
        %v877 = vmul.f32 %v193, %v362
        %v878 = vmul.f32 %v194, %v362
        %v881 = vrot.slane %v877, 1
        %v882 = vrot.slane %v878, 1
        %v883 = vsel %vm244, %v881, %v882
        %v886 = vadd.f32 %v875, %v883
        %v887 = vadd.f32 %v876, %v882
        %v888 = vmul.f32 %v196, %v371
        %v889 = vmul.f32 %v197, %v371
        %v892 = vrot.slane %v888, 1
        %v893 = vrot.slane %v889, 1
        %v894 = vsel %vm244, %v892, %v893
        %v897 = vadd.f32 %v886, %v894
        %v898 = vadd.f32 %v887, %v893
        %v899 = vmul.f32 %v199, %v387
        %v900 = vmul.f32 %v200, %v387
        %v903 = vrot.slane %v899, 1
        %v904 = vrot.slane %v900, 1
        %v905 = vsel %vm244, %v903, %v904
        %v908 = vadd.f32 %v897, %v905
        %v909 = vadd.f32 %v898, %v904
        %v910 = vmul.f32 %v190, %v403
        %v911 = vmul.f32 %v191, %v403
        %v914 = vrot.slane %v910, 2
        %v915 = vrot.slane %v911, 2
        %v916 = vsel %vm309, %v914, %v915
        %v919 = vadd.f32 %v908, %v916
        %v920 = vadd.f32 %v909, %v915
        %v921 = vmul.f32 %v193, %v419
        %v922 = vmul.f32 %v194, %v419
        %v925 = vrot.slane %v921, 2
        %v926 = vrot.slane %v922, 2
        %v927 = vsel %vm309, %v925, %v926
        %v930 = vadd.f32 %v919, %v927
        %v931 = vadd.f32 %v920, %v926
        %v932 = vmul.f32 %v196, %v435
        %v933 = vmul.f32 %v197, %v435
        %v936 = vrot.slane %v932, 2
        %v937 = vrot.slane %v933, 2
        %v938 = vsel %vm309, %v936, %v937
        %v941 = vadd.f32 %v930, %v938
        %v942 = vadd.f32 %v931, %v937
        %v943 = vmul.f32 %v199, %v451
        %v944 = vmul.f32 %v200, %v451
        %v947 = vrot.slane %v943, 2
        %v948 = vrot.slane %v944, 2
        %v949 = vsel %vm309, %v947, %v948
        %v952 = vadd.f32 %v941, %v949
        %v953 = vadd.f32 %v942, %v948
        %956 = vrot.lane.b32.xlu0 %v952, 127
        %v957 = vpop.permute.xlu0 %956
        %958 = vrot.lane.b32.xlu0 %v953, 127
        %v959 = vpop.permute.xlu0 %958
        %v962 = vadd.f32 %v858, %v957
        %v963 = vadd.f32 %v859, %v959
        %v964 = vmul.f32 %v196, %v477
        %v965 = vmul.f32 %v197, %v477
        %v966 = vmul.f32 %v190, %v484
        %v967 = vmul.f32 %v191, %v484
        %v970 = vrot.slane %v966, 1
        %v971 = vrot.slane %v967, 1
        %v972 = vsel %vm244, %v970, %v971
        %v975 = vadd.f32 %v964, %v972
        %v976 = vadd.f32 %v965, %v971
        %v977 = vmul.f32 %v196, %v493
        %v978 = vmul.f32 %v197, %v493
        %v981 = vrot.slane %v977, 1
        %v982 = vrot.slane %v978, 1
        %v983 = vsel %vm244, %v981, %v982
        %v986 = vadd.f32 %v975, %v983
        %v987 = vadd.f32 %v976, %v982
        %v988 = vmul.f32 %v190, %v509
        %v989 = vmul.f32 %v191, %v509
        %v992 = vrot.slane %v988, 2
        %v993 = vrot.slane %v989, 2
        %v994 = vsel %vm309, %v992, %v993
        %v997 = vadd.f32 %v986, %v994
        %v998 = vadd.f32 %v987, %v993
        %v999 = vmul.f32 %v196, %v525
        %v1000 = vmul.f32 %v197, %v525
        %v1003 = vrot.slane %v999, 2
        %v1004 = vrot.slane %v1000, 2
        %v1005 = vsel %vm309, %v1003, %v1004
        %v1008 = vadd.f32 %v997, %v1005
        %v1009 = vadd.f32 %v998, %v1004
        %1012 = vrot.lane.b32.xlu0 %v1008, 126
        %v1013 = vpop.permute.xlu0 %1012
        %1014 = vrot.lane.b32.xlu0 %v1009, 126
        %v1015 = vpop.permute.xlu0 %1014
        %v1018 = vadd.f32 %v962, %v1013
        %v1019 = vadd.f32 %v963, %v1015
        %v1020 = vmul.f32 %v199, %v205
        %v1021 = vmul.f32 %v200, %v205
        %v1022 = vmul.f32 %v193, %v221
        %v1023 = vmul.f32 %v194, %v221
        %v1026 = vrot.slane %v1022, 1
        %v1027 = vrot.slane %v1023, 1
        %v1028 = vsel %vm244, %v1026, %v1027
        %v1031 = vadd.f32 %v1020, %v1028
        %v1032 = vadd.f32 %v1021, %v1027
        %v1033 = vmul.f32 %v199, %v239
        %v1034 = vmul.f32 %v200, %v239
        %v1037 = vrot.slane %v1033, 1
        %v1038 = vrot.slane %v1034, 1
        %v1039 = vsel %vm244, %v1037, %v1038
        %v1042 = vadd.f32 %v1031, %v1039
        %v1043 = vadd.f32 %v1032, %v1038
        %v1044 = vmul.f32 %v193, %v272
        %v1045 = vmul.f32 %v194, %v272
        %v1048 = vrot.slane %v1044, 2
        %v1049 = vrot.slane %v1045, 2
        %v1050 = vsel %vm309, %v1048, %v1049
        %v1053 = vadd.f32 %v1042, %v1050
        %v1054 = vadd.f32 %v1043, %v1049
        %v1055 = vmul.f32 %v199, %v304
        %v1056 = vmul.f32 %v200, %v304
        %v1059 = vrot.slane %v1055, 2
        %v1060 = vrot.slane %v1056, 2
        %v1061 = vsel %vm309, %v1059, %v1060
        %v1064 = vadd.f32 %v1053, %v1061
        %v1065 = vadd.f32 %v1054, %v1060
        %v1066 = vmul.f32 %v196, %v212
        %v1067 = vmul.f32 %v197, %v212
        %v1068 = vmul.f32 %v199, %v337
        %v1069 = vmul.f32 %v200, %v337
        %v1070 = vadd.f32 %v1066, %v1068
        %v1071 = vadd.f32 %v1067, %v1069
        %v1072 = vmul.f32 %v190, %v230
        %v1073 = vmul.f32 %v191, %v230
        %v1076 = vrot.slane %v1072, 1
        %v1077 = vrot.slane %v1073, 1
        %v1078 = vsel %vm244, %v1076, %v1077
        %v1081 = vadd.f32 %v1070, %v1078
        %v1082 = vadd.f32 %v1071, %v1077
        %v1083 = vmul.f32 %v193, %v353
        %v1084 = vmul.f32 %v194, %v353
        %v1087 = vrot.slane %v1083, 1
        %v1088 = vrot.slane %v1084, 1
        %v1089 = vsel %vm244, %v1087, %v1088
        %v1092 = vadd.f32 %v1081, %v1089
        %v1093 = vadd.f32 %v1082, %v1088
        %v1094 = vmul.f32 %v196, %v256
        %v1095 = vmul.f32 %v197, %v256
        %v1098 = vrot.slane %v1094, 1
        %v1099 = vrot.slane %v1095, 1
        %v1100 = vsel %vm244, %v1098, %v1099
        %v1103 = vadd.f32 %v1092, %v1100
        %v1104 = vadd.f32 %v1093, %v1099
        %v1105 = vmul.f32 %v199, %v371
        %v1106 = vmul.f32 %v200, %v371
        %v1109 = vrot.slane %v1105, 1
        %v1110 = vrot.slane %v1106, 1
        %v1111 = vsel %vm244, %v1109, %v1110
        %v1114 = vadd.f32 %v1103, %v1111
        %v1115 = vadd.f32 %v1104, %v1110
        %v1116 = vmul.f32 %v190, %v288
        %v1117 = vmul.f32 %v191, %v288
        %v1120 = vrot.slane %v1116, 2
        %v1121 = vrot.slane %v1117, 2
        %v1122 = vsel %vm309, %v1120, %v1121
        %v1125 = vadd.f32 %v1114, %v1122
        %v1126 = vadd.f32 %v1115, %v1121
        %v1127 = vmul.f32 %v193, %v403
        %v1128 = vmul.f32 %v194, %v403
        %v1131 = vrot.slane %v1127, 2
        %v1132 = vrot.slane %v1128, 2
        %v1133 = vsel %vm309, %v1131, %v1132
        %v1136 = vadd.f32 %v1125, %v1133
        %v1137 = vadd.f32 %v1126, %v1132
        %v1138 = vmul.f32 %v196, %v321
        %v1139 = vmul.f32 %v197, %v321
        %v1142 = vrot.slane %v1138, 2
        %v1143 = vrot.slane %v1139, 2
        %v1144 = vsel %vm309, %v1142, %v1143
        %v1147 = vadd.f32 %v1136, %v1144
        %v1148 = vadd.f32 %v1137, %v1143
        %v1149 = vmul.f32 %v199, %v435
        %v1150 = vmul.f32 %v200, %v435
        %v1153 = vrot.slane %v1149, 2
        %v1154 = vrot.slane %v1150, 2
        %v1155 = vsel %vm309, %v1153, %v1154
        %v1158 = vadd.f32 %v1147, %v1155
        %v1159 = vadd.f32 %v1148, %v1154
        %1162 = vrot.lane.b32.xlu0 %v1158, 127
        %v1163 = vpop.permute.xlu0 %1162
        %1164 = vrot.lane.b32.xlu0 %v1159, 127
        %v1165 = vpop.permute.xlu0 %1164
        %v1168 = vadd.f32 %v1064, %v1163
        %v1169 = vadd.f32 %v1065, %v1165
        %v1170 = vmul.f32 %v196, %v344
        %v1171 = vmul.f32 %v197, %v344
        %v1172 = vmul.f32 %v199, %v477
        %v1173 = vmul.f32 %v200, %v477
        %v1174 = vadd.f32 %v1170, %v1172
        %v1175 = vadd.f32 %v1171, %v1173
        %v1176 = vmul.f32 %v190, %v362
        %v1177 = vmul.f32 %v191, %v362
        %v1180 = vrot.slane %v1176, 1
        %v1181 = vrot.slane %v1177, 1
        %v1182 = vsel %vm244, %v1180, %v1181
        %v1185 = vadd.f32 %v1174, %v1182
        %v1186 = vadd.f32 %v1175, %v1181
        %v1187 = vmul.f32 %v193, %v484
        %v1188 = vmul.f32 %v194, %v484
        %v1191 = vrot.slane %v1187, 1
        %v1192 = vrot.slane %v1188, 1
        %v1193 = vsel %vm244, %v1191, %v1192
        %v1196 = vadd.f32 %v1185, %v1193
        %v1197 = vadd.f32 %v1186, %v1192
        %v1198 = vmul.f32 %v196, %v387
        %v1199 = vmul.f32 %v197, %v387
        %v1202 = vrot.slane %v1198, 1
        %v1203 = vrot.slane %v1199, 1
        %v1204 = vsel %vm244, %v1202, %v1203
        %v1207 = vadd.f32 %v1196, %v1204
        %v1208 = vadd.f32 %v1197, %v1203
        %v1209 = vmul.f32 %v199, %v493
        %v1210 = vmul.f32 %v200, %v493
        %v1213 = vrot.slane %v1209, 1
        %v1214 = vrot.slane %v1210, 1
        %v1215 = vsel %vm244, %v1213, %v1214
        %v1218 = vadd.f32 %v1207, %v1215
        %v1219 = vadd.f32 %v1208, %v1214
        %v1220 = vmul.f32 %v190, %v419
        %v1221 = vmul.f32 %v191, %v419
        %v1224 = vrot.slane %v1220, 2
        %v1225 = vrot.slane %v1221, 2
        %v1226 = vsel %vm309, %v1224, %v1225
        %v1229 = vadd.f32 %v1218, %v1226
        %v1230 = vadd.f32 %v1219, %v1225
        %v1231 = vmul.f32 %v193, %v509
        %v1232 = vmul.f32 %v194, %v509
        %v1235 = vrot.slane %v1231, 2
        %v1236 = vrot.slane %v1232, 2
        %v1237 = vsel %vm309, %v1235, %v1236
        %v1240 = vadd.f32 %v1229, %v1237
        %v1241 = vadd.f32 %v1230, %v1236
        %v1242 = vmul.f32 %v196, %v451
        %v1243 = vmul.f32 %v197, %v451
        %v1246 = vrot.slane %v1242, 2
        %v1247 = vrot.slane %v1243, 2
        %v1248 = vsel %vm309, %v1246, %v1247
        %v1251 = vadd.f32 %v1240, %v1248
        %v1252 = vadd.f32 %v1241, %v1247
        %v1253 = vmul.f32 %v199, %v525
        %v1254 = vmul.f32 %v200, %v525
        %v1257 = vrot.slane %v1253, 2
        %v1258 = vrot.slane %v1254, 2
        %v1259 = vsel %vm309, %v1257, %v1258
        %v1262 = vadd.f32 %v1251, %v1259
        %v1263 = vadd.f32 %v1252, %v1258
        %1266 = vrot.lane.b32.xlu0 %v1262, 126
        %v1267 = vpop.permute.xlu0 %1266
        %1268 = vrot.lane.b32.xlu0 %v1263, 126
        %v1269 = vpop.permute.xlu0 %1268
        %v1272 = vadd.f32 %v1168, %v1267
        %v1273 = vadd.f32 %v1169, %v1269
        %v1274 = vadd.f32 %v190, %v196
        %v1275 = vadd.f32 %v191, %v197
        %v1276 = vsub.f32 %v190, %v196
        %v1277 = vsub.f32 %v191, %v197
        %v1278 = vadd.f32 %v193, %v199
        %v1279 = vadd.f32 %v194, %v200
        %v1280 = vsub.f32 %v193, %v199
        %v1281 = vsub.f32 %v194, %v200
        %v1282 = vadd.f32 %v1274, %v1278
        %v1283 = vadd.f32 %v1275, %v1279
        %v1284 = vadd.f32 %v1276, %v1280
        %v1285 = vadd.f32 %v1277, %v1281
        %v1286 = vsub.f32 %v1274, %v1278
        %v1287 = vsub.f32 %v1275, %v1279
        %v1288 = vsub.f32 %v1276, %v1280
        %v1289 = vsub.f32 %v1277, %v1281
        %v1290 = vld [vmem:[%s189 + $0x19] sm:$0x1]
        %v1291 = vlaneseq
        %v1292 = vshrl.u32 %v1291, 7
        %v1293 = vsub.s32 0, %v1292
        %v1294 = vrot.slane %v1290, %v1293
        %v1295 = vmul.f32 %v1282, %v1294
        %v1296 = vld [vmem:[%s189 + $0x1e] sm:$0x1]
        %v1297 = vlaneseq
        %v1298 = vshrl.u32 %v1297, 7
        %v1299 = vsub.s32 0, %v1298
        %v1300 = vrot.slane %v1296, %v1299
        %v1301 = vmul.f32 %v1282, %v1300
        %v1302 = vmul.f32 %v1283, %v1300
        %v1305 = vrot.slane %v1301, 1
        %v1306 = vrot.slane %v1302, 1
        %v1307 = vsel %vm244, %v1305, %v1306
        %v1309 = vadd.f32 %v1295, %v1307
        %v1310 = vld [vmem:[%s189 + $0x23] sm:$0x1]
        %v1311 = vlaneseq
        %v1312 = vshrl.u32 %v1311, 7
        %v1313 = vsub.s32 0, %v1312
        %v1314 = vrot.slane %v1310, %v1313
        %v1315 = vmul.f32 %v1282, %v1314
        %v1316 = vmul.f32 %v1283, %v1314
        %v1319 = vrot.slane %v1315, 2
        %v1320 = vrot.slane %v1316, 2
        %v1321 = vsel %vm309, %v1319, %v1320
        %v1323 = vadd.f32 %v1309, %v1321
        %v1324 = vld [vmem:[%s189 + $0x28] sm:$0x1]
        %v1325 = vlaneseq
        %v1326 = vshrl.u32 %v1325, 7
        %v1327 = vsub.s32 0, %v1326
        %v1328 = vrot.slane %v1324, %v1327
        %v1329 = vmul.f32 %v1282, %v1328
        %v1330 = vmul.f32 %v1283, %v1328
        %vm1333 = vcmask 1044480
        %v1334 = vrot.slane %v1329, 3
        %v1335 = vrot.slane %v1330, 3
        %v1336 = vsel %vm1333, %v1334, %v1335
        %v1338 = vadd.f32 %v1323, %v1336
        %v1339 = vld [vmem:[%s189 + $0x2d] sm:$0x1]
        %v1340 = vlaneseq
        %v1341 = vshrl.u32 %v1340, 7
        %v1342 = vsub.s32 0, %v1341
        %v1343 = vrot.slane %v1339, %v1342
        %v1344 = vmul.f32 %v1282, %v1343
        %v1345 = vmul.f32 %v1283, %v1343
        %vm1348 = vcmask 1043456
        %v1349 = vrot.slane %v1344, 4
        %v1350 = vrot.slane %v1345, 4
        %v1351 = vsel %vm1348, %v1349, %v1350
        %v1353 = vadd.f32 %v1338, %v1351
        %v1354 = vld [vmem:[%s189 + $0x1a] sm:$0x1]
        %v1355 = vlaneseq
        %v1356 = vshrl.u32 %v1355, 7
        %v1357 = vsub.s32 0, %v1356
        %v1358 = vrot.slane %v1354, %v1357
        %v1359 = vmul.f32 %v1282, %v1358
        %v1360 = vld [vmem:[%s189 + $0x1f] sm:$0x1]
        %v1361 = vlaneseq
        %v1362 = vshrl.u32 %v1361, 7
        %v1363 = vsub.s32 0, %v1362
        %v1364 = vrot.slane %v1360, %v1363
        %v1365 = vmul.f32 %v1282, %v1364
        %v1366 = vmul.f32 %v1283, %v1364
        %v1369 = vrot.slane %v1365, 1
        %v1370 = vrot.slane %v1366, 1
        %v1371 = vsel %vm244, %v1369, %v1370
        %v1373 = vadd.f32 %v1359, %v1371
        %v1374 = vld [vmem:[%s189 + $0x24] sm:$0x1]
        %v1375 = vlaneseq
        %v1376 = vshrl.u32 %v1375, 7
        %v1377 = vsub.s32 0, %v1376
        %v1378 = vrot.slane %v1374, %v1377
        %v1379 = vmul.f32 %v1282, %v1378
        %v1380 = vmul.f32 %v1283, %v1378
        %v1383 = vrot.slane %v1379, 2
        %v1384 = vrot.slane %v1380, 2
        %v1385 = vsel %vm309, %v1383, %v1384
        %v1387 = vadd.f32 %v1373, %v1385
        %v1388 = vld [vmem:[%s189 + $0x29] sm:$0x1]
        %v1389 = vlaneseq
        %v1390 = vshrl.u32 %v1389, 7
        %v1391 = vsub.s32 0, %v1390
        %v1392 = vrot.slane %v1388, %v1391
        %v1393 = vmul.f32 %v1282, %v1392
        %v1394 = vmul.f32 %v1283, %v1392
        %v1397 = vrot.slane %v1393, 3
        %v1398 = vrot.slane %v1394, 3
        %v1399 = vsel %vm1333, %v1397, %v1398
        %v1401 = vadd.f32 %v1387, %v1399
        %v1402 = vld [vmem:[%s189 + $0x2e] sm:$0x1]
        %v1403 = vlaneseq
        %v1404 = vshrl.u32 %v1403, 7
        %v1405 = vsub.s32 0, %v1404
        %v1406 = vrot.slane %v1402, %v1405
        %v1407 = vmul.f32 %v1282, %v1406
        %v1408 = vmul.f32 %v1283, %v1406
        %v1411 = vrot.slane %v1407, 4
        %v1412 = vrot.slane %v1408, 4
        %v1413 = vsel %vm1348, %v1411, %v1412
        %v1415 = vadd.f32 %v1401, %v1413
        %1417 = vrot.lane.b32.xlu0 %v1415, 127
        %v1418 = vpop.permute.xlu0 %1417
        %v1420 = vadd.f32 %v1353, %v1418
        %v1421 = vld [vmem:[%s189 + $0x1b] sm:$0x1]
        %v1422 = vlaneseq
        %v1423 = vshrl.u32 %v1422, 7
        %v1424 = vsub.s32 0, %v1423
        %v1425 = vrot.slane %v1421, %v1424
        %v1426 = vmul.f32 %v1282, %v1425
        %v1427 = vld [vmem:[%s189 + $0x20] sm:$0x1]
        %v1428 = vlaneseq
        %v1429 = vshrl.u32 %v1428, 7
        %v1430 = vsub.s32 0, %v1429
        %v1431 = vrot.slane %v1427, %v1430
        %v1432 = vmul.f32 %v1282, %v1431
        %v1433 = vmul.f32 %v1283, %v1431
        %v1436 = vrot.slane %v1432, 1
        %v1437 = vrot.slane %v1433, 1
        %v1438 = vsel %vm244, %v1436, %v1437
        %v1440 = vadd.f32 %v1426, %v1438
        %v1441 = vld [vmem:[%s189 + $0x25] sm:$0x1]
        %v1442 = vlaneseq
        %v1443 = vshrl.u32 %v1442, 7
        %v1444 = vsub.s32 0, %v1443
        %v1445 = vrot.slane %v1441, %v1444
        %v1446 = vmul.f32 %v1282, %v1445
        %v1447 = vmul.f32 %v1283, %v1445
        %v1450 = vrot.slane %v1446, 2
        %v1451 = vrot.slane %v1447, 2
        %v1452 = vsel %vm309, %v1450, %v1451
        %v1454 = vadd.f32 %v1440, %v1452
        %v1455 = vld [vmem:[%s189 + $0x2a] sm:$0x1]
        %v1456 = vlaneseq
        %v1457 = vshrl.u32 %v1456, 7
        %v1458 = vsub.s32 0, %v1457
        %v1459 = vrot.slane %v1455, %v1458
        %v1460 = vmul.f32 %v1282, %v1459
        %v1461 = vmul.f32 %v1283, %v1459
        %v1464 = vrot.slane %v1460, 3
        %v1465 = vrot.slane %v1461, 3
        %v1466 = vsel %vm1333, %v1464, %v1465
        %v1468 = vadd.f32 %v1454, %v1466
        %v1469 = vld [vmem:[%s189 + $0x2f] sm:$0x1]
        %v1470 = vlaneseq
        %v1471 = vshrl.u32 %v1470, 7
        %v1472 = vsub.s32 0, %v1471
        %v1473 = vrot.slane %v1469, %v1472
        %v1474 = vmul.f32 %v1282, %v1473
        %v1475 = vmul.f32 %v1283, %v1473
        %v1478 = vrot.slane %v1474, 4
        %v1479 = vrot.slane %v1475, 4
        %v1480 = vsel %vm1348, %v1478, %v1479
        %v1482 = vadd.f32 %v1468, %v1480
        %1484 = vrot.lane.b32.xlu0 %v1482, 126
        %v1485 = vpop.permute.xlu0 %1484
        %v1487 = vadd.f32 %v1420, %v1485
        %v1488 = vld [vmem:[%s189 + $0x1c] sm:$0x1]
        %v1489 = vlaneseq
        %v1490 = vshrl.u32 %v1489, 7
        %v1491 = vsub.s32 0, %v1490
        %v1492 = vrot.slane %v1488, %v1491
        %v1493 = vmul.f32 %v1282, %v1492
        %v1494 = vld [vmem:[%s189 + $0x21] sm:$0x1]
        %v1495 = vlaneseq
        %v1496 = vshrl.u32 %v1495, 7
        %v1497 = vsub.s32 0, %v1496
        %v1498 = vrot.slane %v1494, %v1497
        %v1499 = vmul.f32 %v1282, %v1498
        %v1500 = vmul.f32 %v1283, %v1498
        %v1503 = vrot.slane %v1499, 1
        %v1504 = vrot.slane %v1500, 1
        %v1505 = vsel %vm244, %v1503, %v1504
        %v1507 = vadd.f32 %v1493, %v1505
        %v1508 = vld [vmem:[%s189 + $0x26] sm:$0x1]
        %v1509 = vlaneseq
        %v1510 = vshrl.u32 %v1509, 7
        %v1511 = vsub.s32 0, %v1510
        %v1512 = vrot.slane %v1508, %v1511
        %v1513 = vmul.f32 %v1282, %v1512
        %v1514 = vmul.f32 %v1283, %v1512
        %v1517 = vrot.slane %v1513, 2
        %v1518 = vrot.slane %v1514, 2
        %v1519 = vsel %vm309, %v1517, %v1518
        %v1521 = vadd.f32 %v1507, %v1519
        %v1522 = vld [vmem:[%s189 + $0x2b] sm:$0x1]
        %v1523 = vlaneseq
        %v1524 = vshrl.u32 %v1523, 7
        %v1525 = vsub.s32 0, %v1524
        %v1526 = vrot.slane %v1522, %v1525
        %v1527 = vmul.f32 %v1282, %v1526
        %v1528 = vmul.f32 %v1283, %v1526
        %v1531 = vrot.slane %v1527, 3
        %v1532 = vrot.slane %v1528, 3
        %v1533 = vsel %vm1333, %v1531, %v1532
        %v1535 = vadd.f32 %v1521, %v1533
        %v1536 = vld [vmem:[%s189 + $0x30] sm:$0x1]
        %v1537 = vlaneseq
        %v1538 = vshrl.u32 %v1537, 7
        %v1539 = vsub.s32 0, %v1538
        %v1540 = vrot.slane %v1536, %v1539
        %v1541 = vmul.f32 %v1282, %v1540
        %v1542 = vmul.f32 %v1283, %v1540
        %v1545 = vrot.slane %v1541, 4
        %v1546 = vrot.slane %v1542, 4
        %v1547 = vsel %vm1348, %v1545, %v1546
        %v1549 = vadd.f32 %v1535, %v1547
        %1551 = vrot.lane.b32.xlu0 %v1549, 125
        %v1552 = vpop.permute.xlu0 %1551
        %v1554 = vadd.f32 %v1487, %v1552
        %v1555 = vld [vmem:[%s189 + $0x1d] sm:$0x1]
        %v1556 = vlaneseq
        %v1557 = vshrl.u32 %v1556, 7
        %v1558 = vsub.s32 0, %v1557
        %v1559 = vrot.slane %v1555, %v1558
        %v1560 = vmul.f32 %v1282, %v1559
        %v1561 = vld [vmem:[%s189 + $0x22] sm:$0x1]
        %v1562 = vlaneseq
        %v1563 = vshrl.u32 %v1562, 7
        %v1564 = vsub.s32 0, %v1563
        %v1565 = vrot.slane %v1561, %v1564
        %v1566 = vmul.f32 %v1282, %v1565
        %v1567 = vmul.f32 %v1283, %v1565
        %v1570 = vrot.slane %v1566, 1
        %v1571 = vrot.slane %v1567, 1
        %v1572 = vsel %vm244, %v1570, %v1571
        %v1574 = vadd.f32 %v1560, %v1572
        %v1575 = vld [vmem:[%s189 + $0x27] sm:$0x1]
        %v1576 = vlaneseq
        %v1577 = vshrl.u32 %v1576, 7
        %v1578 = vsub.s32 0, %v1577
        %v1579 = vrot.slane %v1575, %v1578
        %v1580 = vmul.f32 %v1282, %v1579
        %v1581 = vmul.f32 %v1283, %v1579
        %v1584 = vrot.slane %v1580, 2
        %v1585 = vrot.slane %v1581, 2
        %v1586 = vsel %vm309, %v1584, %v1585
        %v1588 = vadd.f32 %v1574, %v1586
        %v1589 = vld [vmem:[%s189 + $0x2c] sm:$0x1]
        %v1590 = vlaneseq
        %v1591 = vshrl.u32 %v1590, 7
        %v1592 = vsub.s32 0, %v1591
        %v1593 = vrot.slane %v1589, %v1592
        %v1594 = vmul.f32 %v1282, %v1593
        %v1595 = vmul.f32 %v1283, %v1593
        %v1598 = vrot.slane %v1594, 3
        %v1599 = vrot.slane %v1595, 3
        %v1600 = vsel %vm1333, %v1598, %v1599
        %v1602 = vadd.f32 %v1588, %v1600
        %v1603 = vld [vmem:[%s189 + $0x31] sm:$0x1]
        %v1604 = vlaneseq
        %v1605 = vshrl.u32 %v1604, 7
        %v1606 = vsub.s32 0, %v1605
        %v1607 = vrot.slane %v1603, %v1606
        %v1608 = vmul.f32 %v1282, %v1607
        %v1609 = vmul.f32 %v1283, %v1607
        %v1612 = vrot.slane %v1608, 4
        %v1613 = vrot.slane %v1609, 4
        %v1614 = vsel %vm1348, %v1612, %v1613
        %v1616 = vadd.f32 %v1602, %v1614
        %1618 = vrot.lane.b32.xlu0 %v1616, 124
        %v1619 = vpop.permute.xlu0 %1618
        %v1621 = vadd.f32 %v1554, %v1619
        %v1623 = vrot.slane %v1621, 7
        %1624 = vrot.lane.b32.xlu0 %v1623, 1
        %v1625 = vpop.permute.xlu0 %1624
        %v1627 = vadd.f32 %v545, %v1625
        %v1628 = vadd.f32 %v546, %v1625
        %v1629 = vadd.f32 %v764, %v1625
        %v1630 = vadd.f32 %v765, %v1625
        %v1631 = vadd.f32 %v1018, %v1625
        %v1632 = vadd.f32 %v1019, %v1625
        %v1633 = vadd.f32 %v1272, %v1625
        %v1634 = vadd.f32 %v1273, %v1625
        %v1635 = vld [vmem:[%s189 + $0x32] sm:$0x1]
        %v1636 = vlaneseq
        %v1637 = vshrl.u32 %v1636, 7
        %v1638 = vsub.s32 0, %v1637
        %v1639 = vrot.slane %v1635, %v1638
        %v1640 = vmul.f32 %v1284, %v1639
        %v1641 = vld [vmem:[%s189 + $0x37] sm:$0x1]
        %v1642 = vlaneseq
        %v1643 = vshrl.u32 %v1642, 7
        %v1644 = vsub.s32 0, %v1643
        %v1645 = vrot.slane %v1641, %v1644
        %v1646 = vmul.f32 %v1284, %v1645
        %v1647 = vmul.f32 %v1285, %v1645
        %v1650 = vrot.slane %v1646, 1
        %v1651 = vrot.slane %v1647, 1
        %v1652 = vsel %vm244, %v1650, %v1651
        %v1654 = vadd.f32 %v1640, %v1652
        %v1655 = vld [vmem:[%s189 + $0x3c] sm:$0x1]
        %v1656 = vlaneseq
        %v1657 = vshrl.u32 %v1656, 7
        %v1658 = vsub.s32 0, %v1657
        %v1659 = vrot.slane %v1655, %v1658
        %v1660 = vmul.f32 %v1284, %v1659
        %v1661 = vmul.f32 %v1285, %v1659
        %v1664 = vrot.slane %v1660, 2
        %v1665 = vrot.slane %v1661, 2
        %v1666 = vsel %vm309, %v1664, %v1665
        %v1668 = vadd.f32 %v1654, %v1666
        %v1669 = vld [vmem:[%s189 + $0x41] sm:$0x1]
        %v1670 = vlaneseq
        %v1671 = vshrl.u32 %v1670, 7
        %v1672 = vsub.s32 0, %v1671
        %v1673 = vrot.slane %v1669, %v1672
        %v1674 = vmul.f32 %v1284, %v1673
        %v1675 = vmul.f32 %v1285, %v1673
        %v1678 = vrot.slane %v1674, 3
        %v1679 = vrot.slane %v1675, 3
        %v1680 = vsel %vm1333, %v1678, %v1679
        %v1682 = vadd.f32 %v1668, %v1680
        %v1683 = vld [vmem:[%s189 + $0x46] sm:$0x1]
        %v1684 = vlaneseq
        %v1685 = vshrl.u32 %v1684, 7
        %v1686 = vsub.s32 0, %v1685
        %v1687 = vrot.slane %v1683, %v1686
        %v1688 = vmul.f32 %v1284, %v1687
        %v1689 = vmul.f32 %v1285, %v1687
        %v1692 = vrot.slane %v1688, 4
        %v1693 = vrot.slane %v1689, 4
        %v1694 = vsel %vm1348, %v1692, %v1693
        %v1696 = vadd.f32 %v1682, %v1694
        %v1697 = vld [vmem:[%s189 + $0x33] sm:$0x1]
        %v1698 = vlaneseq
        %v1699 = vshrl.u32 %v1698, 7
        %v1700 = vsub.s32 0, %v1699
        %v1701 = vrot.slane %v1697, %v1700
        %v1702 = vmul.f32 %v1284, %v1701
        %v1703 = vld [vmem:[%s189 + $0x38] sm:$0x1]
        %v1704 = vlaneseq
        %v1705 = vshrl.u32 %v1704, 7
        %v1706 = vsub.s32 0, %v1705
        %v1707 = vrot.slane %v1703, %v1706
        %v1708 = vmul.f32 %v1284, %v1707
        %v1709 = vmul.f32 %v1285, %v1707
        %v1712 = vrot.slane %v1708, 1
        %v1713 = vrot.slane %v1709, 1
        %v1714 = vsel %vm244, %v1712, %v1713
        %v1716 = vadd.f32 %v1702, %v1714
        %v1717 = vld [vmem:[%s189 + $0x3d] sm:$0x1]
        %v1718 = vlaneseq
        %v1719 = vshrl.u32 %v1718, 7
        %v1720 = vsub.s32 0, %v1719
        %v1721 = vrot.slane %v1717, %v1720
        %v1722 = vmul.f32 %v1284, %v1721
        %v1723 = vmul.f32 %v1285, %v1721
        %v1726 = vrot.slane %v1722, 2
        %v1727 = vrot.slane %v1723, 2
        %v1728 = vsel %vm309, %v1726, %v1727
        %v1730 = vadd.f32 %v1716, %v1728
        %v1731 = vld [vmem:[%s189 + $0x42] sm:$0x1]
        %v1732 = vlaneseq
        %v1733 = vshrl.u32 %v1732, 7
        %v1734 = vsub.s32 0, %v1733
        %v1735 = vrot.slane %v1731, %v1734
        %v1736 = vmul.f32 %v1284, %v1735
        %v1737 = vmul.f32 %v1285, %v1735
        %v1740 = vrot.slane %v1736, 3
        %v1741 = vrot.slane %v1737, 3
        %v1742 = vsel %vm1333, %v1740, %v1741
        %v1744 = vadd.f32 %v1730, %v1742
        %v1745 = vld [vmem:[%s189 + $0x47] sm:$0x1]
        %v1746 = vlaneseq
        %v1747 = vshrl.u32 %v1746, 7
        %v1748 = vsub.s32 0, %v1747
        %v1749 = vrot.slane %v1745, %v1748
        %v1750 = vmul.f32 %v1284, %v1749
        %v1751 = vmul.f32 %v1285, %v1749
        %v1754 = vrot.slane %v1750, 4
        %v1755 = vrot.slane %v1751, 4
        %v1756 = vsel %vm1348, %v1754, %v1755
        %v1758 = vadd.f32 %v1744, %v1756
        %1760 = vrot.lane.b32.xlu0 %v1758, 127
        %v1761 = vpop.permute.xlu0 %1760
        %v1763 = vadd.f32 %v1696, %v1761
        %v1764 = vld [vmem:[%s189 + $0x34] sm:$0x1]
        %v1765 = vlaneseq
        %v1766 = vshrl.u32 %v1765, 7
        %v1767 = vsub.s32 0, %v1766
        %v1768 = vrot.slane %v1764, %v1767
        %v1769 = vmul.f32 %v1284, %v1768
        %v1770 = vld [vmem:[%s189 + $0x39] sm:$0x1]
        %v1771 = vlaneseq
        %v1772 = vshrl.u32 %v1771, 7
        %v1773 = vsub.s32 0, %v1772
        %v1774 = vrot.slane %v1770, %v1773
        %v1775 = vmul.f32 %v1284, %v1774
        %v1776 = vmul.f32 %v1285, %v1774
        %v1779 = vrot.slane %v1775, 1
        %v1780 = vrot.slane %v1776, 1
        %v1781 = vsel %vm244, %v1779, %v1780
        %v1783 = vadd.f32 %v1769, %v1781
        %v1784 = vld [vmem:[%s189 + $0x3e] sm:$0x1]
        %v1785 = vlaneseq
        %v1786 = vshrl.u32 %v1785, 7
        %v1787 = vsub.s32 0, %v1786
        %v1788 = vrot.slane %v1784, %v1787
        %v1789 = vmul.f32 %v1284, %v1788
        %v1790 = vmul.f32 %v1285, %v1788
        %v1793 = vrot.slane %v1789, 2
        %v1794 = vrot.slane %v1790, 2
        %v1795 = vsel %vm309, %v1793, %v1794
        %v1797 = vadd.f32 %v1783, %v1795
        %v1798 = vld [vmem:[%s189 + $0x43] sm:$0x1]
        %v1799 = vlaneseq
        %v1800 = vshrl.u32 %v1799, 7
        %v1801 = vsub.s32 0, %v1800
        %v1802 = vrot.slane %v1798, %v1801
        %v1803 = vmul.f32 %v1284, %v1802
        %v1804 = vmul.f32 %v1285, %v1802
        %v1807 = vrot.slane %v1803, 3
        %v1808 = vrot.slane %v1804, 3
        %v1809 = vsel %vm1333, %v1807, %v1808
        %v1811 = vadd.f32 %v1797, %v1809
        %v1812 = vld [vmem:[%s189 + $0x48] sm:$0x1]
        %v1813 = vlaneseq
        %v1814 = vshrl.u32 %v1813, 7
        %v1815 = vsub.s32 0, %v1814
        %v1816 = vrot.slane %v1812, %v1815
        %v1817 = vmul.f32 %v1284, %v1816
        %v1818 = vmul.f32 %v1285, %v1816
        %v1821 = vrot.slane %v1817, 4
        %v1822 = vrot.slane %v1818, 4
        %v1823 = vsel %vm1348, %v1821, %v1822
        %v1825 = vadd.f32 %v1811, %v1823
        %1827 = vrot.lane.b32.xlu0 %v1825, 126
        %v1828 = vpop.permute.xlu0 %1827
        %v1830 = vadd.f32 %v1763, %v1828
        %v1831 = vld [vmem:[%s189 + $0x35] sm:$0x1]
        %v1832 = vlaneseq
        %v1833 = vshrl.u32 %v1832, 7
        %v1834 = vsub.s32 0, %v1833
        %v1835 = vrot.slane %v1831, %v1834
        %v1836 = vmul.f32 %v1284, %v1835
        %v1837 = vld [vmem:[%s189 + $0x3a] sm:$0x1]
        %v1838 = vlaneseq
        %v1839 = vshrl.u32 %v1838, 7
        %v1840 = vsub.s32 0, %v1839
        %v1841 = vrot.slane %v1837, %v1840
        %v1842 = vmul.f32 %v1284, %v1841
        %v1843 = vmul.f32 %v1285, %v1841
        %v1846 = vrot.slane %v1842, 1
        %v1847 = vrot.slane %v1843, 1
        %v1848 = vsel %vm244, %v1846, %v1847
        %v1850 = vadd.f32 %v1836, %v1848
        %v1851 = vld [vmem:[%s189 + $0x3f] sm:$0x1]
        %v1852 = vlaneseq
        %v1853 = vshrl.u32 %v1852, 7
        %v1854 = vsub.s32 0, %v1853
        %v1855 = vrot.slane %v1851, %v1854
        %v1856 = vmul.f32 %v1284, %v1855
        %v1857 = vmul.f32 %v1285, %v1855
        %v1860 = vrot.slane %v1856, 2
        %v1861 = vrot.slane %v1857, 2
        %v1862 = vsel %vm309, %v1860, %v1861
        %v1864 = vadd.f32 %v1850, %v1862
        %v1865 = vld [vmem:[%s189 + $0x44] sm:$0x1]
        %v1866 = vlaneseq
        %v1867 = vshrl.u32 %v1866, 7
        %v1868 = vsub.s32 0, %v1867
        %v1869 = vrot.slane %v1865, %v1868
        %v1870 = vmul.f32 %v1284, %v1869
        %v1871 = vmul.f32 %v1285, %v1869
        %v1874 = vrot.slane %v1870, 3
        %v1875 = vrot.slane %v1871, 3
        %v1876 = vsel %vm1333, %v1874, %v1875
        %v1878 = vadd.f32 %v1864, %v1876
        %v1879 = vld [vmem:[%s189 + $0x49] sm:$0x1]
        %v1880 = vlaneseq
        %v1881 = vshrl.u32 %v1880, 7
        %v1882 = vsub.s32 0, %v1881
        %v1883 = vrot.slane %v1879, %v1882
        %v1884 = vmul.f32 %v1284, %v1883
        %v1885 = vmul.f32 %v1285, %v1883
        %v1888 = vrot.slane %v1884, 4
        %v1889 = vrot.slane %v1885, 4
        %v1890 = vsel %vm1348, %v1888, %v1889
        %v1892 = vadd.f32 %v1878, %v1890
        %1894 = vrot.lane.b32.xlu0 %v1892, 125
        %v1895 = vpop.permute.xlu0 %1894
        %v1897 = vadd.f32 %v1830, %v1895
        %v1898 = vld [vmem:[%s189 + $0x36] sm:$0x1]
        %v1899 = vlaneseq
        %v1900 = vshrl.u32 %v1899, 7
        %v1901 = vsub.s32 0, %v1900
        %v1902 = vrot.slane %v1898, %v1901
        %v1903 = vmul.f32 %v1284, %v1902
        %v1904 = vld [vmem:[%s189 + $0x3b] sm:$0x1]
        %v1905 = vlaneseq
        %v1906 = vshrl.u32 %v1905, 7
        %v1907 = vsub.s32 0, %v1906
        %v1908 = vrot.slane %v1904, %v1907
        %v1909 = vmul.f32 %v1284, %v1908
        %v1910 = vmul.f32 %v1285, %v1908
        %v1913 = vrot.slane %v1909, 1
        %v1914 = vrot.slane %v1910, 1
        %v1915 = vsel %vm244, %v1913, %v1914
        %v1917 = vadd.f32 %v1903, %v1915
        %v1918 = vld [vmem:[%s189 + $0x40] sm:$0x1]
        %v1919 = vlaneseq
        %v1920 = vshrl.u32 %v1919, 7
        %v1921 = vsub.s32 0, %v1920
        %v1922 = vrot.slane %v1918, %v1921
        %v1923 = vmul.f32 %v1284, %v1922
        %v1924 = vmul.f32 %v1285, %v1922
        %v1927 = vrot.slane %v1923, 2
        %v1928 = vrot.slane %v1924, 2
        %v1929 = vsel %vm309, %v1927, %v1928
        %v1931 = vadd.f32 %v1917, %v1929
        %v1932 = vld [vmem:[%s189 + $0x45] sm:$0x1]
        %v1933 = vlaneseq
        %v1934 = vshrl.u32 %v1933, 7
        %v1935 = vsub.s32 0, %v1934
        %v1936 = vrot.slane %v1932, %v1935
        %v1937 = vmul.f32 %v1284, %v1936
        %v1938 = vmul.f32 %v1285, %v1936
        %v1941 = vrot.slane %v1937, 3
        %v1942 = vrot.slane %v1938, 3
        %v1943 = vsel %vm1333, %v1941, %v1942
        %v1945 = vadd.f32 %v1931, %v1943
        %v1946 = vld [vmem:[%s189 + $0x4a] sm:$0x1]
        %v1947 = vlaneseq
        %v1948 = vshrl.u32 %v1947, 7
        %v1949 = vsub.s32 0, %v1948
        %v1950 = vrot.slane %v1946, %v1949
        %v1951 = vmul.f32 %v1284, %v1950
        %v1952 = vmul.f32 %v1285, %v1950
        %v1955 = vrot.slane %v1951, 4
        %v1956 = vrot.slane %v1952, 4
        %v1957 = vsel %vm1348, %v1955, %v1956
        %v1959 = vadd.f32 %v1945, %v1957
        %1961 = vrot.lane.b32.xlu0 %v1959, 124
        %v1962 = vpop.permute.xlu0 %1961
        %v1964 = vadd.f32 %v1897, %v1962
        %v1966 = vrot.slane %v1964, 7
        %1967 = vrot.lane.b32.xlu0 %v1966, 1
        %v1968 = vpop.permute.xlu0 %1967
        %v1970 = vadd.f32 %v1627, %v1968
        %v1971 = vadd.f32 %v1628, %v1968
        %v1972 = vadd.f32 %v1629, %v1968
        %v1973 = vadd.f32 %v1630, %v1968
        %v1974 = vsub.f32 %v1631, %v1968
        %v1975 = vsub.f32 %v1632, %v1968
        %v1976 = vsub.f32 %v1633, %v1968
        %v1977 = vsub.f32 %v1634, %v1968
        %v1978 = vld [vmem:[%s189 + $0x4b] sm:$0x1]
        %v1979 = vlaneseq
        %v1980 = vshrl.u32 %v1979, 7
        %v1981 = vsub.s32 0, %v1980
        %v1982 = vrot.slane %v1978, %v1981
        %v1983 = vmul.f32 %v1286, %v1982
        %v1984 = vld [vmem:[%s189 + $0x50] sm:$0x1]
        %v1985 = vlaneseq
        %v1986 = vshrl.u32 %v1985, 7
        %v1987 = vsub.s32 0, %v1986
        %v1988 = vrot.slane %v1984, %v1987
        %v1989 = vmul.f32 %v1286, %v1988
        %v1990 = vmul.f32 %v1287, %v1988
        %v1993 = vrot.slane %v1989, 1
        %v1994 = vrot.slane %v1990, 1
        %v1995 = vsel %vm244, %v1993, %v1994
        %v1997 = vadd.f32 %v1983, %v1995
        %v1998 = vld [vmem:[%s189 + $0x55] sm:$0x1]
        %v1999 = vlaneseq
        %v2000 = vshrl.u32 %v1999, 7
        %v2001 = vsub.s32 0, %v2000
        %v2002 = vrot.slane %v1998, %v2001
        %v2003 = vmul.f32 %v1286, %v2002
        %v2004 = vmul.f32 %v1287, %v2002
        %v2007 = vrot.slane %v2003, 2
        %v2008 = vrot.slane %v2004, 2
        %v2009 = vsel %vm309, %v2007, %v2008
        %v2011 = vadd.f32 %v1997, %v2009
        %v2012 = vld [vmem:[%s189 + $0x5a] sm:$0x1]
        %v2013 = vlaneseq
        %v2014 = vshrl.u32 %v2013, 7
        %v2015 = vsub.s32 0, %v2014
        %v2016 = vrot.slane %v2012, %v2015
        %v2017 = vmul.f32 %v1286, %v2016
        %v2018 = vmul.f32 %v1287, %v2016
        %v2021 = vrot.slane %v2017, 3
        %v2022 = vrot.slane %v2018, 3
        %v2023 = vsel %vm1333, %v2021, %v2022
        %v2025 = vadd.f32 %v2011, %v2023
        %v2026 = vld [vmem:[%s189 + $0x5f] sm:$0x1]
        %v2027 = vlaneseq
        %v2028 = vshrl.u32 %v2027, 7
        %v2029 = vsub.s32 0, %v2028
        %v2030 = vrot.slane %v2026, %v2029
        %v2031 = vmul.f32 %v1286, %v2030
        %v2032 = vmul.f32 %v1287, %v2030
        %v2035 = vrot.slane %v2031, 4
        %v2036 = vrot.slane %v2032, 4
        %v2037 = vsel %vm1348, %v2035, %v2036
        %v2039 = vadd.f32 %v2025, %v2037
        %v2040 = vld [vmem:[%s189 + $0x4c] sm:$0x1]
        %v2041 = vlaneseq
        %v2042 = vshrl.u32 %v2041, 7
        %v2043 = vsub.s32 0, %v2042
        %v2044 = vrot.slane %v2040, %v2043
        %v2045 = vmul.f32 %v1286, %v2044
        %v2046 = vld [vmem:[%s189 + $0x51] sm:$0x1]
        %v2047 = vlaneseq
        %v2048 = vshrl.u32 %v2047, 7
        %v2049 = vsub.s32 0, %v2048
        %v2050 = vrot.slane %v2046, %v2049
        %v2051 = vmul.f32 %v1286, %v2050
        %v2052 = vmul.f32 %v1287, %v2050
        %v2055 = vrot.slane %v2051, 1
        %v2056 = vrot.slane %v2052, 1
        %v2057 = vsel %vm244, %v2055, %v2056
        %v2059 = vadd.f32 %v2045, %v2057
        %v2060 = vld [vmem:[%s189 + $0x56] sm:$0x1]
        %v2061 = vlaneseq
        %v2062 = vshrl.u32 %v2061, 7
        %v2063 = vsub.s32 0, %v2062
        %v2064 = vrot.slane %v2060, %v2063
        %v2065 = vmul.f32 %v1286, %v2064
        %v2066 = vmul.f32 %v1287, %v2064
        %v2069 = vrot.slane %v2065, 2
        %v2070 = vrot.slane %v2066, 2
        %v2071 = vsel %vm309, %v2069, %v2070
        %v2073 = vadd.f32 %v2059, %v2071
        %v2074 = vld [vmem:[%s189 + $0x5b] sm:$0x1]
        %v2075 = vlaneseq
        %v2076 = vshrl.u32 %v2075, 7
        %v2077 = vsub.s32 0, %v2076
        %v2078 = vrot.slane %v2074, %v2077
        %v2079 = vmul.f32 %v1286, %v2078
        %v2080 = vmul.f32 %v1287, %v2078
        %v2083 = vrot.slane %v2079, 3
        %v2084 = vrot.slane %v2080, 3
        %v2085 = vsel %vm1333, %v2083, %v2084
        %v2087 = vadd.f32 %v2073, %v2085
        %v2088 = vld [vmem:[%s189 + $0x60] sm:$0x1]
        %v2089 = vlaneseq
        %v2090 = vshrl.u32 %v2089, 7
        %v2091 = vsub.s32 0, %v2090
        %v2092 = vrot.slane %v2088, %v2091
        %v2093 = vmul.f32 %v1286, %v2092
        %v2094 = vmul.f32 %v1287, %v2092
        %v2097 = vrot.slane %v2093, 4
        %v2098 = vrot.slane %v2094, 4
        %v2099 = vsel %vm1348, %v2097, %v2098
        %v2101 = vadd.f32 %v2087, %v2099
        %2103 = vrot.lane.b32.xlu0 %v2101, 127
        %v2104 = vpop.permute.xlu0 %2103
        %v2106 = vadd.f32 %v2039, %v2104
        %v2107 = vld [vmem:[%s189 + $0x4d] sm:$0x1]
        %v2108 = vlaneseq
        %v2109 = vshrl.u32 %v2108, 7
        %v2110 = vsub.s32 0, %v2109
        %v2111 = vrot.slane %v2107, %v2110
        %v2112 = vmul.f32 %v1286, %v2111
        %v2113 = vld [vmem:[%s189 + $0x52] sm:$0x1]
        %v2114 = vlaneseq
        %v2115 = vshrl.u32 %v2114, 7
        %v2116 = vsub.s32 0, %v2115
        %v2117 = vrot.slane %v2113, %v2116
        %v2118 = vmul.f32 %v1286, %v2117
        %v2119 = vmul.f32 %v1287, %v2117
        %v2122 = vrot.slane %v2118, 1
        %v2123 = vrot.slane %v2119, 1
        %v2124 = vsel %vm244, %v2122, %v2123
        %v2126 = vadd.f32 %v2112, %v2124
        %v2127 = vld [vmem:[%s189 + $0x57] sm:$0x1]
        %v2128 = vlaneseq
        %v2129 = vshrl.u32 %v2128, 7
        %v2130 = vsub.s32 0, %v2129
        %v2131 = vrot.slane %v2127, %v2130
        %v2132 = vmul.f32 %v1286, %v2131
        %v2133 = vmul.f32 %v1287, %v2131
        %v2136 = vrot.slane %v2132, 2
        %v2137 = vrot.slane %v2133, 2
        %v2138 = vsel %vm309, %v2136, %v2137
        %v2140 = vadd.f32 %v2126, %v2138
        %v2141 = vld [vmem:[%s189 + $0x5c] sm:$0x1]
        %v2142 = vlaneseq
        %v2143 = vshrl.u32 %v2142, 7
        %v2144 = vsub.s32 0, %v2143
        %v2145 = vrot.slane %v2141, %v2144
        %v2146 = vmul.f32 %v1286, %v2145
        %v2147 = vmul.f32 %v1287, %v2145
        %v2150 = vrot.slane %v2146, 3
        %v2151 = vrot.slane %v2147, 3
        %v2152 = vsel %vm1333, %v2150, %v2151
        %v2154 = vadd.f32 %v2140, %v2152
        %v2155 = vld [vmem:[%s189 + $0x61] sm:$0x1]
        %v2156 = vlaneseq
        %v2157 = vshrl.u32 %v2156, 7
        %v2158 = vsub.s32 0, %v2157
        %v2159 = vrot.slane %v2155, %v2158
        %v2160 = vmul.f32 %v1286, %v2159
        %v2161 = vmul.f32 %v1287, %v2159
        %v2164 = vrot.slane %v2160, 4
        %v2165 = vrot.slane %v2161, 4
        %v2166 = vsel %vm1348, %v2164, %v2165
        %v2168 = vadd.f32 %v2154, %v2166
        %2170 = vrot.lane.b32.xlu0 %v2168, 126
        %v2171 = vpop.permute.xlu0 %2170
        %v2173 = vadd.f32 %v2106, %v2171
        %v2174 = vld [vmem:[%s189 + $0x4e] sm:$0x1]
        %v2175 = vlaneseq
        %v2176 = vshrl.u32 %v2175, 7
        %v2177 = vsub.s32 0, %v2176
        %v2178 = vrot.slane %v2174, %v2177
        %v2179 = vmul.f32 %v1286, %v2178
        %v2180 = vld [vmem:[%s189 + $0x53] sm:$0x1]
        %v2181 = vlaneseq
        %v2182 = vshrl.u32 %v2181, 7
        %v2183 = vsub.s32 0, %v2182
        %v2184 = vrot.slane %v2180, %v2183
        %v2185 = vmul.f32 %v1286, %v2184
        %v2186 = vmul.f32 %v1287, %v2184
        %v2189 = vrot.slane %v2185, 1
        %v2190 = vrot.slane %v2186, 1
        %v2191 = vsel %vm244, %v2189, %v2190
        %v2193 = vadd.f32 %v2179, %v2191
        %v2194 = vld [vmem:[%s189 + $0x58] sm:$0x1]
        %v2195 = vlaneseq
        %v2196 = vshrl.u32 %v2195, 7
        %v2197 = vsub.s32 0, %v2196
        %v2198 = vrot.slane %v2194, %v2197
        %v2199 = vmul.f32 %v1286, %v2198
        %v2200 = vmul.f32 %v1287, %v2198
        %v2203 = vrot.slane %v2199, 2
        %v2204 = vrot.slane %v2200, 2
        %v2205 = vsel %vm309, %v2203, %v2204
        %v2207 = vadd.f32 %v2193, %v2205
        %v2208 = vld [vmem:[%s189 + $0x5d] sm:$0x1]
        %v2209 = vlaneseq
        %v2210 = vshrl.u32 %v2209, 7
        %v2211 = vsub.s32 0, %v2210
        %v2212 = vrot.slane %v2208, %v2211
        %v2213 = vmul.f32 %v1286, %v2212
        %v2214 = vmul.f32 %v1287, %v2212
        %v2217 = vrot.slane %v2213, 3
        %v2218 = vrot.slane %v2214, 3
        %v2219 = vsel %vm1333, %v2217, %v2218
        %v2221 = vadd.f32 %v2207, %v2219
        %v2222 = vld [vmem:[%s189 + $0x62] sm:$0x1]
        %v2223 = vlaneseq
        %v2224 = vshrl.u32 %v2223, 7
        %v2225 = vsub.s32 0, %v2224
        %v2226 = vrot.slane %v2222, %v2225
        %v2227 = vmul.f32 %v1286, %v2226
        %v2228 = vmul.f32 %v1287, %v2226
        %v2231 = vrot.slane %v2227, 4
        %v2232 = vrot.slane %v2228, 4
        %v2233 = vsel %vm1348, %v2231, %v2232
        %v2235 = vadd.f32 %v2221, %v2233
        %2237 = vrot.lane.b32.xlu0 %v2235, 125
        %v2238 = vpop.permute.xlu0 %2237
        %v2240 = vadd.f32 %v2173, %v2238
        %v2241 = vld [vmem:[%s189 + $0x4f] sm:$0x1]
        %v2242 = vlaneseq
        %v2243 = vshrl.u32 %v2242, 7
        %v2244 = vsub.s32 0, %v2243
        %v2245 = vrot.slane %v2241, %v2244
        %v2246 = vmul.f32 %v1286, %v2245
        %v2247 = vld [vmem:[%s189 + $0x54] sm:$0x1]
        %v2248 = vlaneseq
        %v2249 = vshrl.u32 %v2248, 7
        %v2250 = vsub.s32 0, %v2249
        %v2251 = vrot.slane %v2247, %v2250
        %v2252 = vmul.f32 %v1286, %v2251
        %v2253 = vmul.f32 %v1287, %v2251
        %v2256 = vrot.slane %v2252, 1
        %v2257 = vrot.slane %v2253, 1
        %v2258 = vsel %vm244, %v2256, %v2257
        %v2260 = vadd.f32 %v2246, %v2258
        %v2261 = vld [vmem:[%s189 + $0x59] sm:$0x1]
        %v2262 = vlaneseq
        %v2263 = vshrl.u32 %v2262, 7
        %v2264 = vsub.s32 0, %v2263
        %v2265 = vrot.slane %v2261, %v2264
        %v2266 = vmul.f32 %v1286, %v2265
        %v2267 = vmul.f32 %v1287, %v2265
        %v2270 = vrot.slane %v2266, 2
        %v2271 = vrot.slane %v2267, 2
        %v2272 = vsel %vm309, %v2270, %v2271
        %v2274 = vadd.f32 %v2260, %v2272
        %v2275 = vld [vmem:[%s189 + $0x5e] sm:$0x1]
        %v2276 = vlaneseq
        %v2277 = vshrl.u32 %v2276, 7
        %v2278 = vsub.s32 0, %v2277
        %v2279 = vrot.slane %v2275, %v2278
        %v2280 = vmul.f32 %v1286, %v2279
        %v2281 = vmul.f32 %v1287, %v2279
        %v2284 = vrot.slane %v2280, 3
        %v2285 = vrot.slane %v2281, 3
        %v2286 = vsel %vm1333, %v2284, %v2285
        %v2288 = vadd.f32 %v2274, %v2286
        %v2289 = vld [vmem:[%s189 + $0x63] sm:$0x1]
        %v2290 = vlaneseq
        %v2291 = vshrl.u32 %v2290, 7
        %v2292 = vsub.s32 0, %v2291
        %v2293 = vrot.slane %v2289, %v2292
        %v2294 = vmul.f32 %v1286, %v2293
        %v2295 = vmul.f32 %v1287, %v2293
        %v2298 = vrot.slane %v2294, 4
        %v2299 = vrot.slane %v2295, 4
        %v2300 = vsel %vm1348, %v2298, %v2299
        %v2302 = vadd.f32 %v2288, %v2300
        %2304 = vrot.lane.b32.xlu0 %v2302, 124
        %v2305 = vpop.permute.xlu0 %2304
        %v2307 = vadd.f32 %v2240, %v2305
        %v2309 = vrot.slane %v2307, 7
        %2310 = vrot.lane.b32.xlu0 %v2309, 1
        %v2311 = vpop.permute.xlu0 %2310
        %v2313 = vadd.f32 %v1970, %v2311
        %v2314 = vadd.f32 %v1971, %v2311
        %v2315 = vsub.f32 %v1972, %v2311
        %v2316 = vsub.f32 %v1973, %v2311
        %v2317 = vadd.f32 %v1974, %v2311
        %v2318 = vadd.f32 %v1975, %v2311
        %v2319 = vsub.f32 %v1976, %v2311
        %v2320 = vsub.f32 %v1977, %v2311
        %v2321 = vld [vmem:[%s189 + $0x64] sm:$0x1]
        %v2322 = vlaneseq
        %v2323 = vshrl.u32 %v2322, 7
        %v2324 = vsub.s32 0, %v2323
        %v2325 = vrot.slane %v2321, %v2324
        %v2326 = vmul.f32 %v1288, %v2325
        %v2327 = vld [vmem:[%s189 + $0x69] sm:$0x1]
        %v2328 = vlaneseq
        %v2329 = vshrl.u32 %v2328, 7
        %v2330 = vsub.s32 0, %v2329
        %v2331 = vrot.slane %v2327, %v2330
        %v2332 = vmul.f32 %v1288, %v2331
        %v2333 = vmul.f32 %v1289, %v2331
        %v2336 = vrot.slane %v2332, 1
        %v2337 = vrot.slane %v2333, 1
        %v2338 = vsel %vm244, %v2336, %v2337
        %v2340 = vadd.f32 %v2326, %v2338
        %v2341 = vld [vmem:[%s189 + $0x6e] sm:$0x1]
        %v2342 = vlaneseq
        %v2343 = vshrl.u32 %v2342, 7
        %v2344 = vsub.s32 0, %v2343
        %v2345 = vrot.slane %v2341, %v2344
        %v2346 = vmul.f32 %v1288, %v2345
        %v2347 = vmul.f32 %v1289, %v2345
        %v2350 = vrot.slane %v2346, 2
        %v2351 = vrot.slane %v2347, 2
        %v2352 = vsel %vm309, %v2350, %v2351
        %v2354 = vadd.f32 %v2340, %v2352
        %v2355 = vld [vmem:[%s189 + $0x73] sm:$0x1]
        %v2356 = vlaneseq
        %v2357 = vshrl.u32 %v2356, 7
        %v2358 = vsub.s32 0, %v2357
        %v2359 = vrot.slane %v2355, %v2358
        %v2360 = vmul.f32 %v1288, %v2359
        %v2361 = vmul.f32 %v1289, %v2359
        %v2364 = vrot.slane %v2360, 3
        %v2365 = vrot.slane %v2361, 3
        %v2366 = vsel %vm1333, %v2364, %v2365
        %v2368 = vadd.f32 %v2354, %v2366
        %v2369 = vld [vmem:[%s189 + $0x78] sm:$0x1]
        %v2370 = vlaneseq
        %v2371 = vshrl.u32 %v2370, 7
        %v2372 = vsub.s32 0, %v2371
        %v2373 = vrot.slane %v2369, %v2372
        %v2374 = vmul.f32 %v1288, %v2373
        %v2375 = vmul.f32 %v1289, %v2373
        %v2378 = vrot.slane %v2374, 4
        %v2379 = vrot.slane %v2375, 4
        %v2380 = vsel %vm1348, %v2378, %v2379
        %v2382 = vadd.f32 %v2368, %v2380
        %v2383 = vld [vmem:[%s189 + $0x65] sm:$0x1]
        %v2384 = vlaneseq
        %v2385 = vshrl.u32 %v2384, 7
        %v2386 = vsub.s32 0, %v2385
        %v2387 = vrot.slane %v2383, %v2386
        %v2388 = vmul.f32 %v1288, %v2387
        %v2389 = vld [vmem:[%s189 + $0x6a] sm:$0x1]
        %v2390 = vlaneseq
        %v2391 = vshrl.u32 %v2390, 7
        %v2392 = vsub.s32 0, %v2391
        %v2393 = vrot.slane %v2389, %v2392
        %v2394 = vmul.f32 %v1288, %v2393
        %v2395 = vmul.f32 %v1289, %v2393
        %v2398 = vrot.slane %v2394, 1
        %v2399 = vrot.slane %v2395, 1
        %v2400 = vsel %vm244, %v2398, %v2399
        %v2402 = vadd.f32 %v2388, %v2400
        %v2403 = vld [vmem:[%s189 + $0x6f] sm:$0x1]
        %v2404 = vlaneseq
        %v2405 = vshrl.u32 %v2404, 7
        %v2406 = vsub.s32 0, %v2405
        %v2407 = vrot.slane %v2403, %v2406
        %v2408 = vmul.f32 %v1288, %v2407
        %v2409 = vmul.f32 %v1289, %v2407
        %v2412 = vrot.slane %v2408, 2
        %v2413 = vrot.slane %v2409, 2
        %v2414 = vsel %vm309, %v2412, %v2413
        %v2416 = vadd.f32 %v2402, %v2414
        %v2417 = vld [vmem:[%s189 + $0x74] sm:$0x1]
        %v2418 = vlaneseq
        %v2419 = vshrl.u32 %v2418, 7
        %v2420 = vsub.s32 0, %v2419
        %v2421 = vrot.slane %v2417, %v2420
        %v2422 = vmul.f32 %v1288, %v2421
        %v2423 = vmul.f32 %v1289, %v2421
        %v2426 = vrot.slane %v2422, 3
        %v2427 = vrot.slane %v2423, 3
        %v2428 = vsel %vm1333, %v2426, %v2427
        %v2430 = vadd.f32 %v2416, %v2428
        %v2431 = vld [vmem:[%s189 + $0x79] sm:$0x1]
        %v2432 = vlaneseq
        %v2433 = vshrl.u32 %v2432, 7
        %v2434 = vsub.s32 0, %v2433
        %v2435 = vrot.slane %v2431, %v2434
        %v2436 = vmul.f32 %v1288, %v2435
        %v2437 = vmul.f32 %v1289, %v2435
        %v2440 = vrot.slane %v2436, 4
        %v2441 = vrot.slane %v2437, 4
        %v2442 = vsel %vm1348, %v2440, %v2441
        %v2444 = vadd.f32 %v2430, %v2442
        %2446 = vrot.lane.b32.xlu0 %v2444, 127
        %v2447 = vpop.permute.xlu0 %2446
        %v2449 = vadd.f32 %v2382, %v2447
        %v2450 = vld [vmem:[%s189 + $0x66] sm:$0x1]
        %v2451 = vlaneseq
        %v2452 = vshrl.u32 %v2451, 7
        %v2453 = vsub.s32 0, %v2452
        %v2454 = vrot.slane %v2450, %v2453
        %v2455 = vmul.f32 %v1288, %v2454
        %v2456 = vld [vmem:[%s189 + $0x6b] sm:$0x1]
        %v2457 = vlaneseq
        %v2458 = vshrl.u32 %v2457, 7
        %v2459 = vsub.s32 0, %v2458
        %v2460 = vrot.slane %v2456, %v2459
        %v2461 = vmul.f32 %v1288, %v2460
        %v2462 = vmul.f32 %v1289, %v2460
        %v2465 = vrot.slane %v2461, 1
        %v2466 = vrot.slane %v2462, 1
        %v2467 = vsel %vm244, %v2465, %v2466
        %v2469 = vadd.f32 %v2455, %v2467
        %v2470 = vld [vmem:[%s189 + $0x70] sm:$0x1]
        %v2471 = vlaneseq
        %v2472 = vshrl.u32 %v2471, 7
        %v2473 = vsub.s32 0, %v2472
        %v2474 = vrot.slane %v2470, %v2473
        %v2475 = vmul.f32 %v1288, %v2474
        %v2476 = vmul.f32 %v1289, %v2474
        %v2479 = vrot.slane %v2475, 2
        %v2480 = vrot.slane %v2476, 2
        %v2481 = vsel %vm309, %v2479, %v2480
        %v2483 = vadd.f32 %v2469, %v2481
        %v2484 = vld [vmem:[%s189 + $0x75] sm:$0x1]
        %v2485 = vlaneseq
        %v2486 = vshrl.u32 %v2485, 7
        %v2487 = vsub.s32 0, %v2486
        %v2488 = vrot.slane %v2484, %v2487
        %v2489 = vmul.f32 %v1288, %v2488
        %v2490 = vmul.f32 %v1289, %v2488
        %v2493 = vrot.slane %v2489, 3
        %v2494 = vrot.slane %v2490, 3
        %v2495 = vsel %vm1333, %v2493, %v2494
        %v2497 = vadd.f32 %v2483, %v2495
        %v2498 = vld [vmem:[%s189 + $0x7a] sm:$0x1]
        %v2499 = vlaneseq
        %v2500 = vshrl.u32 %v2499, 7
        %v2501 = vsub.s32 0, %v2500
        %v2502 = vrot.slane %v2498, %v2501
        %v2503 = vmul.f32 %v1288, %v2502
        %v2504 = vmul.f32 %v1289, %v2502
        %v2507 = vrot.slane %v2503, 4
        %v2508 = vrot.slane %v2504, 4
        %v2509 = vsel %vm1348, %v2507, %v2508
        %v2511 = vadd.f32 %v2497, %v2509
        %2513 = vrot.lane.b32.xlu0 %v2511, 126
        %v2514 = vpop.permute.xlu0 %2513
        %v2516 = vadd.f32 %v2449, %v2514
        %v2517 = vld [vmem:[%s189 + $0x67] sm:$0x1]
        %v2518 = vlaneseq
        %v2519 = vshrl.u32 %v2518, 7
        %v2520 = vsub.s32 0, %v2519
        %v2521 = vrot.slane %v2517, %v2520
        %v2522 = vmul.f32 %v1288, %v2521
        %v2523 = vld [vmem:[%s189 + $0x6c] sm:$0x1]
        %v2524 = vlaneseq
        %v2525 = vshrl.u32 %v2524, 7
        %v2526 = vsub.s32 0, %v2525
        %v2527 = vrot.slane %v2523, %v2526
        %v2528 = vmul.f32 %v1288, %v2527
        %v2529 = vmul.f32 %v1289, %v2527
        %v2532 = vrot.slane %v2528, 1
        %v2533 = vrot.slane %v2529, 1
        %v2534 = vsel %vm244, %v2532, %v2533
        %v2536 = vadd.f32 %v2522, %v2534
        %v2537 = vld [vmem:[%s189 + $0x71] sm:$0x1]
        %v2538 = vlaneseq
        %v2539 = vshrl.u32 %v2538, 7
        %v2540 = vsub.s32 0, %v2539
        %v2541 = vrot.slane %v2537, %v2540
        %v2542 = vmul.f32 %v1288, %v2541
        %v2543 = vmul.f32 %v1289, %v2541
        %v2546 = vrot.slane %v2542, 2
        %v2547 = vrot.slane %v2543, 2
        %v2548 = vsel %vm309, %v2546, %v2547
        %v2550 = vadd.f32 %v2536, %v2548
        %v2551 = vld [vmem:[%s189 + $0x76] sm:$0x1]
        %v2552 = vlaneseq
        %v2553 = vshrl.u32 %v2552, 7
        %v2554 = vsub.s32 0, %v2553
        %v2555 = vrot.slane %v2551, %v2554
        %v2556 = vmul.f32 %v1288, %v2555
        %v2557 = vmul.f32 %v1289, %v2555
        %v2560 = vrot.slane %v2556, 3
        %v2561 = vrot.slane %v2557, 3
        %v2562 = vsel %vm1333, %v2560, %v2561
        %v2564 = vadd.f32 %v2550, %v2562
        %v2565 = vld [vmem:[%s189 + $0x7b] sm:$0x1]
        %v2566 = vlaneseq
        %v2567 = vshrl.u32 %v2566, 7
        %v2568 = vsub.s32 0, %v2567
        %v2569 = vrot.slane %v2565, %v2568
        %v2570 = vmul.f32 %v1288, %v2569
        %v2571 = vmul.f32 %v1289, %v2569
        %v2574 = vrot.slane %v2570, 4
        %v2575 = vrot.slane %v2571, 4
        %v2576 = vsel %vm1348, %v2574, %v2575
        %v2578 = vadd.f32 %v2564, %v2576
        %2580 = vrot.lane.b32.xlu0 %v2578, 125
        %v2581 = vpop.permute.xlu0 %2580
        %v2583 = vadd.f32 %v2516, %v2581
        %v2584 = vld [vmem:[%s189 + $0x68] sm:$0x1]
        %v2585 = vlaneseq
        %v2586 = vshrl.u32 %v2585, 7
        %v2587 = vsub.s32 0, %v2586
        %v2588 = vrot.slane %v2584, %v2587
        %v2589 = vmul.f32 %v1288, %v2588
        %v2590 = vld [vmem:[%s189 + $0x6d] sm:$0x1]
        %v2591 = vlaneseq
        %v2592 = vshrl.u32 %v2591, 7
        %v2593 = vsub.s32 0, %v2592
        %v2594 = vrot.slane %v2590, %v2593
        %v2595 = vmul.f32 %v1288, %v2594
        %v2596 = vmul.f32 %v1289, %v2594
        %v2599 = vrot.slane %v2595, 1
        %v2600 = vrot.slane %v2596, 1
        %v2601 = vsel %vm244, %v2599, %v2600
        %v2603 = vadd.f32 %v2589, %v2601
        %v2604 = vld [vmem:[%s189 + $0x72] sm:$0x1]
        %v2605 = vlaneseq
        %v2606 = vshrl.u32 %v2605, 7
        %v2607 = vsub.s32 0, %v2606
        %v2608 = vrot.slane %v2604, %v2607
        %v2609 = vmul.f32 %v1288, %v2608
        %v2610 = vmul.f32 %v1289, %v2608
        %v2613 = vrot.slane %v2609, 2
        %v2614 = vrot.slane %v2610, 2
        %v2615 = vsel %vm309, %v2613, %v2614
        %v2617 = vadd.f32 %v2603, %v2615
        %v2618 = vld [vmem:[%s189 + $0x77] sm:$0x1]
        %v2619 = vlaneseq
        %v2620 = vshrl.u32 %v2619, 7
        %v2621 = vsub.s32 0, %v2620
        %v2622 = vrot.slane %v2618, %v2621
        %v2623 = vmul.f32 %v1288, %v2622
        %v2624 = vmul.f32 %v1289, %v2622
        %v2627 = vrot.slane %v2623, 3
        %v2628 = vrot.slane %v2624, 3
        %v2629 = vsel %vm1333, %v2627, %v2628
        %v2631 = vadd.f32 %v2617, %v2629
        %v2632 = vld [vmem:[%s189 + $0x7c] sm:$0x1]
        %v2633 = vlaneseq
        %v2634 = vshrl.u32 %v2633, 7
        %v2635 = vsub.s32 0, %v2634
        %v2636 = vrot.slane %v2632, %v2635
        %v2637 = vmul.f32 %v1288, %v2636
        %v2638 = vmul.f32 %v1289, %v2636
        %v2641 = vrot.slane %v2637, 4
        %v2642 = vrot.slane %v2638, 4
        %v2643 = vsel %vm1348, %v2641, %v2642
        %v2645 = vadd.f32 %v2631, %v2643
        %2647 = vrot.lane.b32.xlu0 %v2645, 124
        %v2648 = vpop.permute.xlu0 %2647
        %v2650 = vadd.f32 %v2583, %v2648
        %v2652 = vrot.slane %v2650, 7
        %2653 = vrot.lane.b32.xlu0 %v2652, 1
        %v2654 = vpop.permute.xlu0 %2653
        %v2656 = vadd.f32 %v2313, %v2654
        %v2657 = vadd.f32 %v2314, %v2654
        %v2658 = vsub.f32 %v2315, %v2654
        %v2659 = vsub.f32 %v2316, %v2654
        %v2660 = vsub.f32 %v2317, %v2654
        %v2661 = vsub.f32 %v2318, %v2654
        %v2662 = vadd.f32 %v2319, %v2654
        %v2663 = vadd.f32 %v2320, %v2654
        %v2664 = vld [vmem:[%s189 + $0x7d] sm:$0x1]
        %v2665 = vlaneseq
        %v2666 = vshrl.u32 %v2665, 7
        %v2667 = vsub.s32 0, %v2666
        %v2668 = vrot.slane %v2664, %v2667
        %2670 = vrot.lane.b32.xlu0 %v2668, 127
        %v2671 = vpop.permute.xlu0 %2670
        %v2673 = vadd.f32 %v2656, %v2671
        %v2674 = vadd.f32 %v2657, %v2671
        %2677 = vrot.lane.b32.xlu0 %v2673, 127
        %v2678 = vpop.permute.xlu0 %2677
        %2679 = vrot.lane.b32.xlu0 %v2674, 127
        %v2680 = vpop.permute.xlu0 %2679
        %vm2683 = vcmask 392193
        %2684 = vst.msk [vmem:[%s175 - $0x1] sm:$0xfe] %vm2683, %v2678
        %vm2685 = vcmask 385024
        %2686 = vst.msk [vmem:[%s175 + $0x7] sm:$0x1] %vm2685, %v2680
        %v2687 = vadd.f32 %v2658, %v2671
        %v2688 = vadd.f32 %v2659, %v2671
        %2691 = vrot.lane.b32.xlu0 %v2687, 127
        %v2692 = vpop.permute.xlu0 %2691
        %2693 = vrot.lane.b32.xlu0 %v2688, 127
        %v2694 = vpop.permute.xlu0 %2693
        %s2697 = scalar_lea.vmem %s175, 8 [#allocation2]
        %2698 = vst.msk [vmem:[%s2697 - $0x1] sm:$0xfe] %vm2683, %v2692
        %2699 = vst.msk [vmem:[%s2697 + $0x7] sm:$0x1] %vm2685, %v2694
        %v2700 = vadd.f32 %v2660, %v2671
        %v2701 = vadd.f32 %v2661, %v2671
        %2704 = vrot.lane.b32.xlu0 %v2700, 127
        %v2705 = vpop.permute.xlu0 %2704
        %2706 = vrot.lane.b32.xlu0 %v2701, 127
        %v2707 = vpop.permute.xlu0 %2706
        %s2710 = scalar_lea.vmem %s175, 16 [#allocation2]
        %2711 = vst.msk [vmem:[%s2710 - $0x1] sm:$0xfe] %vm2683, %v2705
        %2712 = vst.msk [vmem:[%s2710 + $0x7] sm:$0x1] %vm2685, %v2707
        %v2713 = vadd.f32 %v2662, %v2671
        %v2714 = vadd.f32 %v2663, %v2671
        %2717 = vrot.lane.b32.xlu0 %v2713, 127
        %v2718 = vpop.permute.xlu0 %2717
        %2719 = vrot.lane.b32.xlu0 %v2714, 127
        %v2720 = vpop.permute.xlu0 %2719
        %s2723 = scalar_lea.vmem %s175, 24 [#allocation2]
        %2724 = vst.msk [vmem:[%s2723 - $0x1] sm:$0xfe] %vm2683, %v2718
        %2725 = vst.msk [vmem:[%s2723 + $0x7] sm:$0x1] %vm2685, %v2720
        %s2726 = sand.u32 %s92, 1
        %s2727 = scalar_lea.sflag [#allocation3], %s2726
        %s2728 = sand.u32 %s92, 1
        %s2729 = smul.addr %s2728, 32
        %s2730 = scalar_lea.vmem [#allocation2], %s2729
        // Predicated region
        $region29: #{tpu_custom_call.1} parent=27 // pred_check
          %p2731 = pneg %p102
        $region30: #{tpu_custom_call.1} parent=27 // pred_check_branch
          %2733 = sbr.rel (%p2731) target = $region32
        $region31: #{tpu_custom_call.1} parent=27 // pred_region
          %s2735 = ssub.s32 512, 512
          %2736 = vsyncadd %s2727, %s2735
          %s2737 = smul.addr %s21, 4
          %s2738 = smul.addr %s20, 8
          %s2739 = sadd.s32 %s2737, %s2738
          %s2740 = smul.addr %s2739, 128
          %s2741 = scalar_lea.hbm %s2, %s2740
          %s2742 = sshll.u32 %s2730, 4
          %s2743 = int_to_ptr.vmem [resolvable:$true] %s2742
          %2748 = dma.vmem_to_hbm [thread:$0]  %s2743, 512, %s2741, %s2727, 128, 128, 8
        $region32: #{tpu_custom_call.1} parent=27 // pred_fallthru
          _
      $region28: #{tpu_custom_call.1} parent=5 // pred_fallthru
        _
      %p2749 = scmp.le.s32.totalorder 2, %s11
      // Predicated region
      $region33: #{tpu_custom_call.1} parent=5 // pred_check
        %p2750 = pneg %p2749
      $region34: #{tpu_custom_call.1} parent=5 // pred_check_branch
        %2752 = sbr.rel (%p2750) target = $region36
      $region35: #{tpu_custom_call.1} parent=5 // pred_region
        %s2753 = ssub.s32 %s11, 2
        // Predicated region
        $region37: #{tpu_custom_call.1} parent=35 // pred_check
          %p2754 = pneg %p108
        $region38: #{tpu_custom_call.1} parent=35 // pred_check_branch
          %2756 = sbr.rel (%p2754) target = $region40
        $region39: #{tpu_custom_call.1} parent=35 // pred_region
          %s2757 = sand.u32 %s93, 1
          %s2758 = scalar_lea.sflag [#allocation3], %s2757
          %s2759 = sand.u32 %s93, 1
          %s2760 = smul.addr %s2759, 32
          %s2761 = scalar_lea.vmem [#allocation2], %s2760
          %2762 = dma.done %s2758, 512
        $region40: #{tpu_custom_call.1} parent=35 // pred_fallthru
          _
      $region36: #{tpu_custom_call.1} parent=5 // pred_fallthru
        _
    $region6: #{tpu_custom_call.1} parent=1 // loop_footer
      %s15 = sadd.s32 1, %s11
    $region7: #{tpu_custom_call.1} parent=1 // loop_footer_branch
      %10 = sbr.rel target = $region3
    $region8: #{tpu_custom_call.1} parent=1 // loop_exit
      _
    %2763 = vsyncpa [#allocation3], 1
    %s2764 = scalar_lea.sflag [#allocation3], 1
    %2765 = vsyncpa %s2764, 1

</llo_original>
